<compile_context>
chip_gen: v5e
topology: v5e:2x2
jax: 0.10.0
libtpu: 0.0.40
codegen_flags: <defaults>
</compile_context>

<pallas_src>
import functools

import jax
import jax.numpy as jnp
import numpy as np
from jax.experimental import pallas as pl
from jax.experimental.pallas import tpu as pltpu


def _upsample_conv_kernel(xpad_ref, w_ref, b_ref, out_ref, *, direct_halves):
    """Fused 2x-nearest-upsample + 3x3 'same' conv (polyphase form), one row tile.

    xpad_ref: (1, H+2, W+2, Cin)    zero-padded ORIGINAL-resolution NHWC image
                                    (resident across the row-tile grid axis)
    w_ref:    (2, 2, 4*Cin, Cout)   folded per-phase filters; K ordered (dh, dw, ci)
    b_ref:    (1, Cout)             conv bias (f32)
    out_ref:  (1, TH, 2, W, 2*Cout) row tile; row-major identical to NHWC (2TH, 2W, C)
    """
    rt = pl.program_id(1)
    _, TH, _, W, two_cout = out_ref.shape
    cout = two_cout // 2
    cin = xpad_ref.shape[-1]
    i0 = pl.multiple_of(rt * TH, TH)          # first original row of this tile
    bias = b_ref[...]                         # (1, Cout) f32, hoisted out of all phases

    # 3 distinct row windows (deduplicated across both row phases).
    rows = [xpad_ref[0, pl.ds(i0 + r, TH), :, :] for r in range(3)]    # (TH, W+2, Cin)
    # 9 distinct shifted patches (deduplicated across the 4 output phases).
    # The (TH, W, Cin) -> (TH*W, Cin) merge is cheap when W % 8 == 0 (sublane merge).
    P = [[rows[r][:, s:s + W, :].reshape(TH * W, cin) for s in range(3)]
         for r in range(3)]

    for a in (0, 1):                          # output row phase
        phase_tiles = []
        for b in (0, 1):                      # output column phase
            # One K = 4*Cin matmul per phase: taps folded into the contraction dim.
            # K order (dh, dw, ci) matches the weight fold below.
            lhs = jnp.concatenate(
                [P[a][b], P[a][b + 1], P[a + 1][b], P[a + 1][b + 1]], axis=-1)
            acc = jnp.dot(lhs, w_ref[a, b, :, :],
                          preferred_element_type=jnp.float32) + bias
            tile = acc.reshape(TH, W, cout).astype(out_ref.dtype)
            if direct_halves:
                # Cout % 128 == 0: lane-aligned, unmasked half-width store.  No
                # lane-concat copy; the accumulator's live range ends here.
                out_ref[0, :, a, :, b * cout:(b + 1) * cout] = tile
            else:
                phase_tiles.append(tile)
        if not direct_halves:
            # Small / unaligned channel counts: one wide lane-dense store per row
            # phase (avoids masked partial stores at non-128-aligned lane offsets).
            out_ref[0, :, a, :, :] = jnp.concatenate(phase_tiles, axis=-1)


def _phase_weights(weight_oihw):
    """Fold the 3x3 kernel into 4 effective 2x2 filters (one per output phase).

    Returns (2, 2, 4*Cin, Cout) indexed [a, b, (dh, dw, ci), co], with the K dim
    ordered (dh-major, dw, ci) to match the kernel's LHS concat order:
      Weff[a,b,dh,dw] = sum of W[kh,kw] whose upsampled tap lands on source (dh,dw).
    """
    cout, cin = int(weight_oihw.shape[0]), int(weight_oihw.shape[1])
    w_hwio = jnp.transpose(weight_oihw, (2, 3, 1, 0))        # OIHW -> (kh, kw, Cin, Cout)
    sel = np.zeros((2, 2, 2, 2, 3, 3), np.float32)           # [a, b, dh, dw, kh, kw]
    for a in range(2):
        for kh in range(3):
            dh = (a + kh - 1) // 2 + 1 - a                   # source-row tap in {0, 1}
            for b in range(2):
                for kw in range(3):
                    dw = (b + kw - 1) // 2 + 1 - b           # source-col tap in {0, 1}
                    sel[a, b, dh, dw, kh, kw] = 1.0
    w_eff = jnp.einsum("abuvhw,hwio->abuvio", jnp.asarray(sel), w_hwio)
    return w_eff.reshape(2, 2, 4 * cin, cout)


def _vmem_capacity_bytes():
    try:
        return int(pltpu.get_tpu_info().vmem_capacity_bytes)
    except Exception:
        return 64 * 1024 * 1024              # conservative fallback (v7x per-core VMEM)


def _step_vmem_bytes(TH, H, W, C, in_bufs, comp_isz, out_isz):
    """Per-grid-step VMEM estimate including the kernel's real temporaries."""
    resident_in = in_bufs * (H + 2) * (W + 2) * C * comp_isz   # padded image buffer(s)
    weights = 2 * (16 * C * C * comp_isz + 4 * C)              # folded filters + bias
    out_tile = 2 * (4 * TH * W * C) * out_isz                  # double-buffered output
    patches = 9 * TH * W * C * comp_isz                        # dedup'd shifted copies
    lhs = 2 * (4 * TH * W * C) * comp_isz                      # ~2 live fused-K LHS bufs
    accs = 2 * TH * W * C * 4                                  # f32 phase accumulators
    concat = 2 * TH * W * C * out_isz                          # wide-store temporary
    return resident_in + weights + out_tile + patches + lhs + accs + concat


def _pick_row_tile(H, W, C, out_isz, fits):
    """Largest divisor of H whose row tile writes >= ~1 MiB of output and fits VMEM."""
    target_rows = max(8, (1 << 20) // max(1, 4 * W * C * out_isz))
    divs = sorted((d for d in range(1, H + 1) if H % d == 0), reverse=True)
    for th in divs:
        if th <= target_rows and fits(th):
            return th
    # TODO(synk): H with no fitting divisor would need a masked tail tile; fall back
    # to the smallest tile rather than blowing VMEM.
    return 1


def upsample_forward_nhwc(x_nhwc, weight_oihw, bias, *, compute_dtype=None):
    """Fast path: 2x nearest upsample + 3x3 'same' conv, NHWC in -> NHWC out.

    No layout passes around the kernel — a model should use this entry point
    end-to-end.  `compute_dtype=jnp.bfloat16` casts the matmul operands (f32
    accumulation kept) for v6e/v7x MXU throughput and halves resident VMEM.
    """
    B, H, W, C = x_nhwc.shape
    cout, cin, kh, kw = weight_oihw.shape
    assert cin == C and cout == C and kh == 3 and kw == 3

    comp_dtype = jnp.dtype(compute_dtype) if compute_dtype is not None else jnp.dtype(x_nhwc.dtype)
    out_dtype = x_nhwc.dtype
    comp_isz = comp_dtype.itemsize
    out_isz = jnp.dtype(out_dtype).itemsize

    # Single cheap pass over the 1x-sized input: optional dtype cast + 1px zero-pad
    # (fused by XLA).  The 4x-sized upsampled/padded tensors never touch HBM.
    # TODO(synk): the 1px halo could be built in-kernel to remove even this pass.
    xpad = jnp.pad(x_nhwc.astype(comp_dtype), ((0, 0), (1, 1), (1, 1), (0, 0)))
    w_fold = _phase_weights(weight_oihw).astype(comp_dtype)      # (2, 2, 4C, C)
    b2 = bias.astype(jnp.float32).reshape(1, C)

    cap = _vmem_capacity_bytes()
    budget = cap - 16 * 1024 * 1024                              # Mosaic scratch headroom

    # The per-batch padded image only changes once per batch index, so when it is
    # large we single-buffer it (re-DMA amortized over H/TH row steps) instead of
    # double-holding it — this is what keeps big feature maps inside v7x's 64 MiB.
    in_block_bytes = (H + 2) * (W + 2) * C * comp_isz
    single_buffer_input = in_block_bytes > 8 * 1024 * 1024
    in_bufs = 1 if single_buffer_input else 2

    def fits(th):
        return _step_vmem_bytes(th, H, W, C, in_bufs, comp_isz, out_isz) <= budget

    TH = _pick_row_tile(H, W, C, out_isz, fits)
    est = _step_vmem_bytes(TH, H, W, C, in_bufs, comp_isz, out_isz)
    vmem_limit = int(min(max(2 * est, 32 * 1024 * 1024), cap - 8 * 1024 * 1024))

    x_index_map = lambda nb, rt: (nb, 0, 0, 0)
    if single_buffer_input:
        x_spec = pl.BlockSpec((1, H + 2, W + 2, C), x_index_map,
                              pipeline_mode=pl.Buffered(1))
    else:
        x_spec = pl.BlockSpec((1, H + 2, W + 2, C), x_index_map)

    direct_halves = (C % 128 == 0)            # lane-aligned half stores only when clean
    kernel = functools.partial(_upsample_conv_kernel, direct_halves=direct_halves)

    out5 = pl.pallas_call(
        kernel,
        out_shape=jax.ShapeDtypeStruct((B, H, 2, W, 2 * C), out_dtype),
        grid=(B, H // TH),
        in_specs=[
            x_spec,
            pl.BlockSpec((2, 2, 4 * C, C), lambda nb, rt: (0, 0, 0, 0)),
            pl.BlockSpec((1, C), lambda nb, rt: (0, 0)),
        ],
        out_specs=pl.BlockSpec((1, TH, 2, W, 2 * C), lambda nb, rt: (nb, rt, 0, 0, 0)),
        compiler_params=pltpu.CompilerParams(
            dimension_semantics=("parallel", "parallel"),
            vmem_limit_bytes=vmem_limit,
        ),
    )(xpad, w_fold, b2)

    # (B, H, 2, W, 2C) is row-major bit-identical to (B, 2H, 2W, C): free reshape.
    return out5.reshape(B, 2 * H, 2 * W, C)


def upsample_forward(x_nchw, weight_oihw=None, bias=None, *, use_conv=True, dims=2,
                     compute_dtype=None):
    """Forward pass of Upsample(channels, use_conv, dims=2) with NCHW in/out (torch).

    NOTE(perf): the NCHW<->NHWC boundary transposes live only in this wrapper to
    honor the torch module contract; a real model should call upsample_forward_nhwc
    end-to-end (or fold the output transpose into the consumer) and skip both
    4x-sized layout passes.
    """
    if dims != 2:
        # TODO(synk): dims=1 and dims=3 variants of conv_nd are not ported.
        raise NotImplementedError("only dims=2 is implemented")
    B, C, H, W = x_nchw.shape
    if not use_conv:
        return jnp.repeat(jnp.repeat(x_nchw, 2, axis=2), 2, axis=3)
    x_nhwc = jnp.transpose(x_nchw, (0, 2, 3, 1))
    out_nhwc = upsample_forward_nhwc(x_nhwc, weight_oihw, bias,
                                     compute_dtype=compute_dtype)
    return jnp.transpose(out_nhwc, (0, 3, 1, 2))


if __name__ == "__main__":
    key = jax.random.PRNGKey(0)
    B, C, H, W = 2, 4, 16, 16
    kx, kw, kb = jax.random.split(key, 3)

    x = jax.random.normal(kx, (B, C, H, W), dtype=jnp.float32)

    # Deterministic parameters matching Conv2d(C, C, 3, padding=1) shapes / init scale.
    fan_in = C * 3 * 3
    bound = 1.0 / (fan_in ** 0.5)
    weight = jax.random.uniform(kw, (C, C, 3, 3), jnp.float32, -bound, bound)   # torch OIHW
    bias = jax.random.uniform(kb, (C,), jnp.float32, -bound, bound)

    out = jax.jit(upsample_forward)(x, weight, bias)
    out = jax.block_until_ready(out)
    assert out.shape == (B, C, 2 * H, 2 * W)

    # Reference: plain-XLA nearest upsample + conv (NCHW, like torch).
    xu_ref = jnp.repeat(jnp.repeat(x, 2, axis=2), 2, axis=3)
    ref = jax.lax.conv_general_dilated(
        xu_ref, weight, window_strides=(1, 1), padding=((1, 1), (1, 1)),
        dimension_numbers=("NCHW", "OIHW", "NCHW")) + bias[None, :, None, None]
    max_err = float(jnp.max(jnp.abs(out - ref)))
    assert jnp.allclose(out, ref, atol=1e-4, rtol=1e-4), max_err

    # bf16-operand path (v6e/v7x MXU-native, f32 accumulation): looser tolerance.
    out_bf16 = jax.block_until_ready(
        jax.jit(functools.partial(upsample_forward, compute_dtype=jnp.bfloat16))(
            x, weight, bias))
    max_err_bf16 = float(jnp.max(jnp.abs(out_bf16 - ref)))
    assert jnp.allclose(out_bf16, ref, atol=3e-2, rtol=0.0), max_err_bf16

    print("KERNEL_OK")
</pallas_src>

<mosaic_0001>
module attributes {stable_mosaic.version = 11 : i64} {
  func.func @_upsample_conv_kernel(%arg0: i32, %arg1: i32, %arg2: memref<1x18x18x4xf32, #tpu.memory_space<vmem>>, %arg3: memref<2x2x16x4xf32, #tpu.memory_space<vmem>>, %arg4: memref<1x4xf32, #tpu.memory_space<vmem>>, %arg5: memref<1x16x2x16x8xf32, #tpu.memory_space<vmem>>) attributes {dimension_semantics = [#tpu.dimension_semantics<parallel>, #tpu.dimension_semantics<parallel>], iteration_bounds = array<i64: 2, 1>, scalar_prefetch = 0 : i64, scratch_operands = 0 : i64, tpu.core_type = #tpu.core_type<tc>, window_params = [{transform_indices = @transform_0, window_bounds = array<i64: 1, 18, 18, 4>}, {pipeline_mode = #tpu.pipeline_mode<synchronous>, transform_indices = @transform_1, window_bounds = array<i64: 2, 2, 16, 4>}, {pipeline_mode = #tpu.pipeline_mode<synchronous>, transform_indices = @transform_2, window_bounds = array<i64: 1, 4>}, {transform_indices = @transform_3, window_bounds = array<i64: 1, 16, 2, 16, 8>}]} {
    %c16_i32 = arith.constant 16 : i32
    %0 = arith.muli %arg1, %c16_i32 : i32
    %1 = tpu.assume_multiple %0, 16 : i32
    %c0 = arith.constant 0 : index
    %c0_0 = arith.constant 0 : index
    %2 = vector.load %arg4[%c0, %c0_0] : memref<1x4xf32, #tpu.memory_space<vmem>>, vector<1x4xf32>
    %c0_i32 = arith.constant 0 : i32
    %3 = arith.addi %1, %c0_i32 : i32
    %c0_1 = arith.constant 0 : index
    %4 = arith.index_cast %3 : i32 to index
    %c0_2 = arith.constant 0 : index
    %c0_3 = arith.constant 0 : index
    %5 = vector.load %arg2[%c0_1, %4, %c0_2, %c0_3] : memref<1x18x18x4xf32, #tpu.memory_space<vmem>>, vector<1x16x18x4xf32>
    %6 = vector.shape_cast %5 : vector<1x16x18x4xf32> to vector<16x18x4xf32>
    %c1_i32 = arith.constant 1 : i32
    %7 = arith.addi %1, %c1_i32 : i32
    %c0_4 = arith.constant 0 : index
    %8 = arith.index_cast %7 : i32 to index
    %c0_5 = arith.constant 0 : index
    %c0_6 = arith.constant 0 : index
    %9 = vector.load %arg2[%c0_4, %8, %c0_5, %c0_6] : memref<1x18x18x4xf32, #tpu.memory_space<vmem>>, vector<1x16x18x4xf32>
    %10 = vector.shape_cast %9 : vector<1x16x18x4xf32> to vector<16x18x4xf32>
    %c2_i32 = arith.constant 2 : i32
    %11 = arith.addi %1, %c2_i32 : i32
    %c0_7 = arith.constant 0 : index
    %12 = arith.index_cast %11 : i32 to index
    %c0_8 = arith.constant 0 : index
    %c0_9 = arith.constant 0 : index
    %13 = vector.load %arg2[%c0_7, %12, %c0_8, %c0_9] : memref<1x18x18x4xf32, #tpu.memory_space<vmem>>, vector<1x16x18x4xf32>
    %14 = vector.shape_cast %13 : vector<1x16x18x4xf32> to vector<16x18x4xf32>
    %15 = vector.extract_strided_slice %6 {offsets = [0, 0, 0], sizes = [16, 16, 4], strides = [1, 1, 1]} : vector<16x18x4xf32> to vector<16x16x4xf32>
    %16 = vector.shape_cast %15 : vector<16x16x4xf32> to vector<256x4xf32>
    %17 = vector.extract_strided_slice %6 {offsets = [0, 1, 0], sizes = [16, 16, 4], strides = [1, 1, 1]} : vector<16x18x4xf32> to vector<16x16x4xf32>
    %18 = vector.shape_cast %17 : vector<16x16x4xf32> to vector<256x4xf32>
    %19 = vector.extract_strided_slice %6 {offsets = [0, 2, 0], sizes = [16, 16, 4], strides = [1, 1, 1]} : vector<16x18x4xf32> to vector<16x16x4xf32>
    %20 = vector.shape_cast %19 : vector<16x16x4xf32> to vector<256x4xf32>
    %21 = vector.extract_strided_slice %10 {offsets = [0, 0, 0], sizes = [16, 16, 4], strides = [1, 1, 1]} : vector<16x18x4xf32> to vector<16x16x4xf32>
    %22 = vector.shape_cast %21 : vector<16x16x4xf32> to vector<256x4xf32>
    %23 = vector.extract_strided_slice %10 {offsets = [0, 1, 0], sizes = [16, 16, 4], strides = [1, 1, 1]} : vector<16x18x4xf32> to vector<16x16x4xf32>
    %24 = vector.shape_cast %23 : vector<16x16x4xf32> to vector<256x4xf32>
    %25 = vector.extract_strided_slice %10 {offsets = [0, 2, 0], sizes = [16, 16, 4], strides = [1, 1, 1]} : vector<16x18x4xf32> to vector<16x16x4xf32>
    %26 = vector.shape_cast %25 : vector<16x16x4xf32> to vector<256x4xf32>
    %27 = vector.extract_strided_slice %14 {offsets = [0, 0, 0], sizes = [16, 16, 4], strides = [1, 1, 1]} : vector<16x18x4xf32> to vector<16x16x4xf32>
    %28 = vector.shape_cast %27 : vector<16x16x4xf32> to vector<256x4xf32>
    %29 = vector.extract_strided_slice %14 {offsets = [0, 1, 0], sizes = [16, 16, 4], strides = [1, 1, 1]} : vector<16x18x4xf32> to vector<16x16x4xf32>
    %30 = vector.shape_cast %29 : vector<16x16x4xf32> to vector<256x4xf32>
    %31 = vector.extract_strided_slice %14 {offsets = [0, 2, 0], sizes = [16, 16, 4], strides = [1, 1, 1]} : vector<16x18x4xf32> to vector<16x16x4xf32>
    %32 = vector.shape_cast %31 : vector<16x16x4xf32> to vector<256x4xf32>
    %33 = tpu.concatenate %16, %18, %22, %24 in 1 : vector<256x4xf32>, vector<256x4xf32>, vector<256x4xf32>, vector<256x4xf32> -> vector<256x16xf32>
    %c0_10 = arith.constant 0 : index
    %c0_11 = arith.constant 0 : index
    %c0_12 = arith.constant 0 : index
    %c0_13 = arith.constant 0 : index
    %34 = vector.load %arg3[%c0_10, %c0_11, %c0_12, %c0_13] : memref<2x2x16x4xf32, #tpu.memory_space<vmem>>, vector<1x1x16x4xf32>
    %35 = vector.shape_cast %34 : vector<1x1x16x4xf32> to vector<16x4xf32>
    %cst = arith.constant dense<0.000000e+00> : vector<256x4xf32>
    %36 = tpu.matmul %33, %35, %cst {dimension_numbers = #tpu.dot_dimension_numbers<[1], [0], [0], [1], [0, 0, 1, 1], [], []>} : vector<256x16xf32>, vector<16x4xf32>, vector<256x4xf32> -> vector<256x4xf32>
    %37 = vector.broadcast %2 : vector<1x4xf32> to vector<256x4xf32>
    %38 = arith.addf %36, %37 : vector<256x4xf32>
    %39 = vector.shape_cast %38 : vector<256x4xf32> to vector<16x16x4xf32>
    %40 = tpu.concatenate %18, %20, %24, %26 in 1 : vector<256x4xf32>, vector<256x4xf32>, vector<256x4xf32>, vector<256x4xf32> -> vector<256x16xf32>
    %c0_14 = arith.constant 0 : index
    %c1 = arith.constant 1 : index
    %c0_15 = arith.constant 0 : index
    %c0_16 = arith.constant 0 : index
    %41 = vector.load %arg3[%c0_14, %c1, %c0_15, %c0_16] : memref<2x2x16x4xf32, #tpu.memory_space<vmem>>, vector<1x1x16x4xf32>
    %42 = vector.shape_cast %41 : vector<1x1x16x4xf32> to vector<16x4xf32>
    %cst_17 = arith.constant dense<0.000000e+00> : vector<256x4xf32>
    %43 = tpu.matmul %40, %42, %cst_17 {dimension_numbers = #tpu.dot_dimension_numbers<[1], [0], [0], [1], [0, 0, 1, 1], [], []>} : vector<256x16xf32>, vector<16x4xf32>, vector<256x4xf32> -> vector<256x4xf32>
    %44 = vector.broadcast %2 : vector<1x4xf32> to vector<256x4xf32>
    %45 = arith.addf %43, %44 : vector<256x4xf32>
    %46 = vector.shape_cast %45 : vector<256x4xf32> to vector<16x16x4xf32>
    %47 = tpu.concatenate %39, %46 in 2 : vector<16x16x4xf32>, vector<16x16x4xf32> -> vector<16x16x8xf32>
    %c0_18 = arith.constant 0 : index
    %c0_19 = arith.constant 0 : index
    %c0_20 = arith.constant 0 : index
    %c0_21 = arith.constant 0 : index
    %c0_22 = arith.constant 0 : index
    %48 = vector.load %arg5[%c0_18, %c0_19, %c0_20, %c0_21, %c0_22] : memref<1x16x2x16x8xf32, #tpu.memory_space<vmem>>, vector<1x16x1x16x8xf32>
    %49 = vector.shape_cast %48 : vector<1x16x1x16x8xf32> to vector<16x16x8xf32>
    %50 = vector.shape_cast %47 : vector<16x16x8xf32> to vector<1x16x1x16x8xf32>
    tpu.vector_store %arg5[%c0_18, %c0_19, %c0_20, %c0_21, %c0_22], %50 {strides = array<i32>} : memref<1x16x2x16x8xf32, #tpu.memory_space<vmem>>, vector<1x16x1x16x8xf32>,
    %51 = tpu.concatenate %22, %24, %28, %30 in 1 : vector<256x4xf32>, vector<256x4xf32>, vector<256x4xf32>, vector<256x4xf32> -> vector<256x16xf32>
    %c1_23 = arith.constant 1 : index
    %c0_24 = arith.constant 0 : index
    %c0_25 = arith.constant 0 : index
    %c0_26 = arith.constant 0 : index
    %52 = vector.load %arg3[%c1_23, %c0_24, %c0_25, %c0_26] : memref<2x2x16x4xf32, #tpu.memory_space<vmem>>, vector<1x1x16x4xf32>
    %53 = vector.shape_cast %52 : vector<1x1x16x4xf32> to vector<16x4xf32>
    %cst_27 = arith.constant dense<0.000000e+00> : vector<256x4xf32>
    %54 = tpu.matmul %51, %53, %cst_27 {dimension_numbers = #tpu.dot_dimension_numbers<[1], [0], [0], [1], [0, 0, 1, 1], [], []>} : vector<256x16xf32>, vector<16x4xf32>, vector<256x4xf32> -> vector<256x4xf32>
    %55 = vector.broadcast %2 : vector<1x4xf32> to vector<256x4xf32>
    %56 = arith.addf %54, %55 : vector<256x4xf32>
    %57 = vector.shape_cast %56 : vector<256x4xf32> to vector<16x16x4xf32>
    %58 = tpu.concatenate %24, %26, %30, %32 in 1 : vector<256x4xf32>, vector<256x4xf32>, vector<256x4xf32>, vector<256x4xf32> -> vector<256x16xf32>
    %c1_28 = arith.constant 1 : index
    %c1_29 = arith.constant 1 : index
    %c0_30 = arith.constant 0 : index
    %c0_31 = arith.constant 0 : index
    %59 = vector.load %arg3[%c1_28, %c1_29, %c0_30, %c0_31] : memref<2x2x16x4xf32, #tpu.memory_space<vmem>>, vector<1x1x16x4xf32>
    %60 = vector.shape_cast %59 : vector<1x1x16x4xf32> to vector<16x4xf32>
    %cst_32 = arith.constant dense<0.000000e+00> : vector<256x4xf32>
    %61 = tpu.matmul %58, %60, %cst_32 {dimension_numbers = #tpu.dot_dimension_numbers<[1], [0], [0], [1], [0, 0, 1, 1], [], []>} : vector<256x16xf32>, vector<16x4xf32>, vector<256x4xf32> -> vector<256x4xf32>
    %62 = vector.broadcast %2 : vector<1x4xf32> to vector<256x4xf32>
    %63 = arith.addf %61, %62 : vector<256x4xf32>
    %64 = vector.shape_cast %63 : vector<256x4xf32> to vector<16x16x4xf32>
    %65 = tpu.concatenate %57, %64 in 2 : vector<16x16x4xf32>, vector<16x16x4xf32> -> vector<16x16x8xf32>
    %c0_33 = arith.constant 0 : index
    %c0_34 = arith.constant 0 : index
    %c1_35 = arith.constant 1 : index
    %c0_36 = arith.constant 0 : index
    %c0_37 = arith.constant 0 : index
    %66 = vector.load %arg5[%c0_33, %c0_34, %c1_35, %c0_36, %c0_37] : memref<1x16x2x16x8xf32, #tpu.memory_space<vmem>>, vector<1x16x1x16x8xf32>
    %67 = vector.shape_cast %66 : vector<1x16x1x16x8xf32> to vector<16x16x8xf32>
    %68 = vector.shape_cast %65 : vector<16x16x8xf32> to vector<1x16x1x16x8xf32>
    tpu.vector_store %arg5[%c0_33, %c0_34, %c1_35, %c0_36, %c0_37], %68 {strides = array<i32>} : memref<1x16x2x16x8xf32, #tpu.memory_space<vmem>>, vector<1x16x1x16x8xf32>,
    return
  }
  func.func @transform_0(%arg0: i32, %arg1: i32) -> (i32, i32, i32, i32) {
    %c0_i32 = arith.constant 0 : i32
    %c0_i32_0 = arith.constant 0 : i32
    %c0_i32_1 = arith.constant 0 : i32
    %c0_i32_2 = arith.constant 0 : i32
    return %arg0, %c0_i32, %c0_i32_0, %c0_i32_1 : i32, i32, i32, i32
  }
  func.func @transform_1(%arg0: i32, %arg1: i32) -> (i32, i32, i32, i32) {
    %c0_i32 = arith.constant 0 : i32
    %c0_i32_0 = arith.constant 0 : i32
    %c0_i32_1 = arith.constant 0 : i32
    %c0_i32_2 = arith.constant 0 : i32
    %c0_i32_3 = arith.constant 0 : i32
    return %c0_i32, %c0_i32_0, %c0_i32_1, %c0_i32_2 : i32, i32, i32, i32
  }
  func.func @transform_2(%arg0: i32, %arg1: i32) -> (i32, i32) {
    %c0_i32 = arith.constant 0 : i32
    %c0_i32_0 = arith.constant 0 : i32
    %c0_i32_1 = arith.constant 0 : i32
    return %c0_i32, %c0_i32_0 : i32, i32
  }
  func.func @transform_3(%arg0: i32, %arg1: i32) -> (i32, i32, i32, i32, i32) {
    %c0_i32 = arith.constant 0 : i32
    %c0_i32_0 = arith.constant 0 : i32
    %c0_i32_1 = arith.constant 0 : i32
    %c0_i32_2 = arith.constant 0 : i32
    return %arg0, %arg1, %c0_i32, %c0_i32_0, %c0_i32_1 : i32, i32, i32, i32, i32
  }
}

</mosaic_0001>

<llo_original>
// kernel: upsample_forward.1
$region0: #{upsample_forward.1}
  #allocation0 [shape = 'u32[]', space=smem, size = 0x4, offset = 0x4, fixed_abs, tag = 'smem constant byte address 0x4 - core index']
  #allocation1 [shape = 'u32[72,128]{1,0:T(1,128)}', space=vmem, size = 0x9000, scoped, tag = 'internal scratch']
  %s0 = inlined_call_operand.vmem [shape: f32[2,18,18,4], index: 0, kind: input, shape index: {}]
  %s1 = inlined_call_operand.vmem [shape: f32[2,2,16,4], index: 1, kind: input, shape index: {}]
  %s2 = inlined_call_operand.vmem [shape: f32[1,4], index: 2, kind: input, shape index: {}]
  %s3 = inlined_call_operand.vmem [shape: f32[2,16,2,16,8], index: 3, kind: output, shape index: {}]
  %s4 = sld [smem:[#allocation0]]
  $region45: #{upsample_forward.1} parent=0
    _
  %s6 = ssub.s32 1, %s4
  %s7 = scalar_select 0, %s6, %s4
  loop: start=0, step=1, limit=4
  $region2: #{upsample_forward.1} parent=0 // loop_pre_header
    _
  $region3: #{upsample_forward.1} parent=0 // loop_header
    %s9 = sphi 0, %s13
    %p10 = scmp.ge.s32.totalorder %s9, 4
    %s16 = sphi 0, %s28
    %s17 = sphi 0, %s24
    %s18 = sphi 0, %s16
    %s19 = sphi 0, %s17
    %s20 = sphi 0, %s18
    %s21 = sphi 0, %s19
    %s31 = sphi 0, %s33
    %s34 = sphi 0, %s31
    %s35 = sphi 0, %s34
    %s51 = sphi 0, %s35
    %s55 = sphi 0, %s55
    %s57 = sphi 0, %s55
    %s58 = sphi 0, %s57
    %s72 = sphi 0, %s58
    %s76 = sphi 0, %s76
    %s78 = sphi 0, %s76
    %s79 = sphi 0, %s78
    %s93 = sphi 0, %s79
    %s101 = sphi 0, %s103
    %s104 = sphi 0, %s101
    %s105 = sphi 0, %s104
    %s121 = sphi 0, %s105
  $region4: #{upsample_forward.1} parent=0 // loop_header_branch
    %12 = sbr.rel (%p10) target = $region8
  $region5: #{upsample_forward.1} parent=0 // loop_body
    %s14 = ssub.s32 %s9, 1
    %s15 = ssub.s32 %s9, 2
    %s22 = sadd.s32 1, %s17
    %p23 = scmp.ge.s32.totalorder %s22, 1
    %s24 = scalar_select %p23, 0, %s22
    %s25 = sadd.s32 1, %s16
    %s26 = scalar_select %p23, %s25, %s16
    %p27 = scmp.ge.s32.totalorder %s26, 2
    %s28 = scalar_select %p27, 0, %s26
    %s29 = ssub.s32 %s16, %s28
    %p30 = scmp.eq.s32.totalorder %s29, 0
    %s32 = sadd.s32 %s31, 1
    %s33 = scalar_select %p30, %s31, %s32
    %p36 = pneg %p30
    %p37 = scmp.eq.s32.totalorder %s9, 1
    %p38 = por %p36, %p37
    %p39 = scmp.ne.s32.totalorder %s31, %s34
    %p40 = scmp.eq.s32.totalorder %s9, 0
    %p41 = por %p39, %p40
    %p42 = scmp.ne.s32.totalorder %s31, %s34
    %p43 = scmp.eq.s32.totalorder %s14, 1
    %p44 = por %p42, %p43
    %p45 = scmp.ne.s32.totalorder %s34, %s35
    %p46 = scmp.eq.s32.totalorder %s14, 0
    %p47 = por %p45, %p46
    %p48 = scmp.ne.s32.totalorder %s34, %s35
    %p49 = scmp.eq.s32.totalorder %s15, 1
    %p50 = por %p48, %p49
    %p52 = scmp.ne.s32.totalorder %s35, %s51
    %p53 = scmp.eq.s32.totalorder %s15, 0
    %p54 = por %p52, %p53
    %s56 = sadd.s32 %s55, 1
    %p59 = scmp.eq.s32.totalorder %s9, 1
    %p60 = scmp.ne.s32.totalorder %s55, %s57
    %p61 = scmp.eq.s32.totalorder %s9, 0
    %p62 = por %p60, %p61
    %p63 = scmp.ne.s32.totalorder %s55, %s57
    %p64 = scmp.eq.s32.totalorder %s14, 1
    %p65 = por %p63, %p64
    %p66 = scmp.ne.s32.totalorder %s57, %s58
    %p67 = scmp.eq.s32.totalorder %s14, 0
    %p68 = por %p66, %p67
    %p69 = scmp.ne.s32.totalorder %s57, %s58
    %p70 = scmp.eq.s32.totalorder %s15, 1
    %p71 = por %p69, %p70
    %p73 = scmp.ne.s32.totalorder %s58, %s72
    %p74 = scmp.eq.s32.totalorder %s15, 0
    %p75 = por %p73, %p74
    %s77 = sadd.s32 %s76, 1
    %p80 = scmp.eq.s32.totalorder %s9, 1
    %p81 = scmp.ne.s32.totalorder %s76, %s78
    %p82 = scmp.eq.s32.totalorder %s9, 0
    %p83 = por %p81, %p82
    %p84 = scmp.ne.s32.totalorder %s76, %s78
    %p85 = scmp.eq.s32.totalorder %s14, 1
    %p86 = por %p84, %p85
    %p87 = scmp.ne.s32.totalorder %s78, %s79
    %p88 = scmp.eq.s32.totalorder %s14, 0
    %p89 = por %p87, %p88
    %p90 = scmp.ne.s32.totalorder %s78, %s79
    %p91 = scmp.eq.s32.totalorder %s15, 1
    %p92 = por %p90, %p91
    %p94 = scmp.ne.s32.totalorder %s79, %s93
    %p95 = scmp.eq.s32.totalorder %s15, 0
    %p96 = por %p94, %p95
    %s97 = ssub.s32 %s16, %s28
    %s98 = ssub.s32 %s17, %s24
    %s99 = sor.u32 %s97, %s98
    %p100 = scmp.eq.s32.totalorder %s99, 0
    %s102 = sadd.s32 %s101, 1
    %s103 = scalar_select %p100, %s101, %s102
    %p106 = pneg %p100
    %p107 = scmp.eq.s32.totalorder %s9, 1
    %p108 = por %p106, %p107
    %p109 = scmp.ne.s32.totalorder %s101, %s104
    %p110 = scmp.eq.s32.totalorder %s9, 0
    %p111 = por %p109, %p110
    %p112 = scmp.ne.s32.totalorder %s101, %s104
    %p113 = scmp.eq.s32.totalorder %s14, 1
    %p114 = por %p112, %p113
    %p115 = scmp.ne.s32.totalorder %s104, %s105
    %p116 = scmp.eq.s32.totalorder %s14, 0
    %p117 = por %p115, %p116
    %p118 = scmp.ne.s32.totalorder %s104, %s105
    %p119 = scmp.eq.s32.totalorder %s15, 1
    %p120 = por %p118, %p119
    %p122 = scmp.ne.s32.totalorder %s105, %s121
    %p123 = scmp.eq.s32.totalorder %s15, 0
    %p124 = por %p122, %p123
    %p125 = scmp.le.s32.totalorder 1, %s9
    %p126 = scmp.lt.s32.totalorder %s9, 3
    %p127 = pnand %p125, %p126
    %p128 = pneg %p127
    // Predicated region
    $region9: #{upsample_forward.1} parent=5 // pred_check
      _
    $region10: #{upsample_forward.1} parent=5 // pred_check_branch
      %130 = sbr.rel (%p127) target = $region12
    $region11: #{upsample_forward.1} parent=5 // pred_region
      %s131 = ssub.s32 %s9, 1
      // Predicated region
      $region13: #{upsample_forward.1} parent=11 // pred_check
        %p132 = pneg %p68
      $region14: #{upsample_forward.1} parent=11 // pred_check_branch
        %134 = sbr.rel (%p132) target = $region16
      $region15: #{upsample_forward.1} parent=11 // pred_region
        _
      $region16: #{upsample_forward.1} parent=11 // pred_fallthru
        _
      // Predicated region
      $region17: #{upsample_forward.1} parent=11 // pred_check
        %p135 = pneg %p89
      $region18: #{upsample_forward.1} parent=11 // pred_check_branch
        %137 = sbr.rel (%p135) target = $region20
      $region19: #{upsample_forward.1} parent=11 // pred_region
        _
      $region20: #{upsample_forward.1} parent=11 // pred_fallthru
        _
    $region12: #{upsample_forward.1} parent=5 // pred_fallthru
      _
    %p138 = scmp.lt.s32.totalorder %s9, 2
    // Predicated region
    $region21: #{upsample_forward.1} parent=5 // pred_check
      %p139 = pneg %p138
    $region22: #{upsample_forward.1} parent=5 // pred_check_branch
      %141 = sbr.rel (%p139) target = $region24
    $region23: #{upsample_forward.1} parent=5 // pred_region
      // Predicated region
      $region25: #{upsample_forward.1} parent=23 // pred_check
        %p142 = pneg %p41
      $region26: #{upsample_forward.1} parent=23 // pred_check_branch
        %144 = sbr.rel (%p142) target = $region28
      $region27: #{upsample_forward.1} parent=23 // pred_region
        %p145 = scmp.lt.s32.totalorder %s16, 1
        %s146 = scalar_select %p145, %s16, 1
        %s147 = smul.addr %s146, 54
        %s148 = smul.addr %s147, 8
        %s149 = scalar_lea.vmem %s0, %s148
      $region28: #{upsample_forward.1} parent=23 // pred_fallthru
        _
    $region24: #{upsample_forward.1} parent=5 // pred_fallthru
      _
    %p150 = scmp.le.s32.totalorder 1, %s9
    %p151 = scmp.lt.s32.totalorder %s9, 3
    %p152 = pnand %p150, %p151
    %p153 = pneg %p152
    // Predicated region
    $region29: #{upsample_forward.1} parent=5 // pred_check
      _
    $region30: #{upsample_forward.1} parent=5 // pred_check_branch
      %155 = sbr.rel (%p152) target = $region32
    $region31: #{upsample_forward.1} parent=5 // pred_region
      %s156 = ssub.s32 %s9, 1
      %p157 = scmp.lt.s32.totalorder %s18, 1
      %s158 = scalar_select %p157, %s18, 1
      %s159 = smul.addr %s158, 54
      %s160 = smul.addr %s159, 8
      %s161 = scalar_lea.vmem %s0, %s160
      %p162 = pneg %p47
      %p163 = pneg %p44
      %p164 = pneg %p68
      %p165 = pneg %p65
      %p166 = pneg %p89
      %p167 = pneg %p86
      %p168 = pneg %p117
      %p169 = pneg %p114
      %s170 = smul.u32 16, %s19
      %p171 = scmp.lt.s32.totalorder %s18, 1
      %s172 = scalar_select %p171, %s18, 1
      %p173 = scmp.lt.s32.totalorder %s170, 15
      %s174 = scalar_select %p173, %s170, 15
      %s175 = smul.addr %s174, 4
      %s176 = smul.addr %s172, 64
      %s177 = sadd.s32 %s175, %s176
      %s178 = smul.addr %s177, 8
      %s179 = scalar_lea.vmem %s3, %s178
      %p180 = scmp.lt.s32.totalorder %s18, 1
      %s181 = scalar_select %p180, %s18, 1
      %s182 = smul.addr %s181, 54
      %s183 = smul.addr %s182, 8
      %s184 = scalar_lea.vmem %s0, %s183
      %s185 = smul.u32 16, %s19
      %p186 = scmp.lt.s32.totalorder %s18, 1
      %s187 = scalar_select %p186, %s18, 1
      %p188 = scmp.lt.s32.totalorder %s185, 15
      %s189 = scalar_select %p188, %s185, 15
      %s190 = smul.addr %s189, 4
      %s191 = smul.addr %s187, 64
      %s192 = sadd.s32 %s190, %s191
      %s193 = smul.addr %s192, 8
      %s194 = scalar_lea.vmem %s3, %s193
      %s195 = smul.u32 16, %s19
      %s196 = smul.u32 %s19, 16
      %v197 = vld [vmem:[%s2] sm:$0x1]
      %s198 = smul.u32 %s196, 24
      %s199 = scalar_lea.vmem %s184, %s198
      %v200 = vld [vmem:[%s199] sm:$0xff]
      %v201 = vld [vmem:[%s199 + $0x8] sm:$0xff]
      %v202 = vld [vmem:[%s199 + $0x10] sm:$0x3]
      %v203 = vld [vmem:[%s199 + $0x18] sm:$0xff]
      %v204 = vld [vmem:[%s199 + $0x20] sm:$0xff]
      %v205 = vld [vmem:[%s199 + $0x28] sm:$0x3]
      %v206 = vld [vmem:[%s199 + $0x30] sm:$0xff]
      %v207 = vld [vmem:[%s199 + $0x38] sm:$0xff]
      %v208 = vld [vmem:[%s199 + $0x40] sm:$0x3]
      %v209 = vld [vmem:[%s199 + $0x48] sm:$0xff]
      %v210 = vld [vmem:[%s199 + $0x50] sm:$0xff]
      %v211 = vld [vmem:[%s199 + $0x58] sm:$0x3]
      %v212 = vld [vmem:[%s199 + $0x60] sm:$0xff]
      %v213 = vld [vmem:[%s199 + $0x68] sm:$0xff]
      %v214 = vld [vmem:[%s199 + $0x70] sm:$0x3]
      %v215 = vld [vmem:[%s199 + $0x78] sm:$0xff]
      %v216 = vld [vmem:[%s199 + $0x80] sm:$0xff]
      %v217 = vld [vmem:[%s199 + $0x88] sm:$0x3]
      %v218 = vld [vmem:[%s199 + $0x90] sm:$0xff]
      %v219 = vld [vmem:[%s199 + $0x98] sm:$0xff]
      %v220 = vld [vmem:[%s199 + $0xa0] sm:$0x3]
      %v221 = vld [vmem:[%s199 + $0xa8] sm:$0xff]
      %v222 = vld [vmem:[%s199 + $0xb0] sm:$0xff]
      %v223 = vld [vmem:[%s199 + $0xb8] sm:$0x3]
      %v224 = vld [vmem:[%s199 + $0xc0] sm:$0xff]
      %v225 = vld [vmem:[%s199 + $0xc8] sm:$0xff]
      %v226 = vld [vmem:[%s199 + $0xd0] sm:$0x3]
      %v227 = vld [vmem:[%s199 + $0xd8] sm:$0xff]
      %v228 = vld [vmem:[%s199 + $0xe0] sm:$0xff]
      %v229 = vld [vmem:[%s199 + $0xe8] sm:$0x3]
      %v230 = vld [vmem:[%s199 + $0xf0] sm:$0xff]
      %v231 = vld [vmem:[%s199 + $0xf8] sm:$0xff]
      %v232 = vld [vmem:[%s199 + $0x100] sm:$0x3]
      %v233 = vld [vmem:[%s199 + $0x108] sm:$0xff]
      %v234 = vld [vmem:[%s199 + $0x110] sm:$0xff]
      %v235 = vld [vmem:[%s199 + $0x118] sm:$0x3]
      %v236 = vld [vmem:[%s199 + $0x120] sm:$0xff]
      %v237 = vld [vmem:[%s199 + $0x128] sm:$0xff]
      %v238 = vld [vmem:[%s199 + $0x130] sm:$0x3]
      %v239 = vld [vmem:[%s199 + $0x138] sm:$0xff]
      %v240 = vld [vmem:[%s199 + $0x140] sm:$0xff]
      %v241 = vld [vmem:[%s199 + $0x148] sm:$0x3]
      %v242 = vld [vmem:[%s199 + $0x150] sm:$0xff]
      %v243 = vld [vmem:[%s199 + $0x158] sm:$0xff]
      %v244 = vld [vmem:[%s199 + $0x160] sm:$0x3]
      %v245 = vld [vmem:[%s199 + $0x168] sm:$0xff]
      %v246 = vld [vmem:[%s199 + $0x170] sm:$0xff]
      %v247 = vld [vmem:[%s199 + $0x178] sm:$0x3]
      %s248 = sadd.s32 %s196, 1
      %s249 = smul.u32 %s248, 24
      %s250 = scalar_lea.vmem %s184, %s249
      %v251 = vld [vmem:[%s250] sm:$0xff]
      %v252 = vld [vmem:[%s250 + $0x8] sm:$0xff]
      %v253 = vld [vmem:[%s250 + $0x10] sm:$0x3]
      %v254 = vld [vmem:[%s250 + $0x18] sm:$0xff]
      %v255 = vld [vmem:[%s250 + $0x20] sm:$0xff]
      %v256 = vld [vmem:[%s250 + $0x28] sm:$0x3]
      %v257 = vld [vmem:[%s250 + $0x30] sm:$0xff]
      %v258 = vld [vmem:[%s250 + $0x38] sm:$0xff]
      %v259 = vld [vmem:[%s250 + $0x40] sm:$0x3]
      %v260 = vld [vmem:[%s250 + $0x48] sm:$0xff]
      %v261 = vld [vmem:[%s250 + $0x50] sm:$0xff]
      %v262 = vld [vmem:[%s250 + $0x58] sm:$0x3]
      %v263 = vld [vmem:[%s250 + $0x60] sm:$0xff]
      %v264 = vld [vmem:[%s250 + $0x68] sm:$0xff]
      %v265 = vld [vmem:[%s250 + $0x70] sm:$0x3]
      %v266 = vld [vmem:[%s250 + $0x78] sm:$0xff]
      %v267 = vld [vmem:[%s250 + $0x80] sm:$0xff]
      %v268 = vld [vmem:[%s250 + $0x88] sm:$0x3]
      %v269 = vld [vmem:[%s250 + $0x90] sm:$0xff]
      %v270 = vld [vmem:[%s250 + $0x98] sm:$0xff]
      %v271 = vld [vmem:[%s250 + $0xa0] sm:$0x3]
      %v272 = vld [vmem:[%s250 + $0xa8] sm:$0xff]
      %v273 = vld [vmem:[%s250 + $0xb0] sm:$0xff]
      %v274 = vld [vmem:[%s250 + $0xb8] sm:$0x3]
      %v275 = vld [vmem:[%s250 + $0xc0] sm:$0xff]
      %v276 = vld [vmem:[%s250 + $0xc8] sm:$0xff]
      %v277 = vld [vmem:[%s250 + $0xd0] sm:$0x3]
      %v278 = vld [vmem:[%s250 + $0xd8] sm:$0xff]
      %v279 = vld [vmem:[%s250 + $0xe0] sm:$0xff]
      %v280 = vld [vmem:[%s250 + $0xe8] sm:$0x3]
      %v281 = vld [vmem:[%s250 + $0xf0] sm:$0xff]
      %v282 = vld [vmem:[%s250 + $0xf8] sm:$0xff]
      %v283 = vld [vmem:[%s250 + $0x100] sm:$0x3]
      %v284 = vld [vmem:[%s250 + $0x108] sm:$0xff]
      %v285 = vld [vmem:[%s250 + $0x110] sm:$0xff]
      %v286 = vld [vmem:[%s250 + $0x118] sm:$0x3]
      %v287 = vld [vmem:[%s250 + $0x120] sm:$0xff]
      %v288 = vld [vmem:[%s250 + $0x128] sm:$0xff]
      %v289 = vld [vmem:[%s250 + $0x130] sm:$0x3]
      %v290 = vld [vmem:[%s250 + $0x138] sm:$0xff]
      %v291 = vld [vmem:[%s250 + $0x140] sm:$0xff]
      %v292 = vld [vmem:[%s250 + $0x148] sm:$0x3]
      %v293 = vld [vmem:[%s250 + $0x150] sm:$0xff]
      %v294 = vld [vmem:[%s250 + $0x158] sm:$0xff]
      %v295 = vld [vmem:[%s250 + $0x160] sm:$0x3]
      %v296 = vld [vmem:[%s250 + $0x168] sm:$0xff]
      %v297 = vld [vmem:[%s250 + $0x170] sm:$0xff]
      %v298 = vld [vmem:[%s250 + $0x178] sm:$0x3]
      %s299 = sadd.s32 %s196, 2
      %s300 = smul.u32 %s299, 24
      %s301 = scalar_lea.vmem %s184, %s300
      %v302 = vld [vmem:[%s301] sm:$0xff]
      %v303 = vld [vmem:[%s301 + $0x8] sm:$0xff]
      %v304 = vld [vmem:[%s301 + $0x10] sm:$0x3]
      %v305 = vld [vmem:[%s301 + $0x18] sm:$0xff]
      %v306 = vld [vmem:[%s301 + $0x20] sm:$0xff]
      %v307 = vld [vmem:[%s301 + $0x28] sm:$0x3]
      %v308 = vld [vmem:[%s301 + $0x30] sm:$0xff]
      %v309 = vld [vmem:[%s301 + $0x38] sm:$0xff]
      %v310 = vld [vmem:[%s301 + $0x40] sm:$0x3]
      %v311 = vld [vmem:[%s301 + $0x48] sm:$0xff]
      %v312 = vld [vmem:[%s301 + $0x50] sm:$0xff]
      %v313 = vld [vmem:[%s301 + $0x58] sm:$0x3]
      %v314 = vld [vmem:[%s301 + $0x60] sm:$0xff]
      %v315 = vld [vmem:[%s301 + $0x68] sm:$0xff]
      %v316 = vld [vmem:[%s301 + $0x70] sm:$0x3]
      %v317 = vld [vmem:[%s301 + $0x78] sm:$0xff]
      %v318 = vld [vmem:[%s301 + $0x80] sm:$0xff]
      %v319 = vld [vmem:[%s301 + $0x88] sm:$0x3]
      %v320 = vld [vmem:[%s301 + $0x90] sm:$0xff]
      %v321 = vld [vmem:[%s301 + $0x98] sm:$0xff]
      %v322 = vld [vmem:[%s301 + $0xa0] sm:$0x3]
      %v323 = vld [vmem:[%s301 + $0xa8] sm:$0xff]
      %v324 = vld [vmem:[%s301 + $0xb0] sm:$0xff]
      %v325 = vld [vmem:[%s301 + $0xb8] sm:$0x3]
      %v326 = vld [vmem:[%s301 + $0xc0] sm:$0xff]
      %v327 = vld [vmem:[%s301 + $0xc8] sm:$0xff]
      %v328 = vld [vmem:[%s301 + $0xd0] sm:$0x3]
      %v329 = vld [vmem:[%s301 + $0xd8] sm:$0xff]
      %v330 = vld [vmem:[%s301 + $0xe0] sm:$0xff]
      %v331 = vld [vmem:[%s301 + $0xe8] sm:$0x3]
      %v332 = vld [vmem:[%s301 + $0xf0] sm:$0xff]
      %v333 = vld [vmem:[%s301 + $0xf8] sm:$0xff]
      %v334 = vld [vmem:[%s301 + $0x100] sm:$0x3]
      %v335 = vld [vmem:[%s301 + $0x108] sm:$0xff]
      %v336 = vld [vmem:[%s301 + $0x110] sm:$0xff]
      %v337 = vld [vmem:[%s301 + $0x118] sm:$0x3]
      %v338 = vld [vmem:[%s301 + $0x120] sm:$0xff]
      %v339 = vld [vmem:[%s301 + $0x128] sm:$0xff]
      %v340 = vld [vmem:[%s301 + $0x130] sm:$0x3]
      %v341 = vld [vmem:[%s301 + $0x138] sm:$0xff]
      %v342 = vld [vmem:[%s301 + $0x140] sm:$0xff]
      %v343 = vld [vmem:[%s301 + $0x148] sm:$0x3]
      %v344 = vld [vmem:[%s301 + $0x150] sm:$0xff]
      %v345 = vld [vmem:[%s301 + $0x158] sm:$0xff]
      %v346 = vld [vmem:[%s301 + $0x160] sm:$0x3]
      %v347 = vld [vmem:[%s301 + $0x168] sm:$0xff]
      %v348 = vld [vmem:[%s301 + $0x170] sm:$0xff]
      %v349 = vld [vmem:[%s301 + $0x178] sm:$0x3]
      %vm398 = vcmask 1046528
      %v399 = vrot.slane %v200, 1
      %v400 = vrot.slane %v201, 1
      %v401 = vsel %vm398, %v399, %v400
      %v402 = vrot.slane %v202, 1
      %v403 = vsel %vm398, %v400, %v402
      %v404 = vrot.slane %v203, 1
      %v405 = vrot.slane %v204, 1
      %v406 = vsel %vm398, %v404, %v405
      %v407 = vrot.slane %v205, 1
      %v408 = vsel %vm398, %v405, %v407
      %v409 = vrot.slane %v206, 1
      %v410 = vrot.slane %v207, 1
      %v411 = vsel %vm398, %v409, %v410
      %v412 = vrot.slane %v208, 1
      %v413 = vsel %vm398, %v410, %v412
      %v414 = vrot.slane %v209, 1
      %v415 = vrot.slane %v210, 1
      %v416 = vsel %vm398, %v414, %v415
      %v417 = vrot.slane %v211, 1
      %v418 = vsel %vm398, %v415, %v417
      %v419 = vrot.slane %v212, 1
      %v420 = vrot.slane %v213, 1
      %v421 = vsel %vm398, %v419, %v420
      %v422 = vrot.slane %v214, 1
      %v423 = vsel %vm398, %v420, %v422
      %v424 = vrot.slane %v215, 1
      %v425 = vrot.slane %v216, 1
      %v426 = vsel %vm398, %v424, %v425
      %v427 = vrot.slane %v217, 1
      %v428 = vsel %vm398, %v425, %v427
      %v429 = vrot.slane %v218, 1
      %v430 = vrot.slane %v219, 1
      %v431 = vsel %vm398, %v429, %v430
      %v432 = vrot.slane %v220, 1
      %v433 = vsel %vm398, %v430, %v432
      %v434 = vrot.slane %v221, 1
      %v435 = vrot.slane %v222, 1
      %v436 = vsel %vm398, %v434, %v435
      %v437 = vrot.slane %v223, 1
      %v438 = vsel %vm398, %v435, %v437
      %v439 = vrot.slane %v224, 1
      %v440 = vrot.slane %v225, 1
      %v441 = vsel %vm398, %v439, %v440
      %v442 = vrot.slane %v226, 1
      %v443 = vsel %vm398, %v440, %v442
      %v444 = vrot.slane %v227, 1
      %v445 = vrot.slane %v228, 1
      %v446 = vsel %vm398, %v444, %v445
      %v447 = vrot.slane %v229, 1
      %v448 = vsel %vm398, %v445, %v447
      %v449 = vrot.slane %v230, 1
      %v450 = vrot.slane %v231, 1
      %v451 = vsel %vm398, %v449, %v450
      %v452 = vrot.slane %v232, 1
      %v453 = vsel %vm398, %v450, %v452
      %v454 = vrot.slane %v233, 1
      %v455 = vrot.slane %v234, 1
      %v456 = vsel %vm398, %v454, %v455
      %v457 = vrot.slane %v235, 1
      %v458 = vsel %vm398, %v455, %v457
      %v459 = vrot.slane %v236, 1
      %v460 = vrot.slane %v237, 1
      %v461 = vsel %vm398, %v459, %v460
      %v462 = vrot.slane %v238, 1
      %v463 = vsel %vm398, %v460, %v462
      %v464 = vrot.slane %v239, 1
      %v465 = vrot.slane %v240, 1
      %v466 = vsel %vm398, %v464, %v465
      %v467 = vrot.slane %v241, 1
      %v468 = vsel %vm398, %v465, %v467
      %v469 = vrot.slane %v242, 1
      %v470 = vrot.slane %v243, 1
      %v471 = vsel %vm398, %v469, %v470
      %v472 = vrot.slane %v244, 1
      %v473 = vsel %vm398, %v470, %v472
      %v474 = vrot.slane %v245, 1
      %v475 = vrot.slane %v246, 1
      %v476 = vsel %vm398, %v474, %v475
      %v477 = vrot.slane %v247, 1
      %v478 = vsel %vm398, %v475, %v477
      %vm511 = vcmask 1045504
      %v512 = vrot.slane %v200, 2
      %v513 = vrot.slane %v201, 2
      %v514 = vsel %vm511, %v512, %v513
      %v515 = vrot.slane %v202, 2
      %v516 = vsel %vm511, %v513, %v515
      %v517 = vrot.slane %v203, 2
      %v518 = vrot.slane %v204, 2
      %v519 = vsel %vm511, %v517, %v518
      %v520 = vrot.slane %v205, 2
      %v521 = vsel %vm511, %v518, %v520
      %v522 = vrot.slane %v206, 2
      %v523 = vrot.slane %v207, 2
      %v524 = vsel %vm511, %v522, %v523
      %v525 = vrot.slane %v208, 2
      %v526 = vsel %vm511, %v523, %v525
      %v527 = vrot.slane %v209, 2
      %v528 = vrot.slane %v210, 2
      %v529 = vsel %vm511, %v527, %v528
      %v530 = vrot.slane %v211, 2
      %v531 = vsel %vm511, %v528, %v530
      %v532 = vrot.slane %v212, 2
      %v533 = vrot.slane %v213, 2
      %v534 = vsel %vm511, %v532, %v533
      %v535 = vrot.slane %v214, 2
      %v536 = vsel %vm511, %v533, %v535
      %v537 = vrot.slane %v215, 2
      %v538 = vrot.slane %v216, 2
      %v539 = vsel %vm511, %v537, %v538
      %v540 = vrot.slane %v217, 2
      %v541 = vsel %vm511, %v538, %v540
      %v542 = vrot.slane %v218, 2
      %v543 = vrot.slane %v219, 2
      %v544 = vsel %vm511, %v542, %v543
      %v545 = vrot.slane %v220, 2
      %v546 = vsel %vm511, %v543, %v545
      %v547 = vrot.slane %v221, 2
      %v548 = vrot.slane %v222, 2
      %v549 = vsel %vm511, %v547, %v548
      %v550 = vrot.slane %v223, 2
      %v551 = vsel %vm511, %v548, %v550
      %v552 = vrot.slane %v224, 2
      %v553 = vrot.slane %v225, 2
      %v554 = vsel %vm511, %v552, %v553
      %v555 = vrot.slane %v226, 2
      %v556 = vsel %vm511, %v553, %v555
      %v557 = vrot.slane %v227, 2
      %v558 = vrot.slane %v228, 2
      %v559 = vsel %vm511, %v557, %v558
      %v560 = vrot.slane %v229, 2
      %v561 = vsel %vm511, %v558, %v560
      %v562 = vrot.slane %v230, 2
      %v563 = vrot.slane %v231, 2
      %v564 = vsel %vm511, %v562, %v563
      %v565 = vrot.slane %v232, 2
      %v566 = vsel %vm511, %v563, %v565
      %v567 = vrot.slane %v233, 2
      %v568 = vrot.slane %v234, 2
      %v569 = vsel %vm511, %v567, %v568
      %v570 = vrot.slane %v235, 2
      %v571 = vsel %vm511, %v568, %v570
      %v572 = vrot.slane %v236, 2
      %v573 = vrot.slane %v237, 2
      %v574 = vsel %vm511, %v572, %v573
      %v575 = vrot.slane %v238, 2
      %v576 = vsel %vm511, %v573, %v575
      %v577 = vrot.slane %v239, 2
      %v578 = vrot.slane %v240, 2
      %v579 = vsel %vm511, %v577, %v578
      %v580 = vrot.slane %v241, 2
      %v581 = vsel %vm511, %v578, %v580
      %v582 = vrot.slane %v242, 2
      %v583 = vrot.slane %v243, 2
      %v584 = vsel %vm511, %v582, %v583
      %v585 = vrot.slane %v244, 2
      %v586 = vsel %vm511, %v583, %v585
      %v587 = vrot.slane %v245, 2
      %v588 = vrot.slane %v246, 2
      %v589 = vsel %vm511, %v587, %v588
      %v590 = vrot.slane %v247, 2
      %v591 = vsel %vm511, %v588, %v590
      %v640 = vrot.slane %v251, 1
      %v641 = vrot.slane %v252, 1
      %v642 = vsel %vm398, %v640, %v641
      %v643 = vrot.slane %v253, 1
      %v644 = vsel %vm398, %v641, %v643
      %v645 = vrot.slane %v254, 1
      %v646 = vrot.slane %v255, 1
      %v647 = vsel %vm398, %v645, %v646
      %v648 = vrot.slane %v256, 1
      %v649 = vsel %vm398, %v646, %v648
      %v650 = vrot.slane %v257, 1
      %v651 = vrot.slane %v258, 1
      %v652 = vsel %vm398, %v650, %v651
      %v653 = vrot.slane %v259, 1
      %v654 = vsel %vm398, %v651, %v653
      %v655 = vrot.slane %v260, 1
      %v656 = vrot.slane %v261, 1
      %v657 = vsel %vm398, %v655, %v656
      %v658 = vrot.slane %v262, 1
      %v659 = vsel %vm398, %v656, %v658
      %v660 = vrot.slane %v263, 1
      %v661 = vrot.slane %v264, 1
      %v662 = vsel %vm398, %v660, %v661
      %v663 = vrot.slane %v265, 1
      %v664 = vsel %vm398, %v661, %v663
      %v665 = vrot.slane %v266, 1
      %v666 = vrot.slane %v267, 1
      %v667 = vsel %vm398, %v665, %v666
      %v668 = vrot.slane %v268, 1
      %v669 = vsel %vm398, %v666, %v668
      %v670 = vrot.slane %v269, 1
      %v671 = vrot.slane %v270, 1
      %v672 = vsel %vm398, %v670, %v671
      %v673 = vrot.slane %v271, 1
      %v674 = vsel %vm398, %v671, %v673
      %v675 = vrot.slane %v272, 1
      %v676 = vrot.slane %v273, 1
      %v677 = vsel %vm398, %v675, %v676
      %v678 = vrot.slane %v274, 1
      %v679 = vsel %vm398, %v676, %v678
      %v680 = vrot.slane %v275, 1
      %v681 = vrot.slane %v276, 1
      %v682 = vsel %vm398, %v680, %v681
      %v683 = vrot.slane %v277, 1
      %v684 = vsel %vm398, %v681, %v683
      %v685 = vrot.slane %v278, 1
      %v686 = vrot.slane %v279, 1
      %v687 = vsel %vm398, %v685, %v686
      %v688 = vrot.slane %v280, 1
      %v689 = vsel %vm398, %v686, %v688
      %v690 = vrot.slane %v281, 1
      %v691 = vrot.slane %v282, 1
      %v692 = vsel %vm398, %v690, %v691
      %v693 = vrot.slane %v283, 1
      %v694 = vsel %vm398, %v691, %v693
      %v695 = vrot.slane %v284, 1
      %v696 = vrot.slane %v285, 1
      %v697 = vsel %vm398, %v695, %v696
      %v698 = vrot.slane %v286, 1
      %v699 = vsel %vm398, %v696, %v698
      %v700 = vrot.slane %v287, 1
      %v701 = vrot.slane %v288, 1
      %v702 = vsel %vm398, %v700, %v701
      %v703 = vrot.slane %v289, 1
      %v704 = vsel %vm398, %v701, %v703
      %v705 = vrot.slane %v290, 1
      %v706 = vrot.slane %v291, 1
      %v707 = vsel %vm398, %v705, %v706
      %v708 = vrot.slane %v292, 1
      %v709 = vsel %vm398, %v706, %v708
      %v710 = vrot.slane %v293, 1
      %v711 = vrot.slane %v294, 1
      %v712 = vsel %vm398, %v710, %v711
      %v713 = vrot.slane %v295, 1
      %v714 = vsel %vm398, %v711, %v713
      %v715 = vrot.slane %v296, 1
      %v716 = vrot.slane %v297, 1
      %v717 = vsel %vm398, %v715, %v716
      %v718 = vrot.slane %v298, 1
      %v719 = vsel %vm398, %v716, %v718
      %v752 = vrot.slane %v251, 2
      %v753 = vrot.slane %v252, 2
      %v754 = vsel %vm511, %v752, %v753
      %v755 = vrot.slane %v253, 2
      %v756 = vsel %vm511, %v753, %v755
      %v757 = vrot.slane %v254, 2
      %v758 = vrot.slane %v255, 2
      %v759 = vsel %vm511, %v757, %v758
      %v760 = vrot.slane %v256, 2
      %v761 = vsel %vm511, %v758, %v760
      %v762 = vrot.slane %v257, 2
      %v763 = vrot.slane %v258, 2
      %v764 = vsel %vm511, %v762, %v763
      %v765 = vrot.slane %v259, 2
      %v766 = vsel %vm511, %v763, %v765
      %v767 = vrot.slane %v260, 2
      %v768 = vrot.slane %v261, 2
      %v769 = vsel %vm511, %v767, %v768
      %v770 = vrot.slane %v262, 2
      %v771 = vsel %vm511, %v768, %v770
      %v772 = vrot.slane %v263, 2
      %v773 = vrot.slane %v264, 2
      %v774 = vsel %vm511, %v772, %v773
      %v775 = vrot.slane %v265, 2
      %v776 = vsel %vm511, %v773, %v775
      %v777 = vrot.slane %v266, 2
      %v778 = vrot.slane %v267, 2
      %v779 = vsel %vm511, %v777, %v778
      %v780 = vrot.slane %v268, 2
      %v781 = vsel %vm511, %v778, %v780
      %v782 = vrot.slane %v269, 2
      %v783 = vrot.slane %v270, 2
      %v784 = vsel %vm511, %v782, %v783
      %v785 = vrot.slane %v271, 2
      %v786 = vsel %vm511, %v783, %v785
      %v787 = vrot.slane %v272, 2
      %v788 = vrot.slane %v273, 2
      %v789 = vsel %vm511, %v787, %v788
      %v790 = vrot.slane %v274, 2
      %v791 = vsel %vm511, %v788, %v790
      %v792 = vrot.slane %v275, 2
      %v793 = vrot.slane %v276, 2
      %v794 = vsel %vm511, %v792, %v793
      %v795 = vrot.slane %v277, 2
      %v796 = vsel %vm511, %v793, %v795
      %v797 = vrot.slane %v278, 2
      %v798 = vrot.slane %v279, 2
      %v799 = vsel %vm511, %v797, %v798
      %v800 = vrot.slane %v280, 2
      %v801 = vsel %vm511, %v798, %v800
      %v802 = vrot.slane %v281, 2
      %v803 = vrot.slane %v282, 2
      %v804 = vsel %vm511, %v802, %v803
      %v805 = vrot.slane %v283, 2
      %v806 = vsel %vm511, %v803, %v805
      %v807 = vrot.slane %v284, 2
      %v808 = vrot.slane %v285, 2
      %v809 = vsel %vm511, %v807, %v808
      %v810 = vrot.slane %v286, 2
      %v811 = vsel %vm511, %v808, %v810
      %v812 = vrot.slane %v287, 2
      %v813 = vrot.slane %v288, 2
      %v814 = vsel %vm511, %v812, %v813
      %v815 = vrot.slane %v289, 2
      %v816 = vsel %vm511, %v813, %v815
      %v817 = vrot.slane %v290, 2
      %v818 = vrot.slane %v291, 2
      %v819 = vsel %vm511, %v817, %v818
      %v820 = vrot.slane %v292, 2
      %v821 = vsel %vm511, %v818, %v820
      %v822 = vrot.slane %v293, 2
      %v823 = vrot.slane %v294, 2
      %v824 = vsel %vm511, %v822, %v823
      %v825 = vrot.slane %v295, 2
      %v826 = vsel %vm511, %v823, %v825
      %v827 = vrot.slane %v296, 2
      %v828 = vrot.slane %v297, 2
      %v829 = vsel %vm511, %v827, %v828
      %v830 = vrot.slane %v298, 2
      %v831 = vsel %vm511, %v828, %v830
      %v880 = vrot.slane %v302, 1
      %v881 = vrot.slane %v303, 1
      %v882 = vsel %vm398, %v880, %v881
      %v883 = vrot.slane %v304, 1
      %v884 = vsel %vm398, %v881, %v883
      %v885 = vrot.slane %v305, 1
      %v886 = vrot.slane %v306, 1
      %v887 = vsel %vm398, %v885, %v886
      %v888 = vrot.slane %v307, 1
      %v889 = vsel %vm398, %v886, %v888
      %v890 = vrot.slane %v308, 1
      %v891 = vrot.slane %v309, 1
      %v892 = vsel %vm398, %v890, %v891
      %v893 = vrot.slane %v310, 1
      %v894 = vsel %vm398, %v891, %v893
      %v895 = vrot.slane %v311, 1
      %v896 = vrot.slane %v312, 1
      %v897 = vsel %vm398, %v895, %v896
      %v898 = vrot.slane %v313, 1
      %v899 = vsel %vm398, %v896, %v898
      %v900 = vrot.slane %v314, 1
      %v901 = vrot.slane %v315, 1
      %v902 = vsel %vm398, %v900, %v901
      %v903 = vrot.slane %v316, 1
      %v904 = vsel %vm398, %v901, %v903
      %v905 = vrot.slane %v317, 1
      %v906 = vrot.slane %v318, 1
      %v907 = vsel %vm398, %v905, %v906
      %v908 = vrot.slane %v319, 1
      %v909 = vsel %vm398, %v906, %v908
      %v910 = vrot.slane %v320, 1
      %v911 = vrot.slane %v321, 1
      %v912 = vsel %vm398, %v910, %v911
      %v913 = vrot.slane %v322, 1
      %v914 = vsel %vm398, %v911, %v913
      %v915 = vrot.slane %v323, 1
      %v916 = vrot.slane %v324, 1
      %v917 = vsel %vm398, %v915, %v916
      %v918 = vrot.slane %v325, 1
      %v919 = vsel %vm398, %v916, %v918
      %v920 = vrot.slane %v326, 1
      %v921 = vrot.slane %v327, 1
      %v922 = vsel %vm398, %v920, %v921
      %v923 = vrot.slane %v328, 1
      %v924 = vsel %vm398, %v921, %v923
      %v925 = vrot.slane %v329, 1
      %v926 = vrot.slane %v330, 1
      %v927 = vsel %vm398, %v925, %v926
      %v928 = vrot.slane %v331, 1
      %v929 = vsel %vm398, %v926, %v928
      %v930 = vrot.slane %v332, 1
      %v931 = vrot.slane %v333, 1
      %v932 = vsel %vm398, %v930, %v931
      %v933 = vrot.slane %v334, 1
      %v934 = vsel %vm398, %v931, %v933
      %v935 = vrot.slane %v335, 1
      %v936 = vrot.slane %v336, 1
      %v937 = vsel %vm398, %v935, %v936
      %v938 = vrot.slane %v337, 1
      %v939 = vsel %vm398, %v936, %v938
      %v940 = vrot.slane %v338, 1
      %v941 = vrot.slane %v339, 1
      %v942 = vsel %vm398, %v940, %v941
      %v943 = vrot.slane %v340, 1
      %v944 = vsel %vm398, %v941, %v943
      %v945 = vrot.slane %v341, 1
      %v946 = vrot.slane %v342, 1
      %v947 = vsel %vm398, %v945, %v946
      %v948 = vrot.slane %v343, 1
      %v949 = vsel %vm398, %v946, %v948
      %v950 = vrot.slane %v344, 1
      %v951 = vrot.slane %v345, 1
      %v952 = vsel %vm398, %v950, %v951
      %v953 = vrot.slane %v346, 1
      %v954 = vsel %vm398, %v951, %v953
      %v955 = vrot.slane %v347, 1
      %v956 = vrot.slane %v348, 1
      %v957 = vsel %vm398, %v955, %v956
      %v958 = vrot.slane %v349, 1
      %v959 = vsel %vm398, %v956, %v958
      %v960 = vrot.slane %v302, 2
      %v961 = vrot.slane %v303, 2
      %v962 = vsel %vm511, %v960, %v961
      %v963 = vrot.slane %v304, 2
      %v964 = vsel %vm511, %v961, %v963
      %v965 = vrot.slane %v305, 2
      %v966 = vrot.slane %v306, 2
      %v967 = vsel %vm511, %v965, %v966
      %v968 = vrot.slane %v307, 2
      %v969 = vsel %vm511, %v966, %v968
      %v970 = vrot.slane %v308, 2
      %v971 = vrot.slane %v309, 2
      %v972 = vsel %vm511, %v970, %v971
      %v973 = vrot.slane %v310, 2
      %v974 = vsel %vm511, %v971, %v973
      %v975 = vrot.slane %v311, 2
      %v976 = vrot.slane %v312, 2
      %v977 = vsel %vm511, %v975, %v976
      %v978 = vrot.slane %v313, 2
      %v979 = vsel %vm511, %v976, %v978
      %v980 = vrot.slane %v314, 2
      %v981 = vrot.slane %v315, 2
      %v982 = vsel %vm511, %v980, %v981
      %v983 = vrot.slane %v316, 2
      %v984 = vsel %vm511, %v981, %v983
      %v985 = vrot.slane %v317, 2
      %v986 = vrot.slane %v318, 2
      %v987 = vsel %vm511, %v985, %v986
      %v988 = vrot.slane %v319, 2
      %v989 = vsel %vm511, %v986, %v988
      %v990 = vrot.slane %v320, 2
      %v991 = vrot.slane %v321, 2
      %v992 = vsel %vm511, %v990, %v991
      %v993 = vrot.slane %v322, 2
      %v994 = vsel %vm511, %v991, %v993
      %v995 = vrot.slane %v323, 2
      %v996 = vrot.slane %v324, 2
      %v997 = vsel %vm511, %v995, %v996
      %v998 = vrot.slane %v325, 2
      %v999 = vsel %vm511, %v996, %v998
      %v1000 = vrot.slane %v326, 2
      %v1001 = vrot.slane %v327, 2
      %v1002 = vsel %vm511, %v1000, %v1001
      %v1003 = vrot.slane %v328, 2
      %v1004 = vsel %vm511, %v1001, %v1003
      %v1005 = vrot.slane %v329, 2
      %v1006 = vrot.slane %v330, 2
      %v1007 = vsel %vm511, %v1005, %v1006
      %v1008 = vrot.slane %v331, 2
      %v1009 = vsel %vm511, %v1006, %v1008
      %v1010 = vrot.slane %v332, 2
      %v1011 = vrot.slane %v333, 2
      %v1012 = vsel %vm511, %v1010, %v1011
      %v1013 = vrot.slane %v334, 2
      %v1014 = vsel %vm511, %v1011, %v1013
      %v1015 = vrot.slane %v335, 2
      %v1016 = vrot.slane %v336, 2
      %v1017 = vsel %vm511, %v1015, %v1016
      %v1018 = vrot.slane %v337, 2
      %v1019 = vsel %vm511, %v1016, %v1018
      %v1020 = vrot.slane %v338, 2
      %v1021 = vrot.slane %v339, 2
      %v1022 = vsel %vm511, %v1020, %v1021
      %v1023 = vrot.slane %v340, 2
      %v1024 = vsel %vm511, %v1021, %v1023
      %v1025 = vrot.slane %v341, 2
      %v1026 = vrot.slane %v342, 2
      %v1027 = vsel %vm511, %v1025, %v1026
      %v1028 = vrot.slane %v343, 2
      %v1029 = vsel %vm511, %v1026, %v1028
      %v1030 = vrot.slane %v344, 2
      %v1031 = vrot.slane %v345, 2
      %v1032 = vsel %vm511, %v1030, %v1031
      %v1033 = vrot.slane %v346, 2
      %v1034 = vsel %vm511, %v1031, %v1033
      %v1035 = vrot.slane %v347, 2
      %v1036 = vrot.slane %v348, 2
      %v1037 = vsel %vm511, %v1035, %v1036
      %v1038 = vrot.slane %v349, 2
      %v1039 = vsel %vm511, %v1036, %v1038
      %1040 = vrot.lane.b32.xlu0 %v401, 4
      %v1041 = vpop.permute.xlu0 %1040
      %1042 = vrot.lane.b32.xlu0 %v403, 4
      %v1043 = vpop.permute.xlu0 %1042
      %1044 = vrot.lane.b32.xlu0 %v406, 4
      %v1045 = vpop.permute.xlu0 %1044
      %1046 = vrot.lane.b32.xlu0 %v408, 4
      %v1047 = vpop.permute.xlu0 %1046
      %1048 = vrot.lane.b32.xlu0 %v411, 4
      %v1049 = vpop.permute.xlu0 %1048
      %1050 = vrot.lane.b32.xlu0 %v413, 4
      %v1051 = vpop.permute.xlu0 %1050
      %1052 = vrot.lane.b32.xlu0 %v416, 4
      %v1053 = vpop.permute.xlu0 %1052
      %1054 = vrot.lane.b32.xlu0 %v418, 4
      %v1055 = vpop.permute.xlu0 %1054
      %1056 = vrot.lane.b32.xlu0 %v421, 4
      %v1057 = vpop.permute.xlu0 %1056
      %1058 = vrot.lane.b32.xlu0 %v423, 4
      %v1059 = vpop.permute.xlu0 %1058
      %1060 = vrot.lane.b32.xlu0 %v426, 4
      %v1061 = vpop.permute.xlu0 %1060
      %1062 = vrot.lane.b32.xlu0 %v428, 4
      %v1063 = vpop.permute.xlu0 %1062
      %1064 = vrot.lane.b32.xlu0 %v431, 4
      %v1065 = vpop.permute.xlu0 %1064
      %1066 = vrot.lane.b32.xlu0 %v433, 4
      %v1067 = vpop.permute.xlu0 %1066
      %1068 = vrot.lane.b32.xlu0 %v436, 4
      %v1069 = vpop.permute.xlu0 %1068
      %1070 = vrot.lane.b32.xlu0 %v438, 4
      %v1071 = vpop.permute.xlu0 %1070
      %1072 = vrot.lane.b32.xlu0 %v441, 4
      %v1073 = vpop.permute.xlu0 %1072
      %1074 = vrot.lane.b32.xlu0 %v443, 4
      %v1075 = vpop.permute.xlu0 %1074
      %1076 = vrot.lane.b32.xlu0 %v446, 4
      %v1077 = vpop.permute.xlu0 %1076
      %1078 = vrot.lane.b32.xlu0 %v448, 4
      %v1079 = vpop.permute.xlu0 %1078
      %1080 = vrot.lane.b32.xlu0 %v451, 4
      %v1081 = vpop.permute.xlu0 %1080
      %1082 = vrot.lane.b32.xlu0 %v453, 4
      %v1083 = vpop.permute.xlu0 %1082
      %1084 = vrot.lane.b32.xlu0 %v456, 4
      %v1085 = vpop.permute.xlu0 %1084
      %1086 = vrot.lane.b32.xlu0 %v458, 4
      %v1087 = vpop.permute.xlu0 %1086
      %1088 = vrot.lane.b32.xlu0 %v461, 4
      %v1089 = vpop.permute.xlu0 %1088
      %1090 = vrot.lane.b32.xlu0 %v463, 4
      %v1091 = vpop.permute.xlu0 %1090
      %1092 = vrot.lane.b32.xlu0 %v466, 4
      %v1093 = vpop.permute.xlu0 %1092
      %1094 = vrot.lane.b32.xlu0 %v468, 4
      %v1095 = vpop.permute.xlu0 %1094
      %1096 = vrot.lane.b32.xlu0 %v471, 4
      %v1097 = vpop.permute.xlu0 %1096
      %1098 = vrot.lane.b32.xlu0 %v473, 4
      %v1099 = vpop.permute.xlu0 %1098
      %1100 = vrot.lane.b32.xlu0 %v476, 4
      %v1101 = vpop.permute.xlu0 %1100
      %1102 = vrot.lane.b32.xlu0 %v478, 4
      %v1103 = vpop.permute.xlu0 %1102
      %1136 = vrot.lane.b32.xlu0 %v251, 8
      %v1137 = vpop.permute.xlu0 %1136
      %1138 = vrot.lane.b32.xlu0 %v252, 8
      %v1139 = vpop.permute.xlu0 %1138
      %1140 = vrot.lane.b32.xlu0 %v254, 8
      %v1141 = vpop.permute.xlu0 %1140
      %1142 = vrot.lane.b32.xlu0 %v255, 8
      %v1143 = vpop.permute.xlu0 %1142
      %1144 = vrot.lane.b32.xlu0 %v257, 8
      %v1145 = vpop.permute.xlu0 %1144
      %1146 = vrot.lane.b32.xlu0 %v258, 8
      %v1147 = vpop.permute.xlu0 %1146
      %1148 = vrot.lane.b32.xlu0 %v260, 8
      %v1149 = vpop.permute.xlu0 %1148
      %1150 = vrot.lane.b32.xlu0 %v261, 8
      %v1151 = vpop.permute.xlu0 %1150
      %1152 = vrot.lane.b32.xlu0 %v263, 8
      %v1153 = vpop.permute.xlu0 %1152
      %1154 = vrot.lane.b32.xlu0 %v264, 8
      %v1155 = vpop.permute.xlu0 %1154
      %1156 = vrot.lane.b32.xlu0 %v266, 8
      %v1157 = vpop.permute.xlu0 %1156
      %1158 = vrot.lane.b32.xlu0 %v267, 8
      %v1159 = vpop.permute.xlu0 %1158
      %1160 = vrot.lane.b32.xlu0 %v269, 8
      %v1161 = vpop.permute.xlu0 %1160
      %1162 = vrot.lane.b32.xlu0 %v270, 8
      %v1163 = vpop.permute.xlu0 %1162
      %1164 = vrot.lane.b32.xlu0 %v272, 8
      %v1165 = vpop.permute.xlu0 %1164
      %1166 = vrot.lane.b32.xlu0 %v273, 8
      %v1167 = vpop.permute.xlu0 %1166
      %1168 = vrot.lane.b32.xlu0 %v275, 8
      %v1169 = vpop.permute.xlu0 %1168
      %1170 = vrot.lane.b32.xlu0 %v276, 8
      %v1171 = vpop.permute.xlu0 %1170
      %1172 = vrot.lane.b32.xlu0 %v278, 8
      %v1173 = vpop.permute.xlu0 %1172
      %1174 = vrot.lane.b32.xlu0 %v279, 8
      %v1175 = vpop.permute.xlu0 %1174
      %1176 = vrot.lane.b32.xlu0 %v281, 8
      %v1177 = vpop.permute.xlu0 %1176
      %1178 = vrot.lane.b32.xlu0 %v282, 8
      %v1179 = vpop.permute.xlu0 %1178
      %1180 = vrot.lane.b32.xlu0 %v284, 8
      %v1181 = vpop.permute.xlu0 %1180
      %1182 = vrot.lane.b32.xlu0 %v285, 8
      %v1183 = vpop.permute.xlu0 %1182
      %1184 = vrot.lane.b32.xlu0 %v287, 8
      %v1185 = vpop.permute.xlu0 %1184
      %1186 = vrot.lane.b32.xlu0 %v288, 8
      %v1187 = vpop.permute.xlu0 %1186
      %1188 = vrot.lane.b32.xlu0 %v290, 8
      %v1189 = vpop.permute.xlu0 %1188
      %1190 = vrot.lane.b32.xlu0 %v291, 8
      %v1191 = vpop.permute.xlu0 %1190
      %1192 = vrot.lane.b32.xlu0 %v293, 8
      %v1193 = vpop.permute.xlu0 %1192
      %1194 = vrot.lane.b32.xlu0 %v294, 8
      %v1195 = vpop.permute.xlu0 %1194
      %1196 = vrot.lane.b32.xlu0 %v296, 8
      %v1197 = vpop.permute.xlu0 %1196
      %1198 = vrot.lane.b32.xlu0 %v297, 8
      %v1199 = vpop.permute.xlu0 %1198
      %1232 = vrot.lane.b32.xlu0 %v642, 12
      %v1233 = vpop.permute.xlu0 %1232
      %1234 = vrot.lane.b32.xlu0 %v644, 12
      %v1235 = vpop.permute.xlu0 %1234
      %1236 = vrot.lane.b32.xlu0 %v647, 12
      %v1237 = vpop.permute.xlu0 %1236
      %1238 = vrot.lane.b32.xlu0 %v649, 12
      %v1239 = vpop.permute.xlu0 %1238
      %1240 = vrot.lane.b32.xlu0 %v652, 12
      %v1241 = vpop.permute.xlu0 %1240
      %1242 = vrot.lane.b32.xlu0 %v654, 12
      %v1243 = vpop.permute.xlu0 %1242
      %1244 = vrot.lane.b32.xlu0 %v657, 12
      %v1245 = vpop.permute.xlu0 %1244
      %1246 = vrot.lane.b32.xlu0 %v659, 12
      %v1247 = vpop.permute.xlu0 %1246
      %1248 = vrot.lane.b32.xlu0 %v662, 12
      %v1249 = vpop.permute.xlu0 %1248
      %1250 = vrot.lane.b32.xlu0 %v664, 12
      %v1251 = vpop.permute.xlu0 %1250
      %1252 = vrot.lane.b32.xlu0 %v667, 12
      %v1253 = vpop.permute.xlu0 %1252
      %1254 = vrot.lane.b32.xlu0 %v669, 12
      %v1255 = vpop.permute.xlu0 %1254
      %1256 = vrot.lane.b32.xlu0 %v672, 12
      %v1257 = vpop.permute.xlu0 %1256
      %1258 = vrot.lane.b32.xlu0 %v674, 12
      %v1259 = vpop.permute.xlu0 %1258
      %1260 = vrot.lane.b32.xlu0 %v677, 12
      %v1261 = vpop.permute.xlu0 %1260
      %1262 = vrot.lane.b32.xlu0 %v679, 12
      %v1263 = vpop.permute.xlu0 %1262
      %1264 = vrot.lane.b32.xlu0 %v682, 12
      %v1265 = vpop.permute.xlu0 %1264
      %1266 = vrot.lane.b32.xlu0 %v684, 12
      %v1267 = vpop.permute.xlu0 %1266
      %1268 = vrot.lane.b32.xlu0 %v687, 12
      %v1269 = vpop.permute.xlu0 %1268
      %1270 = vrot.lane.b32.xlu0 %v689, 12
      %v1271 = vpop.permute.xlu0 %1270
      %1272 = vrot.lane.b32.xlu0 %v692, 12
      %v1273 = vpop.permute.xlu0 %1272
      %1274 = vrot.lane.b32.xlu0 %v694, 12
      %v1275 = vpop.permute.xlu0 %1274
      %1276 = vrot.lane.b32.xlu0 %v697, 12
      %v1277 = vpop.permute.xlu0 %1276
      %1278 = vrot.lane.b32.xlu0 %v699, 12
      %v1279 = vpop.permute.xlu0 %1278
      %1280 = vrot.lane.b32.xlu0 %v702, 12
      %v1281 = vpop.permute.xlu0 %1280
      %1282 = vrot.lane.b32.xlu0 %v704, 12
      %v1283 = vpop.permute.xlu0 %1282
      %1284 = vrot.lane.b32.xlu0 %v707, 12
      %v1285 = vpop.permute.xlu0 %1284
      %1286 = vrot.lane.b32.xlu0 %v709, 12
      %v1287 = vpop.permute.xlu0 %1286
      %1288 = vrot.lane.b32.xlu0 %v712, 12
      %v1289 = vpop.permute.xlu0 %1288
      %1290 = vrot.lane.b32.xlu0 %v714, 12
      %v1291 = vpop.permute.xlu0 %1290
      %1292 = vrot.lane.b32.xlu0 %v717, 12
      %v1293 = vpop.permute.xlu0 %1292
      %1294 = vrot.lane.b32.xlu0 %v719, 12
      %v1295 = vpop.permute.xlu0 %1294
      %vm1328 = vcmask 31744
      %v1329 = vsel %vm1328, %v200, %v1041
      %v1330 = vsel %vm1328, %v201, %v1043
      %v1331 = vsel %vm1328, %v203, %v1045
      %v1332 = vsel %vm1328, %v204, %v1047
      %v1333 = vsel %vm1328, %v206, %v1049
      %v1334 = vsel %vm1328, %v207, %v1051
      %v1335 = vsel %vm1328, %v209, %v1053
      %v1336 = vsel %vm1328, %v210, %v1055
      %v1337 = vsel %vm1328, %v212, %v1057
      %v1338 = vsel %vm1328, %v213, %v1059
      %v1339 = vsel %vm1328, %v215, %v1061
      %v1340 = vsel %vm1328, %v216, %v1063
      %v1341 = vsel %vm1328, %v218, %v1065
      %v1342 = vsel %vm1328, %v219, %v1067
      %v1343 = vsel %vm1328, %v221, %v1069
      %v1344 = vsel %vm1328, %v222, %v1071
      %v1345 = vsel %vm1328, %v224, %v1073
      %v1346 = vsel %vm1328, %v225, %v1075
      %v1347 = vsel %vm1328, %v227, %v1077
      %v1348 = vsel %vm1328, %v228, %v1079
      %v1349 = vsel %vm1328, %v230, %v1081
      %v1350 = vsel %vm1328, %v231, %v1083
      %v1351 = vsel %vm1328, %v233, %v1085
      %v1352 = vsel %vm1328, %v234, %v1087
      %v1353 = vsel %vm1328, %v236, %v1089
      %v1354 = vsel %vm1328, %v237, %v1091
      %v1355 = vsel %vm1328, %v239, %v1093
      %v1356 = vsel %vm1328, %v240, %v1095
      %v1357 = vsel %vm1328, %v242, %v1097
      %v1358 = vsel %vm1328, %v243, %v1099
      %v1359 = vsel %vm1328, %v245, %v1101
      %v1360 = vsel %vm1328, %v246, %v1103
      %vm1361 = vcmask 64512
      %v1362 = vsel %vm1361, %v1329, %v1137
      %v1363 = vsel %vm1361, %v1330, %v1139
      %v1364 = vsel %vm1361, %v1331, %v1141
      %v1365 = vsel %vm1361, %v1332, %v1143
      %v1366 = vsel %vm1361, %v1333, %v1145
      %v1367 = vsel %vm1361, %v1334, %v1147
      %v1368 = vsel %vm1361, %v1335, %v1149
      %v1369 = vsel %vm1361, %v1336, %v1151
      %v1370 = vsel %vm1361, %v1337, %v1153
      %v1371 = vsel %vm1361, %v1338, %v1155
      %v1372 = vsel %vm1361, %v1339, %v1157
      %v1373 = vsel %vm1361, %v1340, %v1159
      %v1374 = vsel %vm1361, %v1341, %v1161
      %v1375 = vsel %vm1361, %v1342, %v1163
      %v1376 = vsel %vm1361, %v1343, %v1165
      %v1377 = vsel %vm1361, %v1344, %v1167
      %v1378 = vsel %vm1361, %v1345, %v1169
      %v1379 = vsel %vm1361, %v1346, %v1171
      %v1380 = vsel %vm1361, %v1347, %v1173
      %v1381 = vsel %vm1361, %v1348, %v1175
      %v1382 = vsel %vm1361, %v1349, %v1177
      %v1383 = vsel %vm1361, %v1350, %v1179
      %v1384 = vsel %vm1361, %v1351, %v1181
      %v1385 = vsel %vm1361, %v1352, %v1183
      %v1386 = vsel %vm1361, %v1353, %v1185
      %v1387 = vsel %vm1361, %v1354, %v1187
      %v1388 = vsel %vm1361, %v1355, %v1189
      %v1389 = vsel %vm1361, %v1356, %v1191
      %v1390 = vsel %vm1361, %v1357, %v1193
      %v1391 = vsel %vm1361, %v1358, %v1195
      %v1392 = vsel %vm1361, %v1359, %v1197
      %v1393 = vsel %vm1361, %v1360, %v1199
      %vm1394 = vcmask 97280
      %v1395 = vsel %vm1394, %v1362, %v1233
      %v1396 = vsel %vm1394, %v1363, %v1235
      %v1397 = vsel %vm1394, %v1364, %v1237
      %v1398 = vsel %vm1394, %v1365, %v1239
      %v1399 = vsel %vm1394, %v1366, %v1241
      %v1400 = vsel %vm1394, %v1367, %v1243
      %v1401 = vsel %vm1394, %v1368, %v1245
      %v1402 = vsel %vm1394, %v1369, %v1247
      %v1403 = vsel %vm1394, %v1370, %v1249
      %v1404 = vsel %vm1394, %v1371, %v1251
      %v1405 = vsel %vm1394, %v1372, %v1253
      %v1406 = vsel %vm1394, %v1373, %v1255
      %v1407 = vsel %vm1394, %v1374, %v1257
      %v1408 = vsel %vm1394, %v1375, %v1259
      %v1409 = vsel %vm1394, %v1376, %v1261
      %v1410 = vsel %vm1394, %v1377, %v1263
      %v1411 = vsel %vm1394, %v1378, %v1265
      %v1412 = vsel %vm1394, %v1379, %v1267
      %v1413 = vsel %vm1394, %v1380, %v1269
      %v1414 = vsel %vm1394, %v1381, %v1271
      %v1415 = vsel %vm1394, %v1382, %v1273
      %v1416 = vsel %vm1394, %v1383, %v1275
      %v1417 = vsel %vm1394, %v1384, %v1277
      %v1418 = vsel %vm1394, %v1385, %v1279
      %v1419 = vsel %vm1394, %v1386, %v1281
      %v1420 = vsel %vm1394, %v1387, %v1283
      %v1421 = vsel %vm1394, %v1388, %v1285
      %v1422 = vsel %vm1394, %v1389, %v1287
      %v1423 = vsel %vm1394, %v1390, %v1289
      %v1424 = vsel %vm1394, %v1391, %v1291
      %v1425 = vsel %vm1394, %v1392, %v1293
      %v1426 = vsel %vm1394, %v1393, %v1295
      %v1427 = vld [vmem:[%s1] sm:$0xff]
      %v1428 = vld [vmem:[%s1 + $0x8] sm:$0xff]
      %v1430 = vperm.slane %v197, 0
      %vm1432 = vcmask 130048
      %v1434 = vsel %vm1432, %v1395, 0
      %v1437 = vsel %vm1432, %v1396, 0
      %v1440 = vsel %vm1432, %v1397, 0
      %v1443 = vsel %vm1432, %v1398, 0
      %v1446 = vsel %vm1432, %v1399, 0
      %v1449 = vsel %vm1432, %v1400, 0
      %v1452 = vsel %vm1432, %v1401, 0
      %v1455 = vsel %vm1432, %v1402, 0
      %v1458 = vsel %vm1432, %v1403, 0
      %v1461 = vsel %vm1432, %v1404, 0
      %v1464 = vsel %vm1432, %v1405, 0
      %v1467 = vsel %vm1432, %v1406, 0
      %v1470 = vsel %vm1432, %v1407, 0
      %v1473 = vsel %vm1432, %v1408, 0
      %v1476 = vsel %vm1432, %v1409, 0
      %v1479 = vsel %vm1432, %v1410, 0
      %v1482 = vsel %vm1432, %v1411, 0
      %v1485 = vsel %vm1432, %v1412, 0
      %v1488 = vsel %vm1432, %v1413, 0
      %v1491 = vsel %vm1432, %v1414, 0
      %v1494 = vsel %vm1432, %v1415, 0
      %v1497 = vsel %vm1432, %v1416, 0
      %v1500 = vsel %vm1432, %v1417, 0
      %v1503 = vsel %vm1432, %v1418, 0
      %v1506 = vsel %vm1432, %v1419, 0
      %v1509 = vsel %vm1432, %v1420, 0
      %v1512 = vsel %vm1432, %v1421, 0
      %v1515 = vsel %vm1432, %v1422, 0
      %v1518 = vsel %vm1432, %v1423, 0
      %v1521 = vsel %vm1432, %v1424, 0
      %v1524 = vsel %vm1432, %v1425, 0
      %v1527 = vsel %vm1432, %v1426, 0
      %1529 = vmatpush.msra.mxu0 0.0
      %1530 = vmatpush.msra.mxu0 0.0
      %1531 = vmatpush.msra.mxu0 0.0
      %1532 = vmatpush.msra.mxu0 0.0
      %1533 = vmatpush.msra.mxu0 0.0
      %1534 = vmatpush.msra.mxu0 0.0
      %1535 = vmatpush.msra.mxu0 0.0
      %1536 = vmatpush.msra.mxu0 0.0
      %1537 = vmatpush.msra.mxu0 0.0
      %1538 = vmatpush.msra.mxu0 0.0
      %1539 = vmatpush.msra.mxu0 0.0
      %1540 = vmatpush.msra.mxu0 0.0
      %1541 = vmatpush.msra.mxu0 0.0
      %1542 = vmatpush.msra.mxu0 0.0
      %1543 = vmatpush.msra.mxu0 %v1428
      %1544 = vmatpush.msra.mxu0 %v1427
      %1545 = vmatmul.f32.gmra.mxu0 %v1434
      %v1546 = vpop.f32.mrf.mxu0
      %v1547 = vadd.f32 %v1430, %v1546
      %1548 = vmatmul.f32.gmra.mxu0 %v1437
      %v1549 = vpop.f32.mrf.mxu0
      %v1550 = vadd.f32 %v1430, %v1549
      %1551 = vmatmul.f32.gmra.mxu0 %v1440
      %v1552 = vpop.f32.mrf.mxu0
      %v1553 = vadd.f32 %v1430, %v1552
      %1554 = vmatmul.f32.gmra.mxu0 %v1443
      %v1555 = vpop.f32.mrf.mxu0
      %v1556 = vadd.f32 %v1430, %v1555
      %1557 = vmatmul.f32.gmra.mxu0 %v1446
      %v1558 = vpop.f32.mrf.mxu0
      %v1559 = vadd.f32 %v1430, %v1558
      %1560 = vmatmul.f32.gmra.mxu0 %v1449
      %v1561 = vpop.f32.mrf.mxu0
      %v1562 = vadd.f32 %v1430, %v1561
      %1563 = vmatmul.f32.gmra.mxu0 %v1452
      %v1564 = vpop.f32.mrf.mxu0
      %v1565 = vadd.f32 %v1430, %v1564
      %1566 = vmatmul.f32.gmra.mxu0 %v1455
      %v1567 = vpop.f32.mrf.mxu0
      %v1568 = vadd.f32 %v1430, %v1567
      %1569 = vmatmul.f32.gmra.mxu0 %v1458
      %v1570 = vpop.f32.mrf.mxu0
      %v1571 = vadd.f32 %v1430, %v1570
      %1572 = vmatmul.f32.gmra.mxu0 %v1461
      %v1573 = vpop.f32.mrf.mxu0
      %v1574 = vadd.f32 %v1430, %v1573
      %1575 = vmatmul.f32.gmra.mxu0 %v1464
      %v1576 = vpop.f32.mrf.mxu0
      %v1577 = vadd.f32 %v1430, %v1576
      %1578 = vmatmul.f32.gmra.mxu0 %v1467
      %v1579 = vpop.f32.mrf.mxu0
      %v1580 = vadd.f32 %v1430, %v1579
      %1581 = vmatmul.f32.gmra.mxu0 %v1470
      %v1582 = vpop.f32.mrf.mxu0
      %v1583 = vadd.f32 %v1430, %v1582
      %1584 = vmatmul.f32.gmra.mxu0 %v1473
      %v1585 = vpop.f32.mrf.mxu0
      %v1586 = vadd.f32 %v1430, %v1585
      %1587 = vmatmul.f32.gmra.mxu0 %v1476
      %v1588 = vpop.f32.mrf.mxu0
      %v1589 = vadd.f32 %v1430, %v1588
      %1590 = vmatmul.f32.gmra.mxu0 %v1479
      %v1591 = vpop.f32.mrf.mxu0
      %v1592 = vadd.f32 %v1430, %v1591
      %1593 = vmatmul.f32.gmra.mxu0 %v1482
      %v1594 = vpop.f32.mrf.mxu0
      %v1595 = vadd.f32 %v1430, %v1594
      %1596 = vmatmul.f32.gmra.mxu0 %v1485
      %v1597 = vpop.f32.mrf.mxu0
      %v1598 = vadd.f32 %v1430, %v1597
      %1599 = vmatmul.f32.gmra.mxu0 %v1488
      %v1600 = vpop.f32.mrf.mxu0
      %v1601 = vadd.f32 %v1430, %v1600
      %1602 = vmatmul.f32.gmra.mxu0 %v1491
      %v1603 = vpop.f32.mrf.mxu0
      %v1604 = vadd.f32 %v1430, %v1603
      %1605 = vmatmul.f32.gmra.mxu0 %v1494
      %v1606 = vpop.f32.mrf.mxu0
      %v1607 = vadd.f32 %v1430, %v1606
      %1608 = vmatmul.f32.gmra.mxu0 %v1497
      %v1609 = vpop.f32.mrf.mxu0
      %v1610 = vadd.f32 %v1430, %v1609
      %1611 = vmatmul.f32.gmra.mxu0 %v1500
      %v1612 = vpop.f32.mrf.mxu0
      %v1613 = vadd.f32 %v1430, %v1612
      %1614 = vmatmul.f32.gmra.mxu0 %v1503
      %v1615 = vpop.f32.mrf.mxu0
      %v1616 = vadd.f32 %v1430, %v1615
      %1617 = vmatmul.f32.gmra.mxu0 %v1506
      %v1618 = vpop.f32.mrf.mxu0
      %v1619 = vadd.f32 %v1430, %v1618
      %1620 = vmatmul.f32.gmra.mxu0 %v1509
      %v1621 = vpop.f32.mrf.mxu0
      %v1622 = vadd.f32 %v1430, %v1621
      %1623 = vmatmul.f32.gmra.mxu0 %v1512
      %v1624 = vpop.f32.mrf.mxu0
      %v1625 = vadd.f32 %v1430, %v1624
      %1626 = vmatmul.f32.gmra.mxu0 %v1515
      %v1627 = vpop.f32.mrf.mxu0
      %v1628 = vadd.f32 %v1430, %v1627
      %1629 = vmatmul.f32.gmra.mxu0 %v1518
      %v1630 = vpop.f32.mrf.mxu0
      %v1631 = vadd.f32 %v1430, %v1630
      %1632 = vmatmul.f32.gmra.mxu0 %v1521
      %v1633 = vpop.f32.mrf.mxu0
      %v1634 = vadd.f32 %v1430, %v1633
      %1635 = vmatmul.f32.gmra.mxu0 %v1524
      %v1636 = vpop.f32.mrf.mxu0
      %v1637 = vadd.f32 %v1430, %v1636
      %1638 = vmatmul.f32.gmra.mxu0 %v1527
      %v1639 = vpop.f32.mrf.mxu0
      %v1640 = vadd.f32 %v1430, %v1639
      %1641 = vdwg.mxu0
      %1642 = vrot.lane.b32.xlu0 %v514, 4
      %v1643 = vpop.permute.xlu0 %1642
      %1644 = vrot.lane.b32.xlu0 %v516, 4
      %v1645 = vpop.permute.xlu0 %1644
      %1646 = vrot.lane.b32.xlu0 %v519, 4
      %v1647 = vpop.permute.xlu0 %1646
      %1648 = vrot.lane.b32.xlu0 %v521, 4
      %v1649 = vpop.permute.xlu0 %1648
      %1650 = vrot.lane.b32.xlu0 %v524, 4
      %v1651 = vpop.permute.xlu0 %1650
      %1652 = vrot.lane.b32.xlu0 %v526, 4
      %v1653 = vpop.permute.xlu0 %1652
      %1654 = vrot.lane.b32.xlu0 %v529, 4
      %v1655 = vpop.permute.xlu0 %1654
      %1656 = vrot.lane.b32.xlu0 %v531, 4
      %v1657 = vpop.permute.xlu0 %1656
      %1658 = vrot.lane.b32.xlu0 %v534, 4
      %v1659 = vpop.permute.xlu0 %1658
      %1660 = vrot.lane.b32.xlu0 %v536, 4
      %v1661 = vpop.permute.xlu0 %1660
      %1662 = vrot.lane.b32.xlu0 %v539, 4
      %v1663 = vpop.permute.xlu0 %1662
      %1664 = vrot.lane.b32.xlu0 %v541, 4
      %v1665 = vpop.permute.xlu0 %1664
      %1666 = vrot.lane.b32.xlu0 %v544, 4
      %v1667 = vpop.permute.xlu0 %1666
      %1668 = vrot.lane.b32.xlu0 %v546, 4
      %v1669 = vpop.permute.xlu0 %1668
      %1670 = vrot.lane.b32.xlu0 %v549, 4
      %v1671 = vpop.permute.xlu0 %1670
      %1672 = vrot.lane.b32.xlu0 %v551, 4
      %v1673 = vpop.permute.xlu0 %1672
      %1674 = vrot.lane.b32.xlu0 %v554, 4
      %v1675 = vpop.permute.xlu0 %1674
      %1676 = vrot.lane.b32.xlu0 %v556, 4
      %v1677 = vpop.permute.xlu0 %1676
      %1678 = vrot.lane.b32.xlu0 %v559, 4
      %v1679 = vpop.permute.xlu0 %1678
      %1680 = vrot.lane.b32.xlu0 %v561, 4
      %v1681 = vpop.permute.xlu0 %1680
      %1682 = vrot.lane.b32.xlu0 %v564, 4
      %v1683 = vpop.permute.xlu0 %1682
      %1684 = vrot.lane.b32.xlu0 %v566, 4
      %v1685 = vpop.permute.xlu0 %1684
      %1686 = vrot.lane.b32.xlu0 %v569, 4
      %v1687 = vpop.permute.xlu0 %1686
      %1688 = vrot.lane.b32.xlu0 %v571, 4
      %v1689 = vpop.permute.xlu0 %1688
      %1690 = vrot.lane.b32.xlu0 %v574, 4
      %v1691 = vpop.permute.xlu0 %1690
      %1692 = vrot.lane.b32.xlu0 %v576, 4
      %v1693 = vpop.permute.xlu0 %1692
      %1694 = vrot.lane.b32.xlu0 %v579, 4
      %v1695 = vpop.permute.xlu0 %1694
      %1696 = vrot.lane.b32.xlu0 %v581, 4
      %v1697 = vpop.permute.xlu0 %1696
      %1698 = vrot.lane.b32.xlu0 %v584, 4
      %v1699 = vpop.permute.xlu0 %1698
      %1700 = vrot.lane.b32.xlu0 %v586, 4
      %v1701 = vpop.permute.xlu0 %1700
      %1702 = vrot.lane.b32.xlu0 %v589, 4
      %v1703 = vpop.permute.xlu0 %1702
      %1704 = vrot.lane.b32.xlu0 %v591, 4
      %v1705 = vpop.permute.xlu0 %1704
      %1738 = vrot.lane.b32.xlu0 %v642, 8
      %v1739 = vpop.permute.xlu0 %1738
      %1740 = vrot.lane.b32.xlu0 %v644, 8
      %v1741 = vpop.permute.xlu0 %1740
      %1742 = vrot.lane.b32.xlu0 %v647, 8
      %v1743 = vpop.permute.xlu0 %1742
      %1744 = vrot.lane.b32.xlu0 %v649, 8
      %v1745 = vpop.permute.xlu0 %1744
      %1746 = vrot.lane.b32.xlu0 %v652, 8
      %v1747 = vpop.permute.xlu0 %1746
      %1748 = vrot.lane.b32.xlu0 %v654, 8
      %v1749 = vpop.permute.xlu0 %1748
      %1750 = vrot.lane.b32.xlu0 %v657, 8
      %v1751 = vpop.permute.xlu0 %1750
      %1752 = vrot.lane.b32.xlu0 %v659, 8
      %v1753 = vpop.permute.xlu0 %1752
      %1754 = vrot.lane.b32.xlu0 %v662, 8
      %v1755 = vpop.permute.xlu0 %1754
      %1756 = vrot.lane.b32.xlu0 %v664, 8
      %v1757 = vpop.permute.xlu0 %1756
      %1758 = vrot.lane.b32.xlu0 %v667, 8
      %v1759 = vpop.permute.xlu0 %1758
      %1760 = vrot.lane.b32.xlu0 %v669, 8
      %v1761 = vpop.permute.xlu0 %1760
      %1762 = vrot.lane.b32.xlu0 %v672, 8
      %v1763 = vpop.permute.xlu0 %1762
      %1764 = vrot.lane.b32.xlu0 %v674, 8
      %v1765 = vpop.permute.xlu0 %1764
      %1766 = vrot.lane.b32.xlu0 %v677, 8
      %v1767 = vpop.permute.xlu0 %1766
      %1768 = vrot.lane.b32.xlu0 %v679, 8
      %v1769 = vpop.permute.xlu0 %1768
      %1770 = vrot.lane.b32.xlu0 %v682, 8
      %v1771 = vpop.permute.xlu0 %1770
      %1772 = vrot.lane.b32.xlu0 %v684, 8
      %v1773 = vpop.permute.xlu0 %1772
      %1774 = vrot.lane.b32.xlu0 %v687, 8
      %v1775 = vpop.permute.xlu0 %1774
      %1776 = vrot.lane.b32.xlu0 %v689, 8
      %v1777 = vpop.permute.xlu0 %1776
      %1778 = vrot.lane.b32.xlu0 %v692, 8
      %v1779 = vpop.permute.xlu0 %1778
      %1780 = vrot.lane.b32.xlu0 %v694, 8
      %v1781 = vpop.permute.xlu0 %1780
      %1782 = vrot.lane.b32.xlu0 %v697, 8
      %v1783 = vpop.permute.xlu0 %1782
      %1784 = vrot.lane.b32.xlu0 %v699, 8
      %v1785 = vpop.permute.xlu0 %1784
      %1786 = vrot.lane.b32.xlu0 %v702, 8
      %v1787 = vpop.permute.xlu0 %1786
      %1788 = vrot.lane.b32.xlu0 %v704, 8
      %v1789 = vpop.permute.xlu0 %1788
      %1790 = vrot.lane.b32.xlu0 %v707, 8
      %v1791 = vpop.permute.xlu0 %1790
      %1792 = vrot.lane.b32.xlu0 %v709, 8
      %v1793 = vpop.permute.xlu0 %1792
      %1794 = vrot.lane.b32.xlu0 %v712, 8
      %v1795 = vpop.permute.xlu0 %1794
      %1796 = vrot.lane.b32.xlu0 %v714, 8
      %v1797 = vpop.permute.xlu0 %1796
      %1798 = vrot.lane.b32.xlu0 %v717, 8
      %v1799 = vpop.permute.xlu0 %1798
      %1800 = vrot.lane.b32.xlu0 %v719, 8
      %v1801 = vpop.permute.xlu0 %1800
      %1834 = vrot.lane.b32.xlu0 %v754, 12
      %v1835 = vpop.permute.xlu0 %1834
      %1836 = vrot.lane.b32.xlu0 %v756, 12
      %v1837 = vpop.permute.xlu0 %1836
      %1838 = vrot.lane.b32.xlu0 %v759, 12
      %v1839 = vpop.permute.xlu0 %1838
      %1840 = vrot.lane.b32.xlu0 %v761, 12
      %v1841 = vpop.permute.xlu0 %1840
      %1842 = vrot.lane.b32.xlu0 %v764, 12
      %v1843 = vpop.permute.xlu0 %1842
      %1844 = vrot.lane.b32.xlu0 %v766, 12
      %v1845 = vpop.permute.xlu0 %1844
      %1846 = vrot.lane.b32.xlu0 %v769, 12
      %v1847 = vpop.permute.xlu0 %1846
      %1848 = vrot.lane.b32.xlu0 %v771, 12
      %v1849 = vpop.permute.xlu0 %1848
      %1850 = vrot.lane.b32.xlu0 %v774, 12
      %v1851 = vpop.permute.xlu0 %1850
      %1852 = vrot.lane.b32.xlu0 %v776, 12
      %v1853 = vpop.permute.xlu0 %1852
      %1854 = vrot.lane.b32.xlu0 %v779, 12
      %v1855 = vpop.permute.xlu0 %1854
      %1856 = vrot.lane.b32.xlu0 %v781, 12
      %v1857 = vpop.permute.xlu0 %1856
      %1858 = vrot.lane.b32.xlu0 %v784, 12
      %v1859 = vpop.permute.xlu0 %1858
      %1860 = vrot.lane.b32.xlu0 %v786, 12
      %v1861 = vpop.permute.xlu0 %1860
      %1862 = vrot.lane.b32.xlu0 %v789, 12
      %v1863 = vpop.permute.xlu0 %1862
      %1864 = vrot.lane.b32.xlu0 %v791, 12
      %v1865 = vpop.permute.xlu0 %1864
      %1866 = vrot.lane.b32.xlu0 %v794, 12
      %v1867 = vpop.permute.xlu0 %1866
      %1868 = vrot.lane.b32.xlu0 %v796, 12
      %v1869 = vpop.permute.xlu0 %1868
      %1870 = vrot.lane.b32.xlu0 %v799, 12
      %v1871 = vpop.permute.xlu0 %1870
      %1872 = vrot.lane.b32.xlu0 %v801, 12
      %v1873 = vpop.permute.xlu0 %1872
      %1874 = vrot.lane.b32.xlu0 %v804, 12
      %v1875 = vpop.permute.xlu0 %1874
      %1876 = vrot.lane.b32.xlu0 %v806, 12
      %v1877 = vpop.permute.xlu0 %1876
      %1878 = vrot.lane.b32.xlu0 %v809, 12
      %v1879 = vpop.permute.xlu0 %1878
      %1880 = vrot.lane.b32.xlu0 %v811, 12
      %v1881 = vpop.permute.xlu0 %1880
      %1882 = vrot.lane.b32.xlu0 %v814, 12
      %v1883 = vpop.permute.xlu0 %1882
      %1884 = vrot.lane.b32.xlu0 %v816, 12
      %v1885 = vpop.permute.xlu0 %1884
      %1886 = vrot.lane.b32.xlu0 %v819, 12
      %v1887 = vpop.permute.xlu0 %1886
      %1888 = vrot.lane.b32.xlu0 %v821, 12
      %v1889 = vpop.permute.xlu0 %1888
      %1890 = vrot.lane.b32.xlu0 %v824, 12
      %v1891 = vpop.permute.xlu0 %1890
      %1892 = vrot.lane.b32.xlu0 %v826, 12
      %v1893 = vpop.permute.xlu0 %1892
      %1894 = vrot.lane.b32.xlu0 %v829, 12
      %v1895 = vpop.permute.xlu0 %1894
      %1896 = vrot.lane.b32.xlu0 %v831, 12
      %v1897 = vpop.permute.xlu0 %1896
      %v1930 = vsel %vm1328, %v401, %v1643
      %v1931 = vsel %vm1328, %v403, %v1645
      %v1932 = vsel %vm1328, %v406, %v1647
      %v1933 = vsel %vm1328, %v408, %v1649
      %v1934 = vsel %vm1328, %v411, %v1651
      %v1935 = vsel %vm1328, %v413, %v1653
      %v1936 = vsel %vm1328, %v416, %v1655
      %v1937 = vsel %vm1328, %v418, %v1657
      %v1938 = vsel %vm1328, %v421, %v1659
      %v1939 = vsel %vm1328, %v423, %v1661
      %v1940 = vsel %vm1328, %v426, %v1663
      %v1941 = vsel %vm1328, %v428, %v1665
      %v1942 = vsel %vm1328, %v431, %v1667
      %v1943 = vsel %vm1328, %v433, %v1669
      %v1944 = vsel %vm1328, %v436, %v1671
      %v1945 = vsel %vm1328, %v438, %v1673
      %v1946 = vsel %vm1328, %v441, %v1675
      %v1947 = vsel %vm1328, %v443, %v1677
      %v1948 = vsel %vm1328, %v446, %v1679
      %v1949 = vsel %vm1328, %v448, %v1681
      %v1950 = vsel %vm1328, %v451, %v1683
      %v1951 = vsel %vm1328, %v453, %v1685
      %v1952 = vsel %vm1328, %v456, %v1687
      %v1953 = vsel %vm1328, %v458, %v1689
      %v1954 = vsel %vm1328, %v461, %v1691
      %v1955 = vsel %vm1328, %v463, %v1693
      %v1956 = vsel %vm1328, %v466, %v1695
      %v1957 = vsel %vm1328, %v468, %v1697
      %v1958 = vsel %vm1328, %v471, %v1699
      %v1959 = vsel %vm1328, %v473, %v1701
      %v1960 = vsel %vm1328, %v476, %v1703
      %v1961 = vsel %vm1328, %v478, %v1705
      %v1962 = vsel %vm1361, %v1930, %v1739
      %v1963 = vsel %vm1361, %v1931, %v1741
      %v1964 = vsel %vm1361, %v1932, %v1743
      %v1965 = vsel %vm1361, %v1933, %v1745
      %v1966 = vsel %vm1361, %v1934, %v1747
      %v1967 = vsel %vm1361, %v1935, %v1749
      %v1968 = vsel %vm1361, %v1936, %v1751
      %v1969 = vsel %vm1361, %v1937, %v1753
      %v1970 = vsel %vm1361, %v1938, %v1755
      %v1971 = vsel %vm1361, %v1939, %v1757
      %v1972 = vsel %vm1361, %v1940, %v1759
      %v1973 = vsel %vm1361, %v1941, %v1761
      %v1974 = vsel %vm1361, %v1942, %v1763
      %v1975 = vsel %vm1361, %v1943, %v1765
      %v1976 = vsel %vm1361, %v1944, %v1767
      %v1977 = vsel %vm1361, %v1945, %v1769
      %v1978 = vsel %vm1361, %v1946, %v1771
      %v1979 = vsel %vm1361, %v1947, %v1773
      %v1980 = vsel %vm1361, %v1948, %v1775
      %v1981 = vsel %vm1361, %v1949, %v1777
      %v1982 = vsel %vm1361, %v1950, %v1779
      %v1983 = vsel %vm1361, %v1951, %v1781
      %v1984 = vsel %vm1361, %v1952, %v1783
      %v1985 = vsel %vm1361, %v1953, %v1785
      %v1986 = vsel %vm1361, %v1954, %v1787
      %v1987 = vsel %vm1361, %v1955, %v1789
      %v1988 = vsel %vm1361, %v1956, %v1791
      %v1989 = vsel %vm1361, %v1957, %v1793
      %v1990 = vsel %vm1361, %v1958, %v1795
      %v1991 = vsel %vm1361, %v1959, %v1797
      %v1992 = vsel %vm1361, %v1960, %v1799
      %v1993 = vsel %vm1361, %v1961, %v1801
      %v1994 = vsel %vm1394, %v1962, %v1835
      %v1995 = vsel %vm1394, %v1963, %v1837
      %v1996 = vsel %vm1394, %v1964, %v1839
      %v1997 = vsel %vm1394, %v1965, %v1841
      %v1998 = vsel %vm1394, %v1966, %v1843
      %v1999 = vsel %vm1394, %v1967, %v1845
      %v2000 = vsel %vm1394, %v1968, %v1847
      %v2001 = vsel %vm1394, %v1969, %v1849
      %v2002 = vsel %vm1394, %v1970, %v1851
      %v2003 = vsel %vm1394, %v1971, %v1853
      %v2004 = vsel %vm1394, %v1972, %v1855
      %v2005 = vsel %vm1394, %v1973, %v1857
      %v2006 = vsel %vm1394, %v1974, %v1859
      %v2007 = vsel %vm1394, %v1975, %v1861
      %v2008 = vsel %vm1394, %v1976, %v1863
      %v2009 = vsel %vm1394, %v1977, %v1865
      %v2010 = vsel %vm1394, %v1978, %v1867
      %v2011 = vsel %vm1394, %v1979, %v1869
      %v2012 = vsel %vm1394, %v1980, %v1871
      %v2013 = vsel %vm1394, %v1981, %v1873
      %v2014 = vsel %vm1394, %v1982, %v1875
      %v2015 = vsel %vm1394, %v1983, %v1877
      %v2016 = vsel %vm1394, %v1984, %v1879
      %v2017 = vsel %vm1394, %v1985, %v1881
      %v2018 = vsel %vm1394, %v1986, %v1883
      %v2019 = vsel %vm1394, %v1987, %v1885
      %v2020 = vsel %vm1394, %v1988, %v1887
      %v2021 = vsel %vm1394, %v1989, %v1889
      %v2022 = vsel %vm1394, %v1990, %v1891
      %v2023 = vsel %vm1394, %v1991, %v1893
      %v2024 = vsel %vm1394, %v1992, %v1895
      %v2025 = vsel %vm1394, %v1993, %v1897
      %s2026 = scalar_lea.vmem %s1, 16
      %v2027 = vld [vmem:[%s2026] sm:$0xff]
      %v2028 = vld [vmem:[%s2026 + $0x8] sm:$0xff]
      %v2030 = vsel %vm1432, %v1994, 0
      %v2033 = vsel %vm1432, %v1995, 0
      %v2036 = vsel %vm1432, %v1996, 0
      %v2039 = vsel %vm1432, %v1997, 0
      %v2042 = vsel %vm1432, %v1998, 0
      %v2045 = vsel %vm1432, %v1999, 0
      %v2048 = vsel %vm1432, %v2000, 0
      %v2051 = vsel %vm1432, %v2001, 0
      %v2054 = vsel %vm1432, %v2002, 0
      %v2057 = vsel %vm1432, %v2003, 0
      %v2060 = vsel %vm1432, %v2004, 0
      %v2063 = vsel %vm1432, %v2005, 0
      %v2066 = vsel %vm1432, %v2006, 0
      %v2069 = vsel %vm1432, %v2007, 0
      %v2072 = vsel %vm1432, %v2008, 0
      %v2075 = vsel %vm1432, %v2009, 0
      %v2078 = vsel %vm1432, %v2010, 0
      %v2081 = vsel %vm1432, %v2011, 0
      %v2084 = vsel %vm1432, %v2012, 0
      %v2087 = vsel %vm1432, %v2013, 0
      %v2090 = vsel %vm1432, %v2014, 0
      %v2093 = vsel %vm1432, %v2015, 0
      %v2096 = vsel %vm1432, %v2016, 0
      %v2099 = vsel %vm1432, %v2017, 0
      %v2102 = vsel %vm1432, %v2018, 0
      %v2105 = vsel %vm1432, %v2019, 0
      %v2108 = vsel %vm1432, %v2020, 0
      %v2111 = vsel %vm1432, %v2021, 0
      %v2114 = vsel %vm1432, %v2022, 0
      %v2117 = vsel %vm1432, %v2023, 0
      %v2120 = vsel %vm1432, %v2024, 0
      %v2123 = vsel %vm1432, %v2025, 0
      %2125 = vmatpush.msra.mxu0 0.0
      %2126 = vmatpush.msra.mxu0 0.0
      %2127 = vmatpush.msra.mxu0 0.0
      %2128 = vmatpush.msra.mxu0 0.0
      %2129 = vmatpush.msra.mxu0 0.0
      %2130 = vmatpush.msra.mxu0 0.0
      %2131 = vmatpush.msra.mxu0 0.0
      %2132 = vmatpush.msra.mxu0 0.0
      %2133 = vmatpush.msra.mxu0 0.0
      %2134 = vmatpush.msra.mxu0 0.0
      %2135 = vmatpush.msra.mxu0 0.0
      %2136 = vmatpush.msra.mxu0 0.0
      %2137 = vmatpush.msra.mxu0 0.0
      %2138 = vmatpush.msra.mxu0 0.0
      %2139 = vmatpush.msra.mxu0 %v2028
      %2140 = vmatpush.msra.mxu0 %v2027
      %2141 = vmatmul.f32.gmra.mxu0 %v2030
      %v2142 = vpop.f32.mrf.mxu0
      %v2143 = vadd.f32 %v1430, %v2142
      %2144 = vmatmul.f32.gmra.mxu0 %v2033
      %v2145 = vpop.f32.mrf.mxu0
      %v2146 = vadd.f32 %v1430, %v2145
      %2147 = vmatmul.f32.gmra.mxu0 %v2036
      %v2148 = vpop.f32.mrf.mxu0
      %v2149 = vadd.f32 %v1430, %v2148
      %2150 = vmatmul.f32.gmra.mxu0 %v2039
      %v2151 = vpop.f32.mrf.mxu0
      %v2152 = vadd.f32 %v1430, %v2151
      %2153 = vmatmul.f32.gmra.mxu0 %v2042
      %v2154 = vpop.f32.mrf.mxu0
      %v2155 = vadd.f32 %v1430, %v2154
      %2156 = vmatmul.f32.gmra.mxu0 %v2045
      %v2157 = vpop.f32.mrf.mxu0
      %v2158 = vadd.f32 %v1430, %v2157
      %2159 = vmatmul.f32.gmra.mxu0 %v2048
      %v2160 = vpop.f32.mrf.mxu0
      %v2161 = vadd.f32 %v1430, %v2160
      %2162 = vmatmul.f32.gmra.mxu0 %v2051
      %v2163 = vpop.f32.mrf.mxu0
      %v2164 = vadd.f32 %v1430, %v2163
      %2165 = vmatmul.f32.gmra.mxu0 %v2054
      %v2166 = vpop.f32.mrf.mxu0
      %v2167 = vadd.f32 %v1430, %v2166
      %2168 = vmatmul.f32.gmra.mxu0 %v2057
      %v2169 = vpop.f32.mrf.mxu0
      %v2170 = vadd.f32 %v1430, %v2169
      %2171 = vmatmul.f32.gmra.mxu0 %v2060
      %v2172 = vpop.f32.mrf.mxu0
      %v2173 = vadd.f32 %v1430, %v2172
      %2174 = vmatmul.f32.gmra.mxu0 %v2063
      %v2175 = vpop.f32.mrf.mxu0
      %v2176 = vadd.f32 %v1430, %v2175
      %2177 = vmatmul.f32.gmra.mxu0 %v2066
      %v2178 = vpop.f32.mrf.mxu0
      %v2179 = vadd.f32 %v1430, %v2178
      %2180 = vmatmul.f32.gmra.mxu0 %v2069
      %v2181 = vpop.f32.mrf.mxu0
      %v2182 = vadd.f32 %v1430, %v2181
      %2183 = vmatmul.f32.gmra.mxu0 %v2072
      %v2184 = vpop.f32.mrf.mxu0
      %v2185 = vadd.f32 %v1430, %v2184
      %2186 = vmatmul.f32.gmra.mxu0 %v2075
      %v2187 = vpop.f32.mrf.mxu0
      %v2188 = vadd.f32 %v1430, %v2187
      %2189 = vmatmul.f32.gmra.mxu0 %v2078
      %v2190 = vpop.f32.mrf.mxu0
      %v2191 = vadd.f32 %v1430, %v2190
      %2192 = vmatmul.f32.gmra.mxu0 %v2081
      %v2193 = vpop.f32.mrf.mxu0
      %v2194 = vadd.f32 %v1430, %v2193
      %2195 = vmatmul.f32.gmra.mxu0 %v2084
      %v2196 = vpop.f32.mrf.mxu0
      %v2197 = vadd.f32 %v1430, %v2196
      %2198 = vmatmul.f32.gmra.mxu0 %v2087
      %v2199 = vpop.f32.mrf.mxu0
      %v2200 = vadd.f32 %v1430, %v2199
      %2201 = vmatmul.f32.gmra.mxu0 %v2090
      %v2202 = vpop.f32.mrf.mxu0
      %v2203 = vadd.f32 %v1430, %v2202
      %2204 = vmatmul.f32.gmra.mxu0 %v2093
      %v2205 = vpop.f32.mrf.mxu0
      %v2206 = vadd.f32 %v1430, %v2205
      %2207 = vmatmul.f32.gmra.mxu0 %v2096
      %v2208 = vpop.f32.mrf.mxu0
      %v2209 = vadd.f32 %v1430, %v2208
      %2210 = vmatmul.f32.gmra.mxu0 %v2099
      %v2211 = vpop.f32.mrf.mxu0
      %v2212 = vadd.f32 %v1430, %v2211
      %2213 = vmatmul.f32.gmra.mxu0 %v2102
      %v2214 = vpop.f32.mrf.mxu0
      %v2215 = vadd.f32 %v1430, %v2214
      %2216 = vmatmul.f32.gmra.mxu0 %v2105
      %v2217 = vpop.f32.mrf.mxu0
      %v2218 = vadd.f32 %v1430, %v2217
      %2219 = vmatmul.f32.gmra.mxu0 %v2108
      %v2220 = vpop.f32.mrf.mxu0
      %v2221 = vadd.f32 %v1430, %v2220
      %2222 = vmatmul.f32.gmra.mxu0 %v2111
      %v2223 = vpop.f32.mrf.mxu0
      %v2224 = vadd.f32 %v1430, %v2223
      %2225 = vmatmul.f32.gmra.mxu0 %v2114
      %v2226 = vpop.f32.mrf.mxu0
      %v2227 = vadd.f32 %v1430, %v2226
      %2228 = vmatmul.f32.gmra.mxu0 %v2117
      %v2229 = vpop.f32.mrf.mxu0
      %v2230 = vadd.f32 %v1430, %v2229
      %2231 = vmatmul.f32.gmra.mxu0 %v2120
      %v2232 = vpop.f32.mrf.mxu0
      %v2233 = vadd.f32 %v1430, %v2232
      %2234 = vmatmul.f32.gmra.mxu0 %v2123
      %v2235 = vpop.f32.mrf.mxu0
      %v2236 = vadd.f32 %v1430, %v2235
      %2237 = vdwg.mxu0
      %2270 = vrot.lane.b32.xlu0 %v2143, 4
      %v2271 = vpop.permute.xlu0 %2270
      %2272 = vrot.lane.b32.xlu0 %v2146, 4
      %v2273 = vpop.permute.xlu0 %2272
      %2274 = vrot.lane.b32.xlu0 %v2149, 4
      %v2275 = vpop.permute.xlu0 %2274
      %2276 = vrot.lane.b32.xlu0 %v2152, 4
      %v2277 = vpop.permute.xlu0 %2276
      %2278 = vrot.lane.b32.xlu0 %v2155, 4
      %v2279 = vpop.permute.xlu0 %2278
      %2280 = vrot.lane.b32.xlu0 %v2158, 4
      %v2281 = vpop.permute.xlu0 %2280
      %2282 = vrot.lane.b32.xlu0 %v2161, 4
      %v2283 = vpop.permute.xlu0 %2282
      %2284 = vrot.lane.b32.xlu0 %v2164, 4
      %v2285 = vpop.permute.xlu0 %2284
      %2286 = vrot.lane.b32.xlu0 %v2167, 4
      %v2287 = vpop.permute.xlu0 %2286
      %2288 = vrot.lane.b32.xlu0 %v2170, 4
      %v2289 = vpop.permute.xlu0 %2288
      %2290 = vrot.lane.b32.xlu0 %v2173, 4
      %v2291 = vpop.permute.xlu0 %2290
      %2292 = vrot.lane.b32.xlu0 %v2176, 4
      %v2293 = vpop.permute.xlu0 %2292
      %2294 = vrot.lane.b32.xlu0 %v2179, 4
      %v2295 = vpop.permute.xlu0 %2294
      %2296 = vrot.lane.b32.xlu0 %v2182, 4
      %v2297 = vpop.permute.xlu0 %2296
      %2298 = vrot.lane.b32.xlu0 %v2185, 4
      %v2299 = vpop.permute.xlu0 %2298
      %2300 = vrot.lane.b32.xlu0 %v2188, 4
      %v2301 = vpop.permute.xlu0 %2300
      %2302 = vrot.lane.b32.xlu0 %v2191, 4
      %v2303 = vpop.permute.xlu0 %2302
      %2304 = vrot.lane.b32.xlu0 %v2194, 4
      %v2305 = vpop.permute.xlu0 %2304
      %2306 = vrot.lane.b32.xlu0 %v2197, 4
      %v2307 = vpop.permute.xlu0 %2306
      %2308 = vrot.lane.b32.xlu0 %v2200, 4
      %v2309 = vpop.permute.xlu0 %2308
      %2310 = vrot.lane.b32.xlu0 %v2203, 4
      %v2311 = vpop.permute.xlu0 %2310
      %2312 = vrot.lane.b32.xlu0 %v2206, 4
      %v2313 = vpop.permute.xlu0 %2312
      %2314 = vrot.lane.b32.xlu0 %v2209, 4
      %v2315 = vpop.permute.xlu0 %2314
      %2316 = vrot.lane.b32.xlu0 %v2212, 4
      %v2317 = vpop.permute.xlu0 %2316
      %2318 = vrot.lane.b32.xlu0 %v2215, 4
      %v2319 = vpop.permute.xlu0 %2318
      %2320 = vrot.lane.b32.xlu0 %v2218, 4
      %v2321 = vpop.permute.xlu0 %2320
      %2322 = vrot.lane.b32.xlu0 %v2221, 4
      %v2323 = vpop.permute.xlu0 %2322
      %2324 = vrot.lane.b32.xlu0 %v2224, 4
      %v2325 = vpop.permute.xlu0 %2324
      %2326 = vrot.lane.b32.xlu0 %v2227, 4
      %v2327 = vpop.permute.xlu0 %2326
      %2328 = vrot.lane.b32.xlu0 %v2230, 4
      %v2329 = vpop.permute.xlu0 %2328
      %2330 = vrot.lane.b32.xlu0 %v2233, 4
      %v2331 = vpop.permute.xlu0 %2330
      %2332 = vrot.lane.b32.xlu0 %v2236, 4
      %v2333 = vpop.permute.xlu0 %2332
      %v2366 = vsel %vm1328, %v1547, %v2271
      %v2367 = vsel %vm1328, %v1550, %v2273
      %v2368 = vsel %vm1328, %v1553, %v2275
      %v2369 = vsel %vm1328, %v1556, %v2277
      %v2370 = vsel %vm1328, %v1559, %v2279
      %v2371 = vsel %vm1328, %v1562, %v2281
      %v2372 = vsel %vm1328, %v1565, %v2283
      %v2373 = vsel %vm1328, %v1568, %v2285
      %v2374 = vsel %vm1328, %v1571, %v2287
      %v2375 = vsel %vm1328, %v1574, %v2289
      %v2376 = vsel %vm1328, %v1577, %v2291
      %v2377 = vsel %vm1328, %v1580, %v2293
      %v2378 = vsel %vm1328, %v1583, %v2295
      %v2379 = vsel %vm1328, %v1586, %v2297
      %v2380 = vsel %vm1328, %v1589, %v2299
      %v2381 = vsel %vm1328, %v1592, %v2301
      %v2382 = vsel %vm1328, %v1595, %v2303
      %v2383 = vsel %vm1328, %v1598, %v2305
      %v2384 = vsel %vm1328, %v1601, %v2307
      %v2385 = vsel %vm1328, %v1604, %v2309
      %v2386 = vsel %vm1328, %v1607, %v2311
      %v2387 = vsel %vm1328, %v1610, %v2313
      %v2388 = vsel %vm1328, %v1613, %v2315
      %v2389 = vsel %vm1328, %v1616, %v2317
      %v2390 = vsel %vm1328, %v1619, %v2319
      %v2391 = vsel %vm1328, %v1622, %v2321
      %v2392 = vsel %vm1328, %v1625, %v2323
      %v2393 = vsel %vm1328, %v1628, %v2325
      %v2394 = vsel %vm1328, %v1631, %v2327
      %v2395 = vsel %vm1328, %v1634, %v2329
      %v2396 = vsel %vm1328, %v1637, %v2331
      %v2397 = vsel %vm1328, %v1640, %v2333
      %2398 = vst.msk [vmem:[%s194] sm:$0xff] %vm1361, %v2366
      %2399 = vst.msk [vmem:[%s194 + $0x8] sm:$0xff] %vm1361, %v2367
      %2400 = vst.msk [vmem:[%s194 + $0x20] sm:$0xff] %vm1361, %v2368
      %2401 = vst.msk [vmem:[%s194 + $0x28] sm:$0xff] %vm1361, %v2369
      %2402 = vst.msk [vmem:[%s194 + $0x40] sm:$0xff] %vm1361, %v2370
      %2403 = vst.msk [vmem:[%s194 + $0x48] sm:$0xff] %vm1361, %v2371
      %2404 = vst.msk [vmem:[%s194 + $0x60] sm:$0xff] %vm1361, %v2372
      %2405 = vst.msk [vmem:[%s194 + $0x68] sm:$0xff] %vm1361, %v2373
      %2406 = vst.msk [vmem:[%s194 + $0x80] sm:$0xff] %vm1361, %v2374
      %2407 = vst.msk [vmem:[%s194 + $0x88] sm:$0xff] %vm1361, %v2375
      %2408 = vst.msk [vmem:[%s194 + $0xa0] sm:$0xff] %vm1361, %v2376
      %2409 = vst.msk [vmem:[%s194 + $0xa8] sm:$0xff] %vm1361, %v2377
      %2410 = vst.msk [vmem:[%s194 + $0xc0] sm:$0xff] %vm1361, %v2378
      %2411 = vst.msk [vmem:[%s194 + $0xc8] sm:$0xff] %vm1361, %v2379
      %2412 = vst.msk [vmem:[%s194 + $0xe0] sm:$0xff] %vm1361, %v2380
      %2413 = vst.msk [vmem:[%s194 + $0xe8] sm:$0xff] %vm1361, %v2381
      %2414 = vst.msk [vmem:[%s194 + $0x100] sm:$0xff] %vm1361, %v2382
      %2415 = vst.msk [vmem:[%s194 + $0x108] sm:$0xff] %vm1361, %v2383
      %2416 = vst.msk [vmem:[%s194 + $0x120] sm:$0xff] %vm1361, %v2384
      %2417 = vst.msk [vmem:[%s194 + $0x128] sm:$0xff] %vm1361, %v2385
      %2418 = vst.msk [vmem:[%s194 + $0x140] sm:$0xff] %vm1361, %v2386
      %2419 = vst.msk [vmem:[%s194 + $0x148] sm:$0xff] %vm1361, %v2387
      %2420 = vst.msk [vmem:[%s194 + $0x160] sm:$0xff] %vm1361, %v2388
      %2421 = vst.msk [vmem:[%s194 + $0x168] sm:$0xff] %vm1361, %v2389
      %2422 = vst.msk [vmem:[%s194 + $0x180] sm:$0xff] %vm1361, %v2390
      %2423 = vst.msk [vmem:[%s194 + $0x188] sm:$0xff] %vm1361, %v2391
      %2424 = vst.msk [vmem:[%s194 + $0x1a0] sm:$0xff] %vm1361, %v2392
      %2425 = vst.msk [vmem:[%s194 + $0x1a8] sm:$0xff] %vm1361, %v2393
      %2426 = vst.msk [vmem:[%s194 + $0x1c0] sm:$0xff] %vm1361, %v2394
      %2427 = vst.msk [vmem:[%s194 + $0x1c8] sm:$0xff] %vm1361, %v2395
      %2428 = vst.msk [vmem:[%s194 + $0x1e0] sm:$0xff] %vm1361, %v2396
      %2429 = vst.msk [vmem:[%s194 + $0x1e8] sm:$0xff] %vm1361, %v2397
      %2430 = vrot.lane.b32.xlu0 %v642, 4
      %v2431 = vpop.permute.xlu0 %2430
      %2432 = vrot.lane.b32.xlu0 %v644, 4
      %v2433 = vpop.permute.xlu0 %2432
      %2434 = vrot.lane.b32.xlu0 %v647, 4
      %v2435 = vpop.permute.xlu0 %2434
      %2436 = vrot.lane.b32.xlu0 %v649, 4
      %v2437 = vpop.permute.xlu0 %2436
      %2438 = vrot.lane.b32.xlu0 %v652, 4
      %v2439 = vpop.permute.xlu0 %2438
      %2440 = vrot.lane.b32.xlu0 %v654, 4
      %v2441 = vpop.permute.xlu0 %2440
      %2442 = vrot.lane.b32.xlu0 %v657, 4
      %v2443 = vpop.permute.xlu0 %2442
      %2444 = vrot.lane.b32.xlu0 %v659, 4
      %v2445 = vpop.permute.xlu0 %2444
      %2446 = vrot.lane.b32.xlu0 %v662, 4
      %v2447 = vpop.permute.xlu0 %2446
      %2448 = vrot.lane.b32.xlu0 %v664, 4
      %v2449 = vpop.permute.xlu0 %2448
      %2450 = vrot.lane.b32.xlu0 %v667, 4
      %v2451 = vpop.permute.xlu0 %2450
      %2452 = vrot.lane.b32.xlu0 %v669, 4
      %v2453 = vpop.permute.xlu0 %2452
      %2454 = vrot.lane.b32.xlu0 %v672, 4
      %v2455 = vpop.permute.xlu0 %2454
      %2456 = vrot.lane.b32.xlu0 %v674, 4
      %v2457 = vpop.permute.xlu0 %2456
      %2458 = vrot.lane.b32.xlu0 %v677, 4
      %v2459 = vpop.permute.xlu0 %2458
      %2460 = vrot.lane.b32.xlu0 %v679, 4
      %v2461 = vpop.permute.xlu0 %2460
      %2462 = vrot.lane.b32.xlu0 %v682, 4
      %v2463 = vpop.permute.xlu0 %2462
      %2464 = vrot.lane.b32.xlu0 %v684, 4
      %v2465 = vpop.permute.xlu0 %2464
      %2466 = vrot.lane.b32.xlu0 %v687, 4
      %v2467 = vpop.permute.xlu0 %2466
      %2468 = vrot.lane.b32.xlu0 %v689, 4
      %v2469 = vpop.permute.xlu0 %2468
      %2470 = vrot.lane.b32.xlu0 %v692, 4
      %v2471 = vpop.permute.xlu0 %2470
      %2472 = vrot.lane.b32.xlu0 %v694, 4
      %v2473 = vpop.permute.xlu0 %2472
      %2474 = vrot.lane.b32.xlu0 %v697, 4
      %v2475 = vpop.permute.xlu0 %2474
      %2476 = vrot.lane.b32.xlu0 %v699, 4
      %v2477 = vpop.permute.xlu0 %2476
      %2478 = vrot.lane.b32.xlu0 %v702, 4
      %v2479 = vpop.permute.xlu0 %2478
      %2480 = vrot.lane.b32.xlu0 %v704, 4
      %v2481 = vpop.permute.xlu0 %2480
      %2482 = vrot.lane.b32.xlu0 %v707, 4
      %v2483 = vpop.permute.xlu0 %2482
      %2484 = vrot.lane.b32.xlu0 %v709, 4
      %v2485 = vpop.permute.xlu0 %2484
      %2486 = vrot.lane.b32.xlu0 %v712, 4
      %v2487 = vpop.permute.xlu0 %2486
      %2488 = vrot.lane.b32.xlu0 %v714, 4
      %v2489 = vpop.permute.xlu0 %2488
      %2490 = vrot.lane.b32.xlu0 %v717, 4
      %v2491 = vpop.permute.xlu0 %2490
      %2492 = vrot.lane.b32.xlu0 %v719, 4
      %v2493 = vpop.permute.xlu0 %2492
      %2526 = vrot.lane.b32.xlu0 %v302, 8
      %v2527 = vpop.permute.xlu0 %2526
      %2528 = vrot.lane.b32.xlu0 %v303, 8
      %v2529 = vpop.permute.xlu0 %2528
      %2530 = vrot.lane.b32.xlu0 %v305, 8
      %v2531 = vpop.permute.xlu0 %2530
      %2532 = vrot.lane.b32.xlu0 %v306, 8
      %v2533 = vpop.permute.xlu0 %2532
      %2534 = vrot.lane.b32.xlu0 %v308, 8
      %v2535 = vpop.permute.xlu0 %2534
      %2536 = vrot.lane.b32.xlu0 %v309, 8
      %v2537 = vpop.permute.xlu0 %2536
      %2538 = vrot.lane.b32.xlu0 %v311, 8
      %v2539 = vpop.permute.xlu0 %2538
      %2540 = vrot.lane.b32.xlu0 %v312, 8
      %v2541 = vpop.permute.xlu0 %2540
      %2542 = vrot.lane.b32.xlu0 %v314, 8
      %v2543 = vpop.permute.xlu0 %2542
      %2544 = vrot.lane.b32.xlu0 %v315, 8
      %v2545 = vpop.permute.xlu0 %2544
      %2546 = vrot.lane.b32.xlu0 %v317, 8
      %v2547 = vpop.permute.xlu0 %2546
      %2548 = vrot.lane.b32.xlu0 %v318, 8
      %v2549 = vpop.permute.xlu0 %2548
      %2550 = vrot.lane.b32.xlu0 %v320, 8
      %v2551 = vpop.permute.xlu0 %2550
      %2552 = vrot.lane.b32.xlu0 %v321, 8
      %v2553 = vpop.permute.xlu0 %2552
      %2554 = vrot.lane.b32.xlu0 %v323, 8
      %v2555 = vpop.permute.xlu0 %2554
      %2556 = vrot.lane.b32.xlu0 %v324, 8
      %v2557 = vpop.permute.xlu0 %2556
      %2558 = vrot.lane.b32.xlu0 %v326, 8
      %v2559 = vpop.permute.xlu0 %2558
      %2560 = vrot.lane.b32.xlu0 %v327, 8
      %v2561 = vpop.permute.xlu0 %2560
      %2562 = vrot.lane.b32.xlu0 %v329, 8
      %v2563 = vpop.permute.xlu0 %2562
      %2564 = vrot.lane.b32.xlu0 %v330, 8
      %v2565 = vpop.permute.xlu0 %2564
      %2566 = vrot.lane.b32.xlu0 %v332, 8
      %v2567 = vpop.permute.xlu0 %2566
      %2568 = vrot.lane.b32.xlu0 %v333, 8
      %v2569 = vpop.permute.xlu0 %2568
      %2570 = vrot.lane.b32.xlu0 %v335, 8
      %v2571 = vpop.permute.xlu0 %2570
      %2572 = vrot.lane.b32.xlu0 %v336, 8
      %v2573 = vpop.permute.xlu0 %2572
      %2574 = vrot.lane.b32.xlu0 %v338, 8
      %v2575 = vpop.permute.xlu0 %2574
      %2576 = vrot.lane.b32.xlu0 %v339, 8
      %v2577 = vpop.permute.xlu0 %2576
      %2578 = vrot.lane.b32.xlu0 %v341, 8
      %v2579 = vpop.permute.xlu0 %2578
      %2580 = vrot.lane.b32.xlu0 %v342, 8
      %v2581 = vpop.permute.xlu0 %2580
      %2582 = vrot.lane.b32.xlu0 %v344, 8
      %v2583 = vpop.permute.xlu0 %2582
      %2584 = vrot.lane.b32.xlu0 %v345, 8
      %v2585 = vpop.permute.xlu0 %2584
      %2586 = vrot.lane.b32.xlu0 %v347, 8
      %v2587 = vpop.permute.xlu0 %2586
      %2588 = vrot.lane.b32.xlu0 %v348, 8
      %v2589 = vpop.permute.xlu0 %2588
      %2622 = vrot.lane.b32.xlu0 %v882, 12
      %v2623 = vpop.permute.xlu0 %2622
      %2624 = vrot.lane.b32.xlu0 %v884, 12
      %v2625 = vpop.permute.xlu0 %2624
      %2626 = vrot.lane.b32.xlu0 %v887, 12
      %v2627 = vpop.permute.xlu0 %2626
      %2628 = vrot.lane.b32.xlu0 %v889, 12
      %v2629 = vpop.permute.xlu0 %2628
      %2630 = vrot.lane.b32.xlu0 %v892, 12
      %v2631 = vpop.permute.xlu0 %2630
      %2632 = vrot.lane.b32.xlu0 %v894, 12
      %v2633 = vpop.permute.xlu0 %2632
      %2634 = vrot.lane.b32.xlu0 %v897, 12
      %v2635 = vpop.permute.xlu0 %2634
      %2636 = vrot.lane.b32.xlu0 %v899, 12
      %v2637 = vpop.permute.xlu0 %2636
      %2638 = vrot.lane.b32.xlu0 %v902, 12
      %v2639 = vpop.permute.xlu0 %2638
      %2640 = vrot.lane.b32.xlu0 %v904, 12
      %v2641 = vpop.permute.xlu0 %2640
      %2642 = vrot.lane.b32.xlu0 %v907, 12
      %v2643 = vpop.permute.xlu0 %2642
      %2644 = vrot.lane.b32.xlu0 %v909, 12
      %v2645 = vpop.permute.xlu0 %2644
      %2646 = vrot.lane.b32.xlu0 %v912, 12
      %v2647 = vpop.permute.xlu0 %2646
      %2648 = vrot.lane.b32.xlu0 %v914, 12
      %v2649 = vpop.permute.xlu0 %2648
      %2650 = vrot.lane.b32.xlu0 %v917, 12
      %v2651 = vpop.permute.xlu0 %2650
      %2652 = vrot.lane.b32.xlu0 %v919, 12
      %v2653 = vpop.permute.xlu0 %2652
      %2654 = vrot.lane.b32.xlu0 %v922, 12
      %v2655 = vpop.permute.xlu0 %2654
      %2656 = vrot.lane.b32.xlu0 %v924, 12
      %v2657 = vpop.permute.xlu0 %2656
      %2658 = vrot.lane.b32.xlu0 %v927, 12
      %v2659 = vpop.permute.xlu0 %2658
      %2660 = vrot.lane.b32.xlu0 %v929, 12
      %v2661 = vpop.permute.xlu0 %2660
      %2662 = vrot.lane.b32.xlu0 %v932, 12
      %v2663 = vpop.permute.xlu0 %2662
      %2664 = vrot.lane.b32.xlu0 %v934, 12
      %v2665 = vpop.permute.xlu0 %2664
      %2666 = vrot.lane.b32.xlu0 %v937, 12
      %v2667 = vpop.permute.xlu0 %2666
      %2668 = vrot.lane.b32.xlu0 %v939, 12
      %v2669 = vpop.permute.xlu0 %2668
      %2670 = vrot.lane.b32.xlu0 %v942, 12
      %v2671 = vpop.permute.xlu0 %2670
      %2672 = vrot.lane.b32.xlu0 %v944, 12
      %v2673 = vpop.permute.xlu0 %2672
      %2674 = vrot.lane.b32.xlu0 %v947, 12
      %v2675 = vpop.permute.xlu0 %2674
      %2676 = vrot.lane.b32.xlu0 %v949, 12
      %v2677 = vpop.permute.xlu0 %2676
      %2678 = vrot.lane.b32.xlu0 %v952, 12
      %v2679 = vpop.permute.xlu0 %2678
      %2680 = vrot.lane.b32.xlu0 %v954, 12
      %v2681 = vpop.permute.xlu0 %2680
      %2682 = vrot.lane.b32.xlu0 %v957, 12
      %v2683 = vpop.permute.xlu0 %2682
      %2684 = vrot.lane.b32.xlu0 %v959, 12
      %v2685 = vpop.permute.xlu0 %2684
      %v2718 = vsel %vm1328, %v251, %v2431
      %v2719 = vsel %vm1328, %v252, %v2433
      %v2720 = vsel %vm1328, %v254, %v2435
      %v2721 = vsel %vm1328, %v255, %v2437
      %v2722 = vsel %vm1328, %v257, %v2439
      %v2723 = vsel %vm1328, %v258, %v2441
      %v2724 = vsel %vm1328, %v260, %v2443
      %v2725 = vsel %vm1328, %v261, %v2445
      %v2726 = vsel %vm1328, %v263, %v2447
      %v2727 = vsel %vm1328, %v264, %v2449
      %v2728 = vsel %vm1328, %v266, %v2451
      %v2729 = vsel %vm1328, %v267, %v2453
      %v2730 = vsel %vm1328, %v269, %v2455
      %v2731 = vsel %vm1328, %v270, %v2457
      %v2732 = vsel %vm1328, %v272, %v2459
      %v2733 = vsel %vm1328, %v273, %v2461
      %v2734 = vsel %vm1328, %v275, %v2463
      %v2735 = vsel %vm1328, %v276, %v2465
      %v2736 = vsel %vm1328, %v278, %v2467
      %v2737 = vsel %vm1328, %v279, %v2469
      %v2738 = vsel %vm1328, %v281, %v2471
      %v2739 = vsel %vm1328, %v282, %v2473
      %v2740 = vsel %vm1328, %v284, %v2475
      %v2741 = vsel %vm1328, %v285, %v2477
      %v2742 = vsel %vm1328, %v287, %v2479
      %v2743 = vsel %vm1328, %v288, %v2481
      %v2744 = vsel %vm1328, %v290, %v2483
      %v2745 = vsel %vm1328, %v291, %v2485
      %v2746 = vsel %vm1328, %v293, %v2487
      %v2747 = vsel %vm1328, %v294, %v2489
      %v2748 = vsel %vm1328, %v296, %v2491
      %v2749 = vsel %vm1328, %v297, %v2493
      %v2750 = vsel %vm1361, %v2718, %v2527
      %v2751 = vsel %vm1361, %v2719, %v2529
      %v2752 = vsel %vm1361, %v2720, %v2531
      %v2753 = vsel %vm1361, %v2721, %v2533
      %v2754 = vsel %vm1361, %v2722, %v2535
      %v2755 = vsel %vm1361, %v2723, %v2537
      %v2756 = vsel %vm1361, %v2724, %v2539
      %v2757 = vsel %vm1361, %v2725, %v2541
      %v2758 = vsel %vm1361, %v2726, %v2543
      %v2759 = vsel %vm1361, %v2727, %v2545
      %v2760 = vsel %vm1361, %v2728, %v2547
      %v2761 = vsel %vm1361, %v2729, %v2549
      %v2762 = vsel %vm1361, %v2730, %v2551
      %v2763 = vsel %vm1361, %v2731, %v2553
      %v2764 = vsel %vm1361, %v2732, %v2555
      %v2765 = vsel %vm1361, %v2733, %v2557
      %v2766 = vsel %vm1361, %v2734, %v2559
      %v2767 = vsel %vm1361, %v2735, %v2561
      %v2768 = vsel %vm1361, %v2736, %v2563
      %v2769 = vsel %vm1361, %v2737, %v2565
      %v2770 = vsel %vm1361, %v2738, %v2567
      %v2771 = vsel %vm1361, %v2739, %v2569
      %v2772 = vsel %vm1361, %v2740, %v2571
      %v2773 = vsel %vm1361, %v2741, %v2573
      %v2774 = vsel %vm1361, %v2742, %v2575
      %v2775 = vsel %vm1361, %v2743, %v2577
      %v2776 = vsel %vm1361, %v2744, %v2579
      %v2777 = vsel %vm1361, %v2745, %v2581
      %v2778 = vsel %vm1361, %v2746, %v2583
      %v2779 = vsel %vm1361, %v2747, %v2585
      %v2780 = vsel %vm1361, %v2748, %v2587
      %v2781 = vsel %vm1361, %v2749, %v2589
      %v2782 = vsel %vm1394, %v2750, %v2623
      %v2783 = vsel %vm1394, %v2751, %v2625
      %v2784 = vsel %vm1394, %v2752, %v2627
      %v2785 = vsel %vm1394, %v2753, %v2629
      %v2786 = vsel %vm1394, %v2754, %v2631
      %v2787 = vsel %vm1394, %v2755, %v2633
      %v2788 = vsel %vm1394, %v2756, %v2635
      %v2789 = vsel %vm1394, %v2757, %v2637
      %v2790 = vsel %vm1394, %v2758, %v2639
      %v2791 = vsel %vm1394, %v2759, %v2641
      %v2792 = vsel %vm1394, %v2760, %v2643
      %v2793 = vsel %vm1394, %v2761, %v2645
      %v2794 = vsel %vm1394, %v2762, %v2647
      %v2795 = vsel %vm1394, %v2763, %v2649
      %v2796 = vsel %vm1394, %v2764, %v2651
      %v2797 = vsel %vm1394, %v2765, %v2653
      %v2798 = vsel %vm1394, %v2766, %v2655
      %v2799 = vsel %vm1394, %v2767, %v2657
      %v2800 = vsel %vm1394, %v2768, %v2659
      %v2801 = vsel %vm1394, %v2769, %v2661
      %v2802 = vsel %vm1394, %v2770, %v2663
      %v2803 = vsel %vm1394, %v2771, %v2665
      %v2804 = vsel %vm1394, %v2772, %v2667
      %v2805 = vsel %vm1394, %v2773, %v2669
      %v2806 = vsel %vm1394, %v2774, %v2671
      %v2807 = vsel %vm1394, %v2775, %v2673
      %v2808 = vsel %vm1394, %v2776, %v2675
      %v2809 = vsel %vm1394, %v2777, %v2677
      %v2810 = vsel %vm1394, %v2778, %v2679
      %v2811 = vsel %vm1394, %v2779, %v2681
      %v2812 = vsel %vm1394, %v2780, %v2683
      %v2813 = vsel %vm1394, %v2781, %v2685
      %s2814 = scalar_lea.vmem %s1, 32
      %v2815 = vld [vmem:[%s2814] sm:$0xff]
      %v2816 = vld [vmem:[%s2814 + $0x8] sm:$0xff]
      %v2818 = vsel %vm1432, %v2782, 0
      %v2821 = vsel %vm1432, %v2783, 0
      %v2824 = vsel %vm1432, %v2784, 0
      %v2827 = vsel %vm1432, %v2785, 0
      %v2830 = vsel %vm1432, %v2786, 0
      %v2833 = vsel %vm1432, %v2787, 0
      %v2836 = vsel %vm1432, %v2788, 0
      %v2839 = vsel %vm1432, %v2789, 0
      %v2842 = vsel %vm1432, %v2790, 0
      %v2845 = vsel %vm1432, %v2791, 0
      %v2848 = vsel %vm1432, %v2792, 0
      %v2851 = vsel %vm1432, %v2793, 0
      %v2854 = vsel %vm1432, %v2794, 0
      %v2857 = vsel %vm1432, %v2795, 0
      %v2860 = vsel %vm1432, %v2796, 0
      %v2863 = vsel %vm1432, %v2797, 0
      %v2866 = vsel %vm1432, %v2798, 0
      %v2869 = vsel %vm1432, %v2799, 0
      %v2872 = vsel %vm1432, %v2800, 0
      %v2875 = vsel %vm1432, %v2801, 0
      %v2878 = vsel %vm1432, %v2802, 0
      %v2881 = vsel %vm1432, %v2803, 0
      %v2884 = vsel %vm1432, %v2804, 0
      %v2887 = vsel %vm1432, %v2805, 0
      %v2890 = vsel %vm1432, %v2806, 0
      %v2893 = vsel %vm1432, %v2807, 0
      %v2896 = vsel %vm1432, %v2808, 0
      %v2899 = vsel %vm1432, %v2809, 0
      %v2902 = vsel %vm1432, %v2810, 0
      %v2905 = vsel %vm1432, %v2811, 0
      %v2908 = vsel %vm1432, %v2812, 0
      %v2911 = vsel %vm1432, %v2813, 0
      %2913 = vmatpush.msra.mxu0 0.0
      %2914 = vmatpush.msra.mxu0 0.0
      %2915 = vmatpush.msra.mxu0 0.0
      %2916 = vmatpush.msra.mxu0 0.0
      %2917 = vmatpush.msra.mxu0 0.0
      %2918 = vmatpush.msra.mxu0 0.0
      %2919 = vmatpush.msra.mxu0 0.0
      %2920 = vmatpush.msra.mxu0 0.0
      %2921 = vmatpush.msra.mxu0 0.0
      %2922 = vmatpush.msra.mxu0 0.0
      %2923 = vmatpush.msra.mxu0 0.0
      %2924 = vmatpush.msra.mxu0 0.0
      %2925 = vmatpush.msra.mxu0 0.0
      %2926 = vmatpush.msra.mxu0 0.0
      %2927 = vmatpush.msra.mxu0 %v2816
      %2928 = vmatpush.msra.mxu0 %v2815
      %2929 = vmatmul.f32.gmra.mxu0 %v2818
      %v2930 = vpop.f32.mrf.mxu0
      %v2931 = vadd.f32 %v1430, %v2930
      %2932 = vmatmul.f32.gmra.mxu0 %v2821
      %v2933 = vpop.f32.mrf.mxu0
      %v2934 = vadd.f32 %v1430, %v2933
      %2935 = vmatmul.f32.gmra.mxu0 %v2824
      %v2936 = vpop.f32.mrf.mxu0
      %v2937 = vadd.f32 %v1430, %v2936
      %2938 = vmatmul.f32.gmra.mxu0 %v2827
      %v2939 = vpop.f32.mrf.mxu0
      %v2940 = vadd.f32 %v1430, %v2939
      %2941 = vmatmul.f32.gmra.mxu0 %v2830
      %v2942 = vpop.f32.mrf.mxu0
      %v2943 = vadd.f32 %v1430, %v2942
      %2944 = vmatmul.f32.gmra.mxu0 %v2833
      %v2945 = vpop.f32.mrf.mxu0
      %v2946 = vadd.f32 %v1430, %v2945
      %2947 = vmatmul.f32.gmra.mxu0 %v2836
      %v2948 = vpop.f32.mrf.mxu0
      %v2949 = vadd.f32 %v1430, %v2948
      %2950 = vmatmul.f32.gmra.mxu0 %v2839
      %v2951 = vpop.f32.mrf.mxu0
      %v2952 = vadd.f32 %v1430, %v2951
      %2953 = vmatmul.f32.gmra.mxu0 %v2842
      %v2954 = vpop.f32.mrf.mxu0
      %v2955 = vadd.f32 %v1430, %v2954
      %2956 = vmatmul.f32.gmra.mxu0 %v2845
      %v2957 = vpop.f32.mrf.mxu0
      %v2958 = vadd.f32 %v1430, %v2957
      %2959 = vmatmul.f32.gmra.mxu0 %v2848
      %v2960 = vpop.f32.mrf.mxu0
      %v2961 = vadd.f32 %v1430, %v2960
      %2962 = vmatmul.f32.gmra.mxu0 %v2851
      %v2963 = vpop.f32.mrf.mxu0
      %v2964 = vadd.f32 %v1430, %v2963
      %2965 = vmatmul.f32.gmra.mxu0 %v2854
      %v2966 = vpop.f32.mrf.mxu0
      %v2967 = vadd.f32 %v1430, %v2966
      %2968 = vmatmul.f32.gmra.mxu0 %v2857
      %v2969 = vpop.f32.mrf.mxu0
      %v2970 = vadd.f32 %v1430, %v2969
      %2971 = vmatmul.f32.gmra.mxu0 %v2860
      %v2972 = vpop.f32.mrf.mxu0
      %v2973 = vadd.f32 %v1430, %v2972
      %2974 = vmatmul.f32.gmra.mxu0 %v2863
      %v2975 = vpop.f32.mrf.mxu0
      %v2976 = vadd.f32 %v1430, %v2975
      %2977 = vmatmul.f32.gmra.mxu0 %v2866
      %v2978 = vpop.f32.mrf.mxu0
      %v2979 = vadd.f32 %v1430, %v2978
      %2980 = vmatmul.f32.gmra.mxu0 %v2869
      %v2981 = vpop.f32.mrf.mxu0
      %v2982 = vadd.f32 %v1430, %v2981
      %2983 = vmatmul.f32.gmra.mxu0 %v2872
      %v2984 = vpop.f32.mrf.mxu0
      %v2985 = vadd.f32 %v1430, %v2984
      %2986 = vmatmul.f32.gmra.mxu0 %v2875
      %v2987 = vpop.f32.mrf.mxu0
      %v2988 = vadd.f32 %v1430, %v2987
      %2989 = vmatmul.f32.gmra.mxu0 %v2878
      %v2990 = vpop.f32.mrf.mxu0
      %v2991 = vadd.f32 %v1430, %v2990
      %2992 = vmatmul.f32.gmra.mxu0 %v2881
      %v2993 = vpop.f32.mrf.mxu0
      %v2994 = vadd.f32 %v1430, %v2993
      %2995 = vmatmul.f32.gmra.mxu0 %v2884
      %v2996 = vpop.f32.mrf.mxu0
      %v2997 = vadd.f32 %v1430, %v2996
      %2998 = vmatmul.f32.gmra.mxu0 %v2887
      %v2999 = vpop.f32.mrf.mxu0
      %v3000 = vadd.f32 %v1430, %v2999
      %3001 = vmatmul.f32.gmra.mxu0 %v2890
      %v3002 = vpop.f32.mrf.mxu0
      %v3003 = vadd.f32 %v1430, %v3002
      %3004 = vmatmul.f32.gmra.mxu0 %v2893
      %v3005 = vpop.f32.mrf.mxu0
      %v3006 = vadd.f32 %v1430, %v3005
      %3007 = vmatmul.f32.gmra.mxu0 %v2896
      %v3008 = vpop.f32.mrf.mxu0
      %v3009 = vadd.f32 %v1430, %v3008
      %3010 = vmatmul.f32.gmra.mxu0 %v2899
      %v3011 = vpop.f32.mrf.mxu0
      %v3012 = vadd.f32 %v1430, %v3011
      %3013 = vmatmul.f32.gmra.mxu0 %v2902
      %v3014 = vpop.f32.mrf.mxu0
      %v3015 = vadd.f32 %v1430, %v3014
      %3016 = vmatmul.f32.gmra.mxu0 %v2905
      %v3017 = vpop.f32.mrf.mxu0
      %v3018 = vadd.f32 %v1430, %v3017
      %3019 = vmatmul.f32.gmra.mxu0 %v2908
      %v3020 = vpop.f32.mrf.mxu0
      %v3021 = vadd.f32 %v1430, %v3020
      %3022 = vmatmul.f32.gmra.mxu0 %v2911
      %v3023 = vpop.f32.mrf.mxu0
      %v3024 = vadd.f32 %v1430, %v3023
      %3025 = vdwg.mxu0
      %3026 = vrot.lane.b32.xlu0 %v754, 4
      %v3027 = vpop.permute.xlu0 %3026
      %3028 = vrot.lane.b32.xlu0 %v756, 4
      %v3029 = vpop.permute.xlu0 %3028
      %3030 = vrot.lane.b32.xlu0 %v759, 4
      %v3031 = vpop.permute.xlu0 %3030
      %3032 = vrot.lane.b32.xlu0 %v761, 4
      %v3033 = vpop.permute.xlu0 %3032
      %3034 = vrot.lane.b32.xlu0 %v764, 4
      %v3035 = vpop.permute.xlu0 %3034
      %3036 = vrot.lane.b32.xlu0 %v766, 4
      %v3037 = vpop.permute.xlu0 %3036
      %3038 = vrot.lane.b32.xlu0 %v769, 4
      %v3039 = vpop.permute.xlu0 %3038
      %3040 = vrot.lane.b32.xlu0 %v771, 4
      %v3041 = vpop.permute.xlu0 %3040
      %3042 = vrot.lane.b32.xlu0 %v774, 4
      %v3043 = vpop.permute.xlu0 %3042
      %3044 = vrot.lane.b32.xlu0 %v776, 4
      %v3045 = vpop.permute.xlu0 %3044
      %3046 = vrot.lane.b32.xlu0 %v779, 4
      %v3047 = vpop.permute.xlu0 %3046
      %3048 = vrot.lane.b32.xlu0 %v781, 4
      %v3049 = vpop.permute.xlu0 %3048
      %3050 = vrot.lane.b32.xlu0 %v784, 4
      %v3051 = vpop.permute.xlu0 %3050
      %3052 = vrot.lane.b32.xlu0 %v786, 4
      %v3053 = vpop.permute.xlu0 %3052
      %3054 = vrot.lane.b32.xlu0 %v789, 4
      %v3055 = vpop.permute.xlu0 %3054
      %3056 = vrot.lane.b32.xlu0 %v791, 4
      %v3057 = vpop.permute.xlu0 %3056
      %3058 = vrot.lane.b32.xlu0 %v794, 4
      %v3059 = vpop.permute.xlu0 %3058
      %3060 = vrot.lane.b32.xlu0 %v796, 4
      %v3061 = vpop.permute.xlu0 %3060
      %3062 = vrot.lane.b32.xlu0 %v799, 4
      %v3063 = vpop.permute.xlu0 %3062
      %3064 = vrot.lane.b32.xlu0 %v801, 4
      %v3065 = vpop.permute.xlu0 %3064
      %3066 = vrot.lane.b32.xlu0 %v804, 4
      %v3067 = vpop.permute.xlu0 %3066
      %3068 = vrot.lane.b32.xlu0 %v806, 4
      %v3069 = vpop.permute.xlu0 %3068
      %3070 = vrot.lane.b32.xlu0 %v809, 4
      %v3071 = vpop.permute.xlu0 %3070
      %3072 = vrot.lane.b32.xlu0 %v811, 4
      %v3073 = vpop.permute.xlu0 %3072
      %3074 = vrot.lane.b32.xlu0 %v814, 4
      %v3075 = vpop.permute.xlu0 %3074
      %3076 = vrot.lane.b32.xlu0 %v816, 4
      %v3077 = vpop.permute.xlu0 %3076
      %3078 = vrot.lane.b32.xlu0 %v819, 4
      %v3079 = vpop.permute.xlu0 %3078
      %3080 = vrot.lane.b32.xlu0 %v821, 4
      %v3081 = vpop.permute.xlu0 %3080
      %3082 = vrot.lane.b32.xlu0 %v824, 4
      %v3083 = vpop.permute.xlu0 %3082
      %3084 = vrot.lane.b32.xlu0 %v826, 4
      %v3085 = vpop.permute.xlu0 %3084
      %3086 = vrot.lane.b32.xlu0 %v829, 4
      %v3087 = vpop.permute.xlu0 %3086
      %3088 = vrot.lane.b32.xlu0 %v831, 4
      %v3089 = vpop.permute.xlu0 %3088
      %3122 = vrot.lane.b32.xlu0 %v882, 8
      %v3123 = vpop.permute.xlu0 %3122
      %3124 = vrot.lane.b32.xlu0 %v884, 8
      %v3125 = vpop.permute.xlu0 %3124
      %3126 = vrot.lane.b32.xlu0 %v887, 8
      %v3127 = vpop.permute.xlu0 %3126
      %3128 = vrot.lane.b32.xlu0 %v889, 8
      %v3129 = vpop.permute.xlu0 %3128
      %3130 = vrot.lane.b32.xlu0 %v892, 8
      %v3131 = vpop.permute.xlu0 %3130
      %3132 = vrot.lane.b32.xlu0 %v894, 8
      %v3133 = vpop.permute.xlu0 %3132
      %3134 = vrot.lane.b32.xlu0 %v897, 8
      %v3135 = vpop.permute.xlu0 %3134
      %3136 = vrot.lane.b32.xlu0 %v899, 8
      %v3137 = vpop.permute.xlu0 %3136
      %3138 = vrot.lane.b32.xlu0 %v902, 8
      %v3139 = vpop.permute.xlu0 %3138
      %3140 = vrot.lane.b32.xlu0 %v904, 8
      %v3141 = vpop.permute.xlu0 %3140
      %3142 = vrot.lane.b32.xlu0 %v907, 8
      %v3143 = vpop.permute.xlu0 %3142
      %3144 = vrot.lane.b32.xlu0 %v909, 8
      %v3145 = vpop.permute.xlu0 %3144
      %3146 = vrot.lane.b32.xlu0 %v912, 8
      %v3147 = vpop.permute.xlu0 %3146
      %3148 = vrot.lane.b32.xlu0 %v914, 8
      %v3149 = vpop.permute.xlu0 %3148
      %3150 = vrot.lane.b32.xlu0 %v917, 8
      %v3151 = vpop.permute.xlu0 %3150
      %3152 = vrot.lane.b32.xlu0 %v919, 8
      %v3153 = vpop.permute.xlu0 %3152
      %3154 = vrot.lane.b32.xlu0 %v922, 8
      %v3155 = vpop.permute.xlu0 %3154
      %3156 = vrot.lane.b32.xlu0 %v924, 8
      %v3157 = vpop.permute.xlu0 %3156
      %3158 = vrot.lane.b32.xlu0 %v927, 8
      %v3159 = vpop.permute.xlu0 %3158
      %3160 = vrot.lane.b32.xlu0 %v929, 8
      %v3161 = vpop.permute.xlu0 %3160
      %3162 = vrot.lane.b32.xlu0 %v932, 8
      %v3163 = vpop.permute.xlu0 %3162
      %3164 = vrot.lane.b32.xlu0 %v934, 8
      %v3165 = vpop.permute.xlu0 %3164
      %3166 = vrot.lane.b32.xlu0 %v937, 8
      %v3167 = vpop.permute.xlu0 %3166
      %3168 = vrot.lane.b32.xlu0 %v939, 8
      %v3169 = vpop.permute.xlu0 %3168
      %3170 = vrot.lane.b32.xlu0 %v942, 8
      %v3171 = vpop.permute.xlu0 %3170
      %3172 = vrot.lane.b32.xlu0 %v944, 8
      %v3173 = vpop.permute.xlu0 %3172
      %3174 = vrot.lane.b32.xlu0 %v947, 8
      %v3175 = vpop.permute.xlu0 %3174
      %3176 = vrot.lane.b32.xlu0 %v949, 8
      %v3177 = vpop.permute.xlu0 %3176
      %3178 = vrot.lane.b32.xlu0 %v952, 8
      %v3179 = vpop.permute.xlu0 %3178
      %3180 = vrot.lane.b32.xlu0 %v954, 8
      %v3181 = vpop.permute.xlu0 %3180
      %3182 = vrot.lane.b32.xlu0 %v957, 8
      %v3183 = vpop.permute.xlu0 %3182
      %3184 = vrot.lane.b32.xlu0 %v959, 8
      %v3185 = vpop.permute.xlu0 %3184
      %3218 = vrot.lane.b32.xlu0 %v962, 12
      %v3219 = vpop.permute.xlu0 %3218
      %3220 = vrot.lane.b32.xlu0 %v964, 12
      %v3221 = vpop.permute.xlu0 %3220
      %3222 = vrot.lane.b32.xlu0 %v967, 12
      %v3223 = vpop.permute.xlu0 %3222
      %3224 = vrot.lane.b32.xlu0 %v969, 12
      %v3225 = vpop.permute.xlu0 %3224
      %3226 = vrot.lane.b32.xlu0 %v972, 12
      %v3227 = vpop.permute.xlu0 %3226
      %3228 = vrot.lane.b32.xlu0 %v974, 12
      %v3229 = vpop.permute.xlu0 %3228
      %3230 = vrot.lane.b32.xlu0 %v977, 12
      %v3231 = vpop.permute.xlu0 %3230
      %3232 = vrot.lane.b32.xlu0 %v979, 12
      %v3233 = vpop.permute.xlu0 %3232
      %3234 = vrot.lane.b32.xlu0 %v982, 12
      %v3235 = vpop.permute.xlu0 %3234
      %3236 = vrot.lane.b32.xlu0 %v984, 12
      %v3237 = vpop.permute.xlu0 %3236
      %3238 = vrot.lane.b32.xlu0 %v987, 12
      %v3239 = vpop.permute.xlu0 %3238
      %3240 = vrot.lane.b32.xlu0 %v989, 12
      %v3241 = vpop.permute.xlu0 %3240
      %3242 = vrot.lane.b32.xlu0 %v992, 12
      %v3243 = vpop.permute.xlu0 %3242
      %3244 = vrot.lane.b32.xlu0 %v994, 12
      %v3245 = vpop.permute.xlu0 %3244
      %3246 = vrot.lane.b32.xlu0 %v997, 12
      %v3247 = vpop.permute.xlu0 %3246
      %3248 = vrot.lane.b32.xlu0 %v999, 12
      %v3249 = vpop.permute.xlu0 %3248
      %3250 = vrot.lane.b32.xlu0 %v1002, 12
      %v3251 = vpop.permute.xlu0 %3250
      %3252 = vrot.lane.b32.xlu0 %v1004, 12
      %v3253 = vpop.permute.xlu0 %3252
      %3254 = vrot.lane.b32.xlu0 %v1007, 12
      %v3255 = vpop.permute.xlu0 %3254
      %3256 = vrot.lane.b32.xlu0 %v1009, 12
      %v3257 = vpop.permute.xlu0 %3256
      %3258 = vrot.lane.b32.xlu0 %v1012, 12
      %v3259 = vpop.permute.xlu0 %3258
      %3260 = vrot.lane.b32.xlu0 %v1014, 12
      %v3261 = vpop.permute.xlu0 %3260
      %3262 = vrot.lane.b32.xlu0 %v1017, 12
      %v3263 = vpop.permute.xlu0 %3262
      %3264 = vrot.lane.b32.xlu0 %v1019, 12
      %v3265 = vpop.permute.xlu0 %3264
      %3266 = vrot.lane.b32.xlu0 %v1022, 12
      %v3267 = vpop.permute.xlu0 %3266
      %3268 = vrot.lane.b32.xlu0 %v1024, 12
      %v3269 = vpop.permute.xlu0 %3268
      %3270 = vrot.lane.b32.xlu0 %v1027, 12
      %v3271 = vpop.permute.xlu0 %3270
      %3272 = vrot.lane.b32.xlu0 %v1029, 12
      %v3273 = vpop.permute.xlu0 %3272
      %3274 = vrot.lane.b32.xlu0 %v1032, 12
      %v3275 = vpop.permute.xlu0 %3274
      %3276 = vrot.lane.b32.xlu0 %v1034, 12
      %v3277 = vpop.permute.xlu0 %3276
      %3278 = vrot.lane.b32.xlu0 %v1037, 12
      %v3279 = vpop.permute.xlu0 %3278
      %3280 = vrot.lane.b32.xlu0 %v1039, 12
      %v3281 = vpop.permute.xlu0 %3280
      %v3314 = vsel %vm1328, %v642, %v3027
      %v3315 = vsel %vm1328, %v644, %v3029
      %v3316 = vsel %vm1328, %v647, %v3031
      %v3317 = vsel %vm1328, %v649, %v3033
      %v3318 = vsel %vm1328, %v652, %v3035
      %v3319 = vsel %vm1328, %v654, %v3037
      %v3320 = vsel %vm1328, %v657, %v3039
      %v3321 = vsel %vm1328, %v659, %v3041
      %v3322 = vsel %vm1328, %v662, %v3043
      %v3323 = vsel %vm1328, %v664, %v3045
      %v3324 = vsel %vm1328, %v667, %v3047
      %v3325 = vsel %vm1328, %v669, %v3049
      %v3326 = vsel %vm1328, %v672, %v3051
      %v3327 = vsel %vm1328, %v674, %v3053
      %v3328 = vsel %vm1328, %v677, %v3055
      %v3329 = vsel %vm1328, %v679, %v3057
      %v3330 = vsel %vm1328, %v682, %v3059
      %v3331 = vsel %vm1328, %v684, %v3061
      %v3332 = vsel %vm1328, %v687, %v3063
      %v3333 = vsel %vm1328, %v689, %v3065
      %v3334 = vsel %vm1328, %v692, %v3067
      %v3335 = vsel %vm1328, %v694, %v3069
      %v3336 = vsel %vm1328, %v697, %v3071
      %v3337 = vsel %vm1328, %v699, %v3073
      %v3338 = vsel %vm1328, %v702, %v3075
      %v3339 = vsel %vm1328, %v704, %v3077
      %v3340 = vsel %vm1328, %v707, %v3079
      %v3341 = vsel %vm1328, %v709, %v3081
      %v3342 = vsel %vm1328, %v712, %v3083
      %v3343 = vsel %vm1328, %v714, %v3085
      %v3344 = vsel %vm1328, %v717, %v3087
      %v3345 = vsel %vm1328, %v719, %v3089
      %v3346 = vsel %vm1361, %v3314, %v3123
      %v3347 = vsel %vm1361, %v3315, %v3125
      %v3348 = vsel %vm1361, %v3316, %v3127
      %v3349 = vsel %vm1361, %v3317, %v3129
      %v3350 = vsel %vm1361, %v3318, %v3131
      %v3351 = vsel %vm1361, %v3319, %v3133
      %v3352 = vsel %vm1361, %v3320, %v3135
      %v3353 = vsel %vm1361, %v3321, %v3137
      %v3354 = vsel %vm1361, %v3322, %v3139
      %v3355 = vsel %vm1361, %v3323, %v3141
      %v3356 = vsel %vm1361, %v3324, %v3143
      %v3357 = vsel %vm1361, %v3325, %v3145
      %v3358 = vsel %vm1361, %v3326, %v3147
      %v3359 = vsel %vm1361, %v3327, %v3149
      %v3360 = vsel %vm1361, %v3328, %v3151
      %v3361 = vsel %vm1361, %v3329, %v3153
      %v3362 = vsel %vm1361, %v3330, %v3155
      %v3363 = vsel %vm1361, %v3331, %v3157
      %v3364 = vsel %vm1361, %v3332, %v3159
      %v3365 = vsel %vm1361, %v3333, %v3161
      %v3366 = vsel %vm1361, %v3334, %v3163
      %v3367 = vsel %vm1361, %v3335, %v3165
      %v3368 = vsel %vm1361, %v3336, %v3167
      %v3369 = vsel %vm1361, %v3337, %v3169
      %v3370 = vsel %vm1361, %v3338, %v3171
      %v3371 = vsel %vm1361, %v3339, %v3173
      %v3372 = vsel %vm1361, %v3340, %v3175
      %v3373 = vsel %vm1361, %v3341, %v3177
      %v3374 = vsel %vm1361, %v3342, %v3179
      %v3375 = vsel %vm1361, %v3343, %v3181
      %v3376 = vsel %vm1361, %v3344, %v3183
      %v3377 = vsel %vm1361, %v3345, %v3185
      %v3378 = vsel %vm1394, %v3346, %v3219
      %v3379 = vsel %vm1394, %v3347, %v3221
      %v3380 = vsel %vm1394, %v3348, %v3223
      %v3381 = vsel %vm1394, %v3349, %v3225
      %v3382 = vsel %vm1394, %v3350, %v3227
      %v3383 = vsel %vm1394, %v3351, %v3229
      %v3384 = vsel %vm1394, %v3352, %v3231
      %v3385 = vsel %vm1394, %v3353, %v3233
      %v3386 = vsel %vm1394, %v3354, %v3235
      %v3387 = vsel %vm1394, %v3355, %v3237
      %v3388 = vsel %vm1394, %v3356, %v3239
      %v3389 = vsel %vm1394, %v3357, %v3241
      %v3390 = vsel %vm1394, %v3358, %v3243
      %v3391 = vsel %vm1394, %v3359, %v3245
      %v3392 = vsel %vm1394, %v3360, %v3247
      %v3393 = vsel %vm1394, %v3361, %v3249
      %v3394 = vsel %vm1394, %v3362, %v3251
      %v3395 = vsel %vm1394, %v3363, %v3253
      %v3396 = vsel %vm1394, %v3364, %v3255
      %v3397 = vsel %vm1394, %v3365, %v3257
      %v3398 = vsel %vm1394, %v3366, %v3259
      %v3399 = vsel %vm1394, %v3367, %v3261
      %v3400 = vsel %vm1394, %v3368, %v3263
      %v3401 = vsel %vm1394, %v3369, %v3265
      %v3402 = vsel %vm1394, %v3370, %v3267
      %v3403 = vsel %vm1394, %v3371, %v3269
      %v3404 = vsel %vm1394, %v3372, %v3271
      %v3405 = vsel %vm1394, %v3373, %v3273
      %v3406 = vsel %vm1394, %v3374, %v3275
      %v3407 = vsel %vm1394, %v3375, %v3277
      %v3408 = vsel %vm1394, %v3376, %v3279
      %v3409 = vsel %vm1394, %v3377, %v3281
      %s3410 = scalar_lea.vmem %s1, 48
      %v3411 = vld [vmem:[%s3410] sm:$0xff]
      %v3412 = vld [vmem:[%s3410 + $0x8] sm:$0xff]
      %v3414 = vsel %vm1432, %v3378, 0
      %v3417 = vsel %vm1432, %v3379, 0
      %v3420 = vsel %vm1432, %v3380, 0
      %v3423 = vsel %vm1432, %v3381, 0
      %v3426 = vsel %vm1432, %v3382, 0
      %v3429 = vsel %vm1432, %v3383, 0
      %v3432 = vsel %vm1432, %v3384, 0
      %v3435 = vsel %vm1432, %v3385, 0
      %v3438 = vsel %vm1432, %v3386, 0
      %v3441 = vsel %vm1432, %v3387, 0
      %v3444 = vsel %vm1432, %v3388, 0
      %v3447 = vsel %vm1432, %v3389, 0
      %v3450 = vsel %vm1432, %v3390, 0
      %v3453 = vsel %vm1432, %v3391, 0
      %v3456 = vsel %vm1432, %v3392, 0
      %v3459 = vsel %vm1432, %v3393, 0
      %v3462 = vsel %vm1432, %v3394, 0
      %v3465 = vsel %vm1432, %v3395, 0
      %v3468 = vsel %vm1432, %v3396, 0
      %v3471 = vsel %vm1432, %v3397, 0
      %v3474 = vsel %vm1432, %v3398, 0
      %v3477 = vsel %vm1432, %v3399, 0
      %v3480 = vsel %vm1432, %v3400, 0
      %v3483 = vsel %vm1432, %v3401, 0
      %v3486 = vsel %vm1432, %v3402, 0
      %v3489 = vsel %vm1432, %v3403, 0
      %v3492 = vsel %vm1432, %v3404, 0
      %v3495 = vsel %vm1432, %v3405, 0
      %v3498 = vsel %vm1432, %v3406, 0
      %v3501 = vsel %vm1432, %v3407, 0
      %v3504 = vsel %vm1432, %v3408, 0
      %v3507 = vsel %vm1432, %v3409, 0
      %3509 = vmatpush.msra.mxu0 0.0
      %3510 = vmatpush.msra.mxu0 0.0
      %3511 = vmatpush.msra.mxu0 0.0
      %3512 = vmatpush.msra.mxu0 0.0
      %3513 = vmatpush.msra.mxu0 0.0
      %3514 = vmatpush.msra.mxu0 0.0
      %3515 = vmatpush.msra.mxu0 0.0
      %3516 = vmatpush.msra.mxu0 0.0
      %3517 = vmatpush.msra.mxu0 0.0
      %3518 = vmatpush.msra.mxu0 0.0
      %3519 = vmatpush.msra.mxu0 0.0
      %3520 = vmatpush.msra.mxu0 0.0
      %3521 = vmatpush.msra.mxu0 0.0
      %3522 = vmatpush.msra.mxu0 0.0
      %3523 = vmatpush.msra.mxu0 %v3412
      %3524 = vmatpush.msra.mxu0 %v3411
      %3525 = vmatmul.f32.gmra.mxu0 %v3414
      %v3526 = vpop.f32.mrf.mxu0
      %v3527 = vadd.f32 %v1430, %v3526
      %3528 = vmatmul.f32.gmra.mxu0 %v3417
      %v3529 = vpop.f32.mrf.mxu0
      %v3530 = vadd.f32 %v1430, %v3529
      %3531 = vmatmul.f32.gmra.mxu0 %v3420
      %v3532 = vpop.f32.mrf.mxu0
      %v3533 = vadd.f32 %v1430, %v3532
      %3534 = vmatmul.f32.gmra.mxu0 %v3423
      %v3535 = vpop.f32.mrf.mxu0
      %v3536 = vadd.f32 %v1430, %v3535
      %3537 = vmatmul.f32.gmra.mxu0 %v3426
      %v3538 = vpop.f32.mrf.mxu0
      %v3539 = vadd.f32 %v1430, %v3538
      %3540 = vmatmul.f32.gmra.mxu0 %v3429
      %v3541 = vpop.f32.mrf.mxu0
      %v3542 = vadd.f32 %v1430, %v3541
      %3543 = vmatmul.f32.gmra.mxu0 %v3432
      %v3544 = vpop.f32.mrf.mxu0
      %v3545 = vadd.f32 %v1430, %v3544
      %3546 = vmatmul.f32.gmra.mxu0 %v3435
      %v3547 = vpop.f32.mrf.mxu0
      %v3548 = vadd.f32 %v1430, %v3547
      %3549 = vmatmul.f32.gmra.mxu0 %v3438
      %v3550 = vpop.f32.mrf.mxu0
      %v3551 = vadd.f32 %v1430, %v3550
      %3552 = vmatmul.f32.gmra.mxu0 %v3441
      %v3553 = vpop.f32.mrf.mxu0
      %v3554 = vadd.f32 %v1430, %v3553
      %3555 = vmatmul.f32.gmra.mxu0 %v3444
      %v3556 = vpop.f32.mrf.mxu0
      %v3557 = vadd.f32 %v1430, %v3556
      %3558 = vmatmul.f32.gmra.mxu0 %v3447
      %v3559 = vpop.f32.mrf.mxu0
      %v3560 = vadd.f32 %v1430, %v3559
      %3561 = vmatmul.f32.gmra.mxu0 %v3450
      %v3562 = vpop.f32.mrf.mxu0
      %v3563 = vadd.f32 %v1430, %v3562
      %3564 = vmatmul.f32.gmra.mxu0 %v3453
      %v3565 = vpop.f32.mrf.mxu0
      %v3566 = vadd.f32 %v1430, %v3565
      %3567 = vmatmul.f32.gmra.mxu0 %v3456
      %v3568 = vpop.f32.mrf.mxu0
      %v3569 = vadd.f32 %v1430, %v3568
      %3570 = vmatmul.f32.gmra.mxu0 %v3459
      %v3571 = vpop.f32.mrf.mxu0
      %v3572 = vadd.f32 %v1430, %v3571
      %3573 = vmatmul.f32.gmra.mxu0 %v3462
      %v3574 = vpop.f32.mrf.mxu0
      %v3575 = vadd.f32 %v1430, %v3574
      %3576 = vmatmul.f32.gmra.mxu0 %v3465
      %v3577 = vpop.f32.mrf.mxu0
      %v3578 = vadd.f32 %v1430, %v3577
      %3579 = vmatmul.f32.gmra.mxu0 %v3468
      %v3580 = vpop.f32.mrf.mxu0
      %v3581 = vadd.f32 %v1430, %v3580
      %3582 = vmatmul.f32.gmra.mxu0 %v3471
      %v3583 = vpop.f32.mrf.mxu0
      %v3584 = vadd.f32 %v1430, %v3583
      %3585 = vmatmul.f32.gmra.mxu0 %v3474
      %v3586 = vpop.f32.mrf.mxu0
      %v3587 = vadd.f32 %v1430, %v3586
      %3588 = vmatmul.f32.gmra.mxu0 %v3477
      %v3589 = vpop.f32.mrf.mxu0
      %v3590 = vadd.f32 %v1430, %v3589
      %3591 = vmatmul.f32.gmra.mxu0 %v3480
      %v3592 = vpop.f32.mrf.mxu0
      %v3593 = vadd.f32 %v1430, %v3592
      %3594 = vmatmul.f32.gmra.mxu0 %v3483
      %v3595 = vpop.f32.mrf.mxu0
      %v3596 = vadd.f32 %v1430, %v3595
      %3597 = vmatmul.f32.gmra.mxu0 %v3486
      %v3598 = vpop.f32.mrf.mxu0
      %v3599 = vadd.f32 %v1430, %v3598
      %3600 = vmatmul.f32.gmra.mxu0 %v3489
      %v3601 = vpop.f32.mrf.mxu0
      %v3602 = vadd.f32 %v1430, %v3601
      %3603 = vmatmul.f32.gmra.mxu0 %v3492
      %v3604 = vpop.f32.mrf.mxu0
      %v3605 = vadd.f32 %v1430, %v3604
      %3606 = vmatmul.f32.gmra.mxu0 %v3495
      %v3607 = vpop.f32.mrf.mxu0
      %v3608 = vadd.f32 %v1430, %v3607
      %3609 = vmatmul.f32.gmra.mxu0 %v3498
      %v3610 = vpop.f32.mrf.mxu0
      %v3611 = vadd.f32 %v1430, %v3610
      %3612 = vmatmul.f32.gmra.mxu0 %v3501
      %v3613 = vpop.f32.mrf.mxu0
      %v3614 = vadd.f32 %v1430, %v3613
      %3615 = vmatmul.f32.gmra.mxu0 %v3504
      %v3616 = vpop.f32.mrf.mxu0
      %v3617 = vadd.f32 %v1430, %v3616
      %3618 = vmatmul.f32.gmra.mxu0 %v3507
      %v3619 = vpop.f32.mrf.mxu0
      %v3620 = vadd.f32 %v1430, %v3619
      %3621 = vdwg.mxu0
      %3654 = vrot.lane.b32.xlu0 %v3527, 4
      %v3655 = vpop.permute.xlu0 %3654
      %3656 = vrot.lane.b32.xlu0 %v3530, 4
      %v3657 = vpop.permute.xlu0 %3656
      %3658 = vrot.lane.b32.xlu0 %v3533, 4
      %v3659 = vpop.permute.xlu0 %3658
      %3660 = vrot.lane.b32.xlu0 %v3536, 4
      %v3661 = vpop.permute.xlu0 %3660
      %3662 = vrot.lane.b32.xlu0 %v3539, 4
      %v3663 = vpop.permute.xlu0 %3662
      %3664 = vrot.lane.b32.xlu0 %v3542, 4
      %v3665 = vpop.permute.xlu0 %3664
      %3666 = vrot.lane.b32.xlu0 %v3545, 4
      %v3667 = vpop.permute.xlu0 %3666
      %3668 = vrot.lane.b32.xlu0 %v3548, 4
      %v3669 = vpop.permute.xlu0 %3668
      %3670 = vrot.lane.b32.xlu0 %v3551, 4
      %v3671 = vpop.permute.xlu0 %3670
      %3672 = vrot.lane.b32.xlu0 %v3554, 4
      %v3673 = vpop.permute.xlu0 %3672
      %3674 = vrot.lane.b32.xlu0 %v3557, 4
      %v3675 = vpop.permute.xlu0 %3674
      %3676 = vrot.lane.b32.xlu0 %v3560, 4
      %v3677 = vpop.permute.xlu0 %3676
      %3678 = vrot.lane.b32.xlu0 %v3563, 4
      %v3679 = vpop.permute.xlu0 %3678
      %3680 = vrot.lane.b32.xlu0 %v3566, 4
      %v3681 = vpop.permute.xlu0 %3680
      %3682 = vrot.lane.b32.xlu0 %v3569, 4
      %v3683 = vpop.permute.xlu0 %3682
      %3684 = vrot.lane.b32.xlu0 %v3572, 4
      %v3685 = vpop.permute.xlu0 %3684
      %3686 = vrot.lane.b32.xlu0 %v3575, 4
      %v3687 = vpop.permute.xlu0 %3686
      %3688 = vrot.lane.b32.xlu0 %v3578, 4
      %v3689 = vpop.permute.xlu0 %3688
      %3690 = vrot.lane.b32.xlu0 %v3581, 4
      %v3691 = vpop.permute.xlu0 %3690
      %3692 = vrot.lane.b32.xlu0 %v3584, 4
      %v3693 = vpop.permute.xlu0 %3692
      %3694 = vrot.lane.b32.xlu0 %v3587, 4
      %v3695 = vpop.permute.xlu0 %3694
      %3696 = vrot.lane.b32.xlu0 %v3590, 4
      %v3697 = vpop.permute.xlu0 %3696
      %3698 = vrot.lane.b32.xlu0 %v3593, 4
      %v3699 = vpop.permute.xlu0 %3698
      %3700 = vrot.lane.b32.xlu0 %v3596, 4
      %v3701 = vpop.permute.xlu0 %3700
      %3702 = vrot.lane.b32.xlu0 %v3599, 4
      %v3703 = vpop.permute.xlu0 %3702
      %3704 = vrot.lane.b32.xlu0 %v3602, 4
      %v3705 = vpop.permute.xlu0 %3704
      %3706 = vrot.lane.b32.xlu0 %v3605, 4
      %v3707 = vpop.permute.xlu0 %3706
      %3708 = vrot.lane.b32.xlu0 %v3608, 4
      %v3709 = vpop.permute.xlu0 %3708
      %3710 = vrot.lane.b32.xlu0 %v3611, 4
      %v3711 = vpop.permute.xlu0 %3710
      %3712 = vrot.lane.b32.xlu0 %v3614, 4
      %v3713 = vpop.permute.xlu0 %3712
      %3714 = vrot.lane.b32.xlu0 %v3617, 4
      %v3715 = vpop.permute.xlu0 %3714
      %3716 = vrot.lane.b32.xlu0 %v3620, 4
      %v3717 = vpop.permute.xlu0 %3716
      %v3750 = vsel %vm1328, %v2931, %v3655
      %v3751 = vsel %vm1328, %v2934, %v3657
      %v3752 = vsel %vm1328, %v2937, %v3659
      %v3753 = vsel %vm1328, %v2940, %v3661
      %v3754 = vsel %vm1328, %v2943, %v3663
      %v3755 = vsel %vm1328, %v2946, %v3665
      %v3756 = vsel %vm1328, %v2949, %v3667
      %v3757 = vsel %vm1328, %v2952, %v3669
      %v3758 = vsel %vm1328, %v2955, %v3671
      %v3759 = vsel %vm1328, %v2958, %v3673
      %v3760 = vsel %vm1328, %v2961, %v3675
      %v3761 = vsel %vm1328, %v2964, %v3677
      %v3762 = vsel %vm1328, %v2967, %v3679
      %v3763 = vsel %vm1328, %v2970, %v3681
      %v3764 = vsel %vm1328, %v2973, %v3683
      %v3765 = vsel %vm1328, %v2976, %v3685
      %v3766 = vsel %vm1328, %v2979, %v3687
      %v3767 = vsel %vm1328, %v2982, %v3689
      %v3768 = vsel %vm1328, %v2985, %v3691
      %v3769 = vsel %vm1328, %v2988, %v3693
      %v3770 = vsel %vm1328, %v2991, %v3695
      %v3771 = vsel %vm1328, %v2994, %v3697
      %v3772 = vsel %vm1328, %v2997, %v3699
      %v3773 = vsel %vm1328, %v3000, %v3701
      %v3774 = vsel %vm1328, %v3003, %v3703
      %v3775 = vsel %vm1328, %v3006, %v3705
      %v3776 = vsel %vm1328, %v3009, %v3707
      %v3777 = vsel %vm1328, %v3012, %v3709
      %v3778 = vsel %vm1328, %v3015, %v3711
      %v3779 = vsel %vm1328, %v3018, %v3713
      %v3780 = vsel %vm1328, %v3021, %v3715
      %v3781 = vsel %vm1328, %v3024, %v3717
      %s3782 = scalar_lea.vmem %s194, 16
      %3783 = vst.msk [vmem:[%s3782] sm:$0xff] %vm1361, %v3750
      %3784 = vst.msk [vmem:[%s3782 + $0x8] sm:$0xff] %vm1361, %v3751
      %3785 = vst.msk [vmem:[%s3782 + $0x20] sm:$0xff] %vm1361, %v3752
      %3786 = vst.msk [vmem:[%s3782 + $0x28] sm:$0xff] %vm1361, %v3753
      %3787 = vst.msk [vmem:[%s3782 + $0x40] sm:$0xff] %vm1361, %v3754
      %3788 = vst.msk [vmem:[%s3782 + $0x48] sm:$0xff] %vm1361, %v3755
      %3789 = vst.msk [vmem:[%s3782 + $0x60] sm:$0xff] %vm1361, %v3756
      %3790 = vst.msk [vmem:[%s3782 + $0x68] sm:$0xff] %vm1361, %v3757
      %3791 = vst.msk [vmem:[%s3782 + $0x80] sm:$0xff] %vm1361, %v3758
      %3792 = vst.msk [vmem:[%s3782 + $0x88] sm:$0xff] %vm1361, %v3759
      %3793 = vst.msk [vmem:[%s3782 + $0xa0] sm:$0xff] %vm1361, %v3760
      %3794 = vst.msk [vmem:[%s3782 + $0xa8] sm:$0xff] %vm1361, %v3761
      %3795 = vst.msk [vmem:[%s3782 + $0xc0] sm:$0xff] %vm1361, %v3762
      %3796 = vst.msk [vmem:[%s3782 + $0xc8] sm:$0xff] %vm1361, %v3763
      %3797 = vst.msk [vmem:[%s3782 + $0xe0] sm:$0xff] %vm1361, %v3764
      %3798 = vst.msk [vmem:[%s3782 + $0xe8] sm:$0xff] %vm1361, %v3765
      %3799 = vst.msk [vmem:[%s3782 + $0x100] sm:$0xff] %vm1361, %v3766
      %3800 = vst.msk [vmem:[%s3782 + $0x108] sm:$0xff] %vm1361, %v3767
      %3801 = vst.msk [vmem:[%s3782 + $0x120] sm:$0xff] %vm1361, %v3768
      %3802 = vst.msk [vmem:[%s3782 + $0x128] sm:$0xff] %vm1361, %v3769
      %3803 = vst.msk [vmem:[%s3782 + $0x140] sm:$0xff] %vm1361, %v3770
      %3804 = vst.msk [vmem:[%s3782 + $0x148] sm:$0xff] %vm1361, %v3771
      %3805 = vst.msk [vmem:[%s3782 + $0x160] sm:$0xff] %vm1361, %v3772
      %3806 = vst.msk [vmem:[%s3782 + $0x168] sm:$0xff] %vm1361, %v3773
      %3807 = vst.msk [vmem:[%s3782 + $0x180] sm:$0xff] %vm1361, %v3774
      %3808 = vst.msk [vmem:[%s3782 + $0x188] sm:$0xff] %vm1361, %v3775
      %3809 = vst.msk [vmem:[%s3782 + $0x1a0] sm:$0xff] %vm1361, %v3776
      %3810 = vst.msk [vmem:[%s3782 + $0x1a8] sm:$0xff] %vm1361, %v3777
      %3811 = vst.msk [vmem:[%s3782 + $0x1c0] sm:$0xff] %vm1361, %v3778
      %3812 = vst.msk [vmem:[%s3782 + $0x1c8] sm:$0xff] %vm1361, %v3779
      %3813 = vst.msk [vmem:[%s3782 + $0x1e0] sm:$0xff] %vm1361, %v3780
      %3814 = vst.msk [vmem:[%s3782 + $0x1e8] sm:$0xff] %vm1361, %v3781
      %s3815 = smul.u32 16, %s19
      %p3816 = scmp.lt.s32.totalorder %s18, 1
      %s3817 = scalar_select %p3816, %s18, 1
      %p3818 = scmp.lt.s32.totalorder %s3815, 15
      %s3819 = scalar_select %p3818, %s3815, 15
      %s3820 = smul.addr %s3819, 4
      %s3821 = smul.addr %s3817, 64
      %s3822 = sadd.s32 %s3820, %s3821
      %s3823 = smul.addr %s3822, 8
      %s3824 = scalar_lea.vmem %s3, %s3823
      // Predicated region
      $region33: #{upsample_forward.1} parent=31 // pred_check
        %p3825 = pneg %p114
      $region34: #{upsample_forward.1} parent=31 // pred_check_branch
        %3827 = sbr.rel (%p3825) target = $region36
      $region35: #{upsample_forward.1} parent=31 // pred_region
        %s3828 = smul.u32 16, %s19
      $region36: #{upsample_forward.1} parent=31 // pred_fallthru
        _
    $region32: #{upsample_forward.1} parent=5 // pred_fallthru
      _
    %p3829 = scmp.le.s32.totalorder 2, %s9
    // Predicated region
    $region37: #{upsample_forward.1} parent=5 // pred_check
      %p3830 = pneg %p3829
    $region38: #{upsample_forward.1} parent=5 // pred_check_branch
      %3832 = sbr.rel (%p3830) target = $region40
    $region39: #{upsample_forward.1} parent=5 // pred_region
      %s3833 = ssub.s32 %s9, 2
      // Predicated region
      $region41: #{upsample_forward.1} parent=39 // pred_check
        %p3834 = pneg %p120
      $region42: #{upsample_forward.1} parent=39 // pred_check_branch
        %3836 = sbr.rel (%p3834) target = $region44
      $region43: #{upsample_forward.1} parent=39 // pred_region
        %s3837 = smul.u32 16, %s21
        %p3838 = scmp.lt.s32.totalorder %s20, 1
        %s3839 = scalar_select %p3838, %s20, 1
        %p3840 = scmp.lt.s32.totalorder %s3837, 15
        %s3841 = scalar_select %p3840, %s3837, 15
        %s3842 = smul.addr %s3841, 4
        %s3843 = smul.addr %s3839, 64
        %s3844 = sadd.s32 %s3842, %s3843
        %s3845 = smul.addr %s3844, 8
        %s3846 = scalar_lea.vmem %s3, %s3845
      $region44: #{upsample_forward.1} parent=39 // pred_fallthru
        _
    $region40: #{upsample_forward.1} parent=5 // pred_fallthru
      _
  $region6: #{upsample_forward.1} parent=0 // loop_footer
    %s13 = sadd.s32 1, %s9
  $region7: #{upsample_forward.1} parent=0 // loop_footer_branch
    %8 = sbr.rel target = $region3
  $region8: #{upsample_forward.1} parent=0 // loop_exit
    _

</llo_original>
